<compile_context>
chip_gen: v7x
topology: tpu7x:2x2x1
jax: 0.10.0
libtpu: 0.0.40
codegen_flags: <defaults>
</compile_context>

<pallas_src>
import functools

import jax
import jax.numpy as jnp
from jax import lax
from jax.experimental import pallas as pl
from jax.experimental.pallas import tpu as pltpu

K = 5              # kernel_size
PAD = 2            # padding
NEG_SLOPE = 0.01   # nn.LeakyReLU default negative_slope
REDUCTION = 16     # SELayer reduction
_TOP_HALO = 16     # scratch top halo rows (>= PAD; 16 keeps interior stores
                   # tile-aligned for bf16)


def _leaky_relu(x):
    return jnp.where(x > 0, x, NEG_SLOPE * x)


def _residual_block_kernel(x_ref, w1_ref, w2_ref, pfc1_ref, fc2e_ref,
                           o_ref, act_ref, *, img_h):
    """One grid step = b_tile images, stacked along the sublane (row) axis.

    x_ref    : (M, W*C)      f32  M = b_tile * img_h NHWC rows (lane-dense)
    w1_ref   : (K, W*C, W*C) bf16 Toeplitz-banded conv1 weight (one block / kh tap)
    w2_ref   : (K, W*C, W*C) bf16 banded conv2 weight
    pfc1_ref : (Cr, W*C)     f32  SE fc1^T, 1/(H*W) avg-pool folded in, tiled over W
    fc2e_ref : (Cr, W*C)     f32  SE fc2, tiled over W (channel -> lane broadcast)
    o_ref    : (M, W*C)      f32
    act_ref  : (TOP + M + PAD, W*C) bf16 activation scratch with a row halo.
               Halo rows are never zeroed: out-of-image / cross-image taps are
               masked below, so steps are independent and the axis is parallel.
    """
    M, WC = x_ref.shape
    Kh = w1_ref.shape[0]
    Cr = pfc1_ref.shape[0]
    H = img_h
    BT = M // H
    TP = act_ref.shape[0] - M - PAD

    # Row-within-image index (M, 1); masks conv taps that would read the
    # neighbouring image (or outside the image) in the stacked layout.
    m_idx = lax.broadcasted_iota(jnp.int32, (M, 1), 0)
    if H & (H - 1) == 0:
        r_idx = jnp.bitwise_and(m_idx, H - 1)
    else:
        r_idx = m_idx % H  # TODO(synk): confirm vector remainder lowering for non-pow2 H

    x = x_ref[...]                                      # (M, WC) f32
    act_ref[TP:TP + M, :] = x.astype(jnp.bfloat16)

    def banded_conv(w_ref):
        """5-tap conv = 5 row-shifted lane-dense bf16 matmuls, f32 accumulation."""
        acc = jnp.zeros((M, WC), jnp.float32)
        for kh in range(Kh):
            dh = kh - PAD
            slab = act_ref[TP + dh:TP + dh + M, :]      # (M, WC) bf16
            if dh < 0:    # rows r < -dh would read the previous image / halo
                slab = jnp.where(r_idx >= -dh, slab, jnp.zeros_like(slab))
            elif dh > 0:  # rows r >= H - dh would read the next image / halo
                slab = jnp.where(r_idx < H - dh, slab, jnp.zeros_like(slab))
            acc = acc + jnp.dot(slab, w_ref[kh],
                                preferred_element_type=jnp.float32)
        return acc

    h1 = _leaky_relu(banded_conv(w1_ref))               # (M, WC) f32
    act_ref[TP:TP + M, :] = h1.astype(jnp.bfloat16)
    h2 = _leaky_relu(banded_conv(w2_ref))               # (M, WC) f32

    # ---- SE layer --------------------------------------------------------
    # Per-image pooling / re-broadcast across the stacked rows via tiny 0/1
    # matrices built from iotas (keeps everything 2D and batched).
    b_row = lax.broadcasted_iota(jnp.int32, (BT, M), 0)      # image id
    m_col = lax.broadcasted_iota(jnp.int32, (BT, M), 1)      # stacked row id
    pool_t = jnp.where((m_col >= b_row * H) & (m_col < b_row * H + H), 1.0, 0.0)
    m_row = lax.broadcasted_iota(jnp.int32, (M, BT), 0)
    b_col = lax.broadcasted_iota(jnp.int32, (M, BT), 1)
    pool = jnp.where((m_row >= b_col * H) & (m_row < b_col * H + H), 1.0, 0.0)

    colsum = jnp.dot(pool_t, h2, preferred_element_type=jnp.float32)   # (BT, WC)
    s_pre = jnp.zeros((BT, WC), jnp.float32)
    for cr in range(Cr):  # Cr = C // 16 is tiny; unrolled VPU math, no awkward MXU shapes
        z_cr = jnp.maximum(
            jnp.sum(colsum * pfc1_ref[cr:cr + 1, :], axis=1, keepdims=True), 0.0)
        s_pre = s_pre + z_cr * fc2e_ref[cr:cr + 1, :]
    s = jax.nn.sigmoid(s_pre)                                           # (BT, WC)
    s_full = jnp.dot(pool, s, preferred_element_type=jnp.float32)       # (M, WC)

    # Residual add reads the f32 input directly (single rounding of the
    # identity path), final LeakyReLU, lane-dense store.
    out = _leaky_relu(h2 * s_full + x)
    o_ref[...] = out.astype(o_ref.dtype)


def _banded_conv_weight(w_oihw, W):
    """OIHW (Cout, Cin, K, K) -> (K, W*Cin, W*Cout) Toeplitz blocks (no width pad).

    band[kh, wi*Cin + ci, wo*Cout + co] = w[co, ci, kh, wi - wo + PAD]
    whenever 0 <= wi - wo + PAD < K, else 0; width zero-padding is therefore
    implicit (out-of-range width taps simply have no band entry).
    """
    Cout, Cin, KH, KW = w_oihw.shape
    Wp = W + 2 * PAD
    wt = jnp.transpose(w_oihw, (2, 3, 1, 0))                     # (KH, KW, Cin, Cout)
    cols = [jnp.pad(wt, ((0, 0), (wo, Wp - KW - wo), (0, 0), (0, 0)))
            for wo in range(W)]                                  # (KH, Wp, Cin, Cout)
    band = jnp.stack(cols, axis=3).reshape(KH, Wp * Cin, W * Cout)
    return band[:, PAD * Cin:(PAD + W) * Cin, :]                 # drop pad-width rows


def pack_params(params, H, W):
    """Build kernel-layout weights (done once, outside the hot path)."""
    w1b = _banded_conv_weight(params["w1_oihw"], W).astype(jnp.bfloat16)
    w2b = _banded_conv_weight(params["w2_oihw"], W).astype(jnp.bfloat16)
    # Fold the 1/(H*W) global average pool into fc1 and replicate both SE
    # matrices across the W lane positions so the kernel never needs a
    # lane<->sublane channel reshape.
    pfc1 = jnp.tile(params["fc1_t"].T, (1, W)).astype(jnp.float32) / float(H * W)
    fc2e = jnp.tile(params["fc2_t"], (1, W)).astype(jnp.float32)
    return {"w1b": w1b, "w2b": w2b, "pfc1": pfc1, "fc2e": fc2e}


def residual_block_forward(x_nchw, packed, b_tile=None):
    """x_nchw: (B, C, H, W) float32 -> (B, C, H, W) float32."""
    B, Cin, H, W = x_nchw.shape
    w1b, w2b, pfc1, fc2e = (packed["w1b"], packed["w2b"],
                            packed["pfc1"], packed["fc2e"])
    WC = w1b.shape[2]
    Cout = WC // W
    Cr = pfc1.shape[0]
    assert Cin == Cout, "identity shortcut requires in_channel == out_channel"
    assert w1b.shape == (K, W * Cin, WC) and w2b.shape == (K, WC, WC)
    assert pfc1.shape == (Cr, WC) and fc2e.shape == (Cr, WC)

    # Batch-stack rows so each conv-tap matmul has M ~ 128-256 sublanes
    # (fills the 128/256-tall MXU; per-step overhead amortized over b_tile).
    if b_tile is None:
        b_tile = max(1, min(B, max(1, 256 // H)))
    if (b_tile * H) % 8 != 0:
        b_tile = B            # single full-array block keeps the BlockSpec legal
    n_steps = pl.cdiv(B, b_tile)
    Bp = n_steps * b_tile
    M = b_tile * H

    # NCHW -> NHWC -> batch-stacked (B*H, W*C) lane-dense rows.
    x_rows = jnp.transpose(x_nchw, (0, 2, 3, 1)).reshape(B, H, WC)
    if Bp != B:
        x_rows = jnp.pad(x_rows, ((0, Bp - B), (0, 0), (0, 0)))
    x_rows = x_rows.reshape(Bp * H, WC)

    kernel = functools.partial(_residual_block_kernel, img_h=H)
    out_rows = pl.pallas_call(
        kernel,
        out_shape=jax.ShapeDtypeStruct((Bp * H, WC), x_nchw.dtype),
        grid_spec=pltpu.PrefetchScalarGridSpec(
            num_scalar_prefetch=0,
            grid=(n_steps,),
            in_specs=[
                pl.BlockSpec((M, WC), lambda i: (i, 0)),
                # TODO(synk): single-buffer these grid-invariant weight blocks
                #             (pipeline_mode=pl.Buffered(1)) once plumbed
                #             through the Mosaic pipeliner; saves one VMEM copy
                #             of each band (matters on v7x's 64 MiB VMEM).
                pl.BlockSpec((K, WC, WC), lambda i: (0, 0, 0)),
                pl.BlockSpec((K, WC, WC), lambda i: (0, 0, 0)),
                pl.BlockSpec((Cr, WC), lambda i: (0, 0)),
                pl.BlockSpec((Cr, WC), lambda i: (0, 0)),
            ],
            out_specs=pl.BlockSpec((M, WC), lambda i: (i, 0)),
            scratch_shapes=[
                pltpu.VMEM((_TOP_HALO + M + PAD, WC), jnp.bfloat16),
            ],
        ),
        compiler_params=pltpu.CompilerParams(
            # Steps are fully independent (the scratch is rewritten before any
            # read), so the batch-tile axis is safe to shard across cores.
            # TODO(synk): verify the axis actually splits across v7x's 2 TCs;
            #             switch to pltpu.CORE_PARALLEL / core_map if not.
            dimension_semantics=("parallel",),
            # Footprint is ~5 MiB at these shapes; keep the limit tight enough
            # that accidental growth is flagged instead of silently absorbed.
            vmem_limit_bytes=16 * 1024 * 1024,
        ),
    )(x_rows, w1b, w2b, pfc1, fc2e)

    out_rows = out_rows[:B * H]
    return jnp.transpose(out_rows.reshape(B, H, W, Cout), (0, 3, 1, 2))


def init_params(key, in_channel, out_channel):
    """Deterministic init mirroring the PyTorch module (all layers bias-free)."""
    assert out_channel >= REDUCTION, "SE bottleneck needs out_channel >= reduction"
    k1, k2, k3, k4 = jax.random.split(key, 4)
    cr = out_channel // REDUCTION
    std1 = (2.0 / (in_channel * K * K)) ** 0.5
    std2 = (2.0 / (out_channel * K * K)) ** 0.5
    w1_oihw = std1 * jax.random.normal(k1, (out_channel, in_channel, K, K), jnp.float32)
    w2_oihw = std2 * jax.random.normal(k2, (out_channel, out_channel, K, K), jnp.float32)
    b1 = 1.0 / (out_channel ** 0.5)
    b2 = 1.0 / (cr ** 0.5)
    fc1_t = jax.random.uniform(k3, (out_channel, cr), jnp.float32, -b1, b1)  # fc1.weight.T
    fc2_t = jax.random.uniform(k4, (cr, out_channel), jnp.float32, -b2, b2)  # fc2.weight.T
    return {"w1_oihw": w1_oihw, "w2_oihw": w2_oihw, "fc1_t": fc1_t, "fc2_t": fc2_t}


def reference_forward(x_nchw, params):
    """Pure-JAX f32 reference of the PyTorch module."""
    def conv(x, w):
        return lax.conv_general_dilated(
            x, w, (1, 1), ((PAD, PAD), (PAD, PAD)),
            dimension_numbers=("NCHW", "OIHW", "NCHW"))
    h = _leaky_relu(conv(x_nchw, params["w1_oihw"]))
    h = _leaky_relu(conv(h, params["w2_oihw"]))
    y = jnp.mean(h, axis=(2, 3))                               # (B, C)
    z = jnp.maximum(y @ params["fc1_t"], 0.0)
    s = jax.nn.sigmoid(z @ params["fc2_t"])                    # (B, C)
    h = h * s[:, :, None, None]
    return _leaky_relu(h + x_nchw)


if __name__ == "__main__":
    # channels must be >= REDUCTION (16) for the SE bottleneck and
    # in_channel == out_channel for the identity shortcut; B=8 so the
    # batch-stacked conv matmuls have M = 8*16 = 128 rows.
    B, C, H, W = 8, 16, 16, 16
    key = jax.random.PRNGKey(0)
    kx, kp = jax.random.split(key)
    x = jax.random.normal(kx, (B, C, H, W), jnp.float32)
    params = init_params(kp, C, C)
    packed = pack_params(params, H, W)

    out = jax.block_until_ready(residual_block_forward(x, packed))
    ref = reference_forward(x, params)
    assert out.shape == ref.shape and out.dtype == ref.dtype

    # conv matmuls use bf16 operands with f32 accumulation (per perf guidance),
    # so compare against the all-f32 reference at bf16-level tolerance.
    max_err = float(jnp.max(jnp.abs(out - ref)))
    if not bool(jnp.allclose(out, ref, atol=5e-2, rtol=5e-2)):
        raise AssertionError(f"mismatch, max abs err = {max_err}")
    print("KERNEL_OK")
</pallas_src>

<mosaic_0001>
module attributes {stable_mosaic.version = 11 : i64} {
  func.func @_residual_block_kernel(%arg0: i32, %arg1: memref<128x256xf32, #tpu.memory_space<vmem>>, %arg2: memref<5x256x256xbf16, #tpu.memory_space<vmem>>, %arg3: memref<5x256x256xbf16, #tpu.memory_space<vmem>>, %arg4: memref<1x256xf32, #tpu.memory_space<vmem>>, %arg5: memref<1x256xf32, #tpu.memory_space<vmem>>, %arg6: memref<128x256xf32, #tpu.memory_space<vmem>>, %arg7: memref<146x256xbf16, #tpu.memory_space<vmem>>) attributes {dimension_semantics = [#tpu.dimension_semantics<parallel>], iteration_bounds = array<i64: 1>, scalar_prefetch = 0 : i64, scratch_operands = 1 : i64, tpu.core_type = #tpu.core_type<tc>, window_params = [{transform_indices = @transform_0, window_bounds = array<i64: 128, 256>}, {pipeline_mode = #tpu.pipeline_mode<synchronous>, transform_indices = @transform_1, window_bounds = array<i64: 5, 256, 256>}, {pipeline_mode = #tpu.pipeline_mode<synchronous>, transform_indices = @transform_2, window_bounds = array<i64: 5, 256, 256>}, {pipeline_mode = #tpu.pipeline_mode<synchronous>, transform_indices = @transform_3, window_bounds = array<i64: 1, 256>}, {pipeline_mode = #tpu.pipeline_mode<synchronous>, transform_indices = @transform_4, window_bounds = array<i64: 1, 256>}, {transform_indices = @transform_5, window_bounds = array<i64: 128, 256>}]} {
    %0 = tpu.iota {dimensions = array<i32: 0>} : vector<128x1xi32>
    %c15_i32 = arith.constant 15 : i32
    %1 = vector.broadcast %c15_i32 : i32 to vector<128x1xi32>
    %2 = arith.andi %0, %1 : vector<128x1xi32>
    %c0 = arith.constant 0 : index
    %c0_0 = arith.constant 0 : index
    %3 = vector.load %arg1[%c0, %c0_0] : memref<128x256xf32, #tpu.memory_space<vmem>>, vector<128x256xf32>
    %4 = arith.truncf %3 : vector<128x256xf32> to vector<128x256xbf16>
    %c16 = arith.constant 16 : index
    %c0_1 = arith.constant 0 : index
    %5 = vector.load %arg7[%c16, %c0_1] : memref<146x256xbf16, #tpu.memory_space<vmem>>, vector<128x256xbf16>
    tpu.vector_store %arg7[%c16, %c0_1], %4 {strides = array<i32>} : memref<146x256xbf16, #tpu.memory_space<vmem>>, vector<128x256xbf16>,
    %cst = arith.constant 0.000000e+00 : f32
    %6 = vector.broadcast %cst : f32 to vector<128x256xf32>
    %c14 = arith.constant 14 : index
    %c0_2 = arith.constant 0 : index
    %7 = vector.load %arg7[%c14, %c0_2] : memref<146x256xbf16, #tpu.memory_space<vmem>>, vector<128x256xbf16>
    %c2_i32 = arith.constant 2 : i32
    %8 = vector.broadcast %c2_i32 : i32 to vector<128x1xi32>
    %9 = arith.cmpi sge, %2, %8 : vector<128x1xi32>
    %cst_3 = arith.constant 0.000000e+00 : bf16
    %10 = vector.broadcast %cst_3 : bf16 to vector<128x256xbf16>
    %11 = vector.shape_cast %9 : vector<128x1xi1> to vector<128x1xi1>
    %12 = vector.broadcast %11 : vector<128x1xi1> to vector<128x256xi1>
    %13 = arith.select %12, %7, %10 : vector<128x256xi1>, vector<128x256xbf16>
    %c0_4 = arith.constant 0 : index
    %c0_5 = arith.constant 0 : index
    %c0_6 = arith.constant 0 : index
    %14 = vector.load %arg2[%c0_4, %c0_5, %c0_6] : memref<5x256x256xbf16, #tpu.memory_space<vmem>>, vector<1x256x256xbf16>
    %15 = vector.shape_cast %14 : vector<1x256x256xbf16> to vector<256x256xbf16>
    %cst_7 = arith.constant dense<0.000000e+00> : vector<128x256xf32>
    %16 = tpu.matmul %13, %15, %cst_7 {dimension_numbers = #tpu.dot_dimension_numbers<[1], [0], [0], [1], [0, 0, 1, 1], [], []>} : vector<128x256xbf16>, vector<256x256xbf16>, vector<128x256xf32> -> vector<128x256xf32>
    %17 = arith.addf %6, %16 : vector<128x256xf32>
    %c15 = arith.constant 15 : index
    %c0_8 = arith.constant 0 : index
    %18 = vector.load %arg7[%c15, %c0_8] : memref<146x256xbf16, #tpu.memory_space<vmem>>, vector<128x256xbf16>
    %c1_i32 = arith.constant 1 : i32
    %19 = vector.broadcast %c1_i32 : i32 to vector<128x1xi32>
    %20 = arith.cmpi sge, %2, %19 : vector<128x1xi32>
    %cst_9 = arith.constant 0.000000e+00 : bf16
    %21 = vector.broadcast %cst_9 : bf16 to vector<128x256xbf16>
    %22 = vector.shape_cast %20 : vector<128x1xi1> to vector<128x1xi1>
    %23 = vector.broadcast %22 : vector<128x1xi1> to vector<128x256xi1>
    %24 = arith.select %23, %18, %21 : vector<128x256xi1>, vector<128x256xbf16>
    %c1 = arith.constant 1 : index
    %c0_10 = arith.constant 0 : index
    %c0_11 = arith.constant 0 : index
    %25 = vector.load %arg2[%c1, %c0_10, %c0_11] : memref<5x256x256xbf16, #tpu.memory_space<vmem>>, vector<1x256x256xbf16>
    %26 = vector.shape_cast %25 : vector<1x256x256xbf16> to vector<256x256xbf16>
    %cst_12 = arith.constant dense<0.000000e+00> : vector<128x256xf32>
    %27 = tpu.matmul %24, %26, %cst_12 {dimension_numbers = #tpu.dot_dimension_numbers<[1], [0], [0], [1], [0, 0, 1, 1], [], []>} : vector<128x256xbf16>, vector<256x256xbf16>, vector<128x256xf32> -> vector<128x256xf32>
    %28 = arith.addf %17, %27 : vector<128x256xf32>
    %c16_13 = arith.constant 16 : index
    %c0_14 = arith.constant 0 : index
    %29 = vector.load %arg7[%c16_13, %c0_14] : memref<146x256xbf16, #tpu.memory_space<vmem>>, vector<128x256xbf16>
    %c2 = arith.constant 2 : index
    %c0_15 = arith.constant 0 : index
    %c0_16 = arith.constant 0 : index
    %30 = vector.load %arg2[%c2, %c0_15, %c0_16] : memref<5x256x256xbf16, #tpu.memory_space<vmem>>, vector<1x256x256xbf16>
    %31 = vector.shape_cast %30 : vector<1x256x256xbf16> to vector<256x256xbf16>
    %cst_17 = arith.constant dense<0.000000e+00> : vector<128x256xf32>
    %32 = tpu.matmul %29, %31, %cst_17 {dimension_numbers = #tpu.dot_dimension_numbers<[1], [0], [0], [1], [0, 0, 1, 1], [], []>} : vector<128x256xbf16>, vector<256x256xbf16>, vector<128x256xf32> -> vector<128x256xf32>
    %33 = arith.addf %28, %32 : vector<128x256xf32>
    %c17 = arith.constant 17 : index
    %c0_18 = arith.constant 0 : index
    %34 = vector.load %arg7[%c17, %c0_18] : memref<146x256xbf16, #tpu.memory_space<vmem>>, vector<128x256xbf16>
    %c15_i32_19 = arith.constant 15 : i32
    %35 = vector.broadcast %c15_i32_19 : i32 to vector<128x1xi32>
    %36 = arith.cmpi slt, %2, %35 : vector<128x1xi32>
    %cst_20 = arith.constant 0.000000e+00 : bf16
    %37 = vector.broadcast %cst_20 : bf16 to vector<128x256xbf16>
    %38 = vector.shape_cast %36 : vector<128x1xi1> to vector<128x1xi1>
    %39 = vector.broadcast %38 : vector<128x1xi1> to vector<128x256xi1>
    %40 = arith.select %39, %34, %37 : vector<128x256xi1>, vector<128x256xbf16>
    %c3 = arith.constant 3 : index
    %c0_21 = arith.constant 0 : index
    %c0_22 = arith.constant 0 : index
    %41 = vector.load %arg2[%c3, %c0_21, %c0_22] : memref<5x256x256xbf16, #tpu.memory_space<vmem>>, vector<1x256x256xbf16>
    %42 = vector.shape_cast %41 : vector<1x256x256xbf16> to vector<256x256xbf16>
    %cst_23 = arith.constant dense<0.000000e+00> : vector<128x256xf32>
    %43 = tpu.matmul %40, %42, %cst_23 {dimension_numbers = #tpu.dot_dimension_numbers<[1], [0], [0], [1], [0, 0, 1, 1], [], []>} : vector<128x256xbf16>, vector<256x256xbf16>, vector<128x256xf32> -> vector<128x256xf32>
    %44 = arith.addf %33, %43 : vector<128x256xf32>
    %c18 = arith.constant 18 : index
    %c0_24 = arith.constant 0 : index
    %45 = vector.load %arg7[%c18, %c0_24] : memref<146x256xbf16, #tpu.memory_space<vmem>>, vector<128x256xbf16>
    %c14_i32 = arith.constant 14 : i32
    %46 = vector.broadcast %c14_i32 : i32 to vector<128x1xi32>
    %47 = arith.cmpi slt, %2, %46 : vector<128x1xi32>
    %cst_25 = arith.constant 0.000000e+00 : bf16
    %48 = vector.broadcast %cst_25 : bf16 to vector<128x256xbf16>
    %49 = vector.shape_cast %47 : vector<128x1xi1> to vector<128x1xi1>
    %50 = vector.broadcast %49 : vector<128x1xi1> to vector<128x256xi1>
    %51 = arith.select %50, %45, %48 : vector<128x256xi1>, vector<128x256xbf16>
    %c4 = arith.constant 4 : index
    %c0_26 = arith.constant 0 : index
    %c0_27 = arith.constant 0 : index
    %52 = vector.load %arg2[%c4, %c0_26, %c0_27] : memref<5x256x256xbf16, #tpu.memory_space<vmem>>, vector<1x256x256xbf16>
    %53 = vector.shape_cast %52 : vector<1x256x256xbf16> to vector<256x256xbf16>
    %cst_28 = arith.constant dense<0.000000e+00> : vector<128x256xf32>
    %54 = tpu.matmul %51, %53, %cst_28 {dimension_numbers = #tpu.dot_dimension_numbers<[1], [0], [0], [1], [0, 0, 1, 1], [], []>} : vector<128x256xbf16>, vector<256x256xbf16>, vector<128x256xf32> -> vector<128x256xf32>
    %55 = arith.addf %44, %54 : vector<128x256xf32>
    %cst_29 = arith.constant 0.000000e+00 : f32
    %56 = vector.broadcast %cst_29 : f32 to vector<128x256xf32>
    %57 = arith.cmpf ogt, %55, %56 : vector<128x256xf32>
    %cst_30 = arith.constant 0.00999999977 : f32
    %58 = vector.broadcast %cst_30 : f32 to vector<128x256xf32>
    %59 = arith.mulf %58, %55 : vector<128x256xf32>
    %60 = arith.select %57, %55, %59 : vector<128x256xi1>, vector<128x256xf32>
    %61 = arith.truncf %60 : vector<128x256xf32> to vector<128x256xbf16>
    %c16_31 = arith.constant 16 : index
    %c0_32 = arith.constant 0 : index
    %62 = vector.load %arg7[%c16_31, %c0_32] : memref<146x256xbf16, #tpu.memory_space<vmem>>, vector<128x256xbf16>
    tpu.vector_store %arg7[%c16_31, %c0_32], %61 {strides = array<i32>} : memref<146x256xbf16, #tpu.memory_space<vmem>>, vector<128x256xbf16>,
    %cst_33 = arith.constant 0.000000e+00 : f32
    %63 = vector.broadcast %cst_33 : f32 to vector<128x256xf32>
    %c14_34 = arith.constant 14 : index
    %c0_35 = arith.constant 0 : index
    %64 = vector.load %arg7[%c14_34, %c0_35] : memref<146x256xbf16, #tpu.memory_space<vmem>>, vector<128x256xbf16>
    %c2_i32_36 = arith.constant 2 : i32
    %65 = vector.broadcast %c2_i32_36 : i32 to vector<128x1xi32>
    %66 = arith.cmpi sge, %2, %65 : vector<128x1xi32>
    %cst_37 = arith.constant 0.000000e+00 : bf16
    %67 = vector.broadcast %cst_37 : bf16 to vector<128x256xbf16>
    %68 = vector.shape_cast %66 : vector<128x1xi1> to vector<128x1xi1>
    %69 = vector.broadcast %68 : vector<128x1xi1> to vector<128x256xi1>
    %70 = arith.select %69, %64, %67 : vector<128x256xi1>, vector<128x256xbf16>
    %c0_38 = arith.constant 0 : index
    %c0_39 = arith.constant 0 : index
    %c0_40 = arith.constant 0 : index
    %71 = vector.load %arg3[%c0_38, %c0_39, %c0_40] : memref<5x256x256xbf16, #tpu.memory_space<vmem>>, vector<1x256x256xbf16>
    %72 = vector.shape_cast %71 : vector<1x256x256xbf16> to vector<256x256xbf16>
    %cst_41 = arith.constant dense<0.000000e+00> : vector<128x256xf32>
    %73 = tpu.matmul %70, %72, %cst_41 {dimension_numbers = #tpu.dot_dimension_numbers<[1], [0], [0], [1], [0, 0, 1, 1], [], []>} : vector<128x256xbf16>, vector<256x256xbf16>, vector<128x256xf32> -> vector<128x256xf32>
    %74 = arith.addf %63, %73 : vector<128x256xf32>
    %c15_42 = arith.constant 15 : index
    %c0_43 = arith.constant 0 : index
    %75 = vector.load %arg7[%c15_42, %c0_43] : memref<146x256xbf16, #tpu.memory_space<vmem>>, vector<128x256xbf16>
    %c1_i32_44 = arith.constant 1 : i32
    %76 = vector.broadcast %c1_i32_44 : i32 to vector<128x1xi32>
    %77 = arith.cmpi sge, %2, %76 : vector<128x1xi32>
    %cst_45 = arith.constant 0.000000e+00 : bf16
    %78 = vector.broadcast %cst_45 : bf16 to vector<128x256xbf16>
    %79 = vector.shape_cast %77 : vector<128x1xi1> to vector<128x1xi1>
    %80 = vector.broadcast %79 : vector<128x1xi1> to vector<128x256xi1>
    %81 = arith.select %80, %75, %78 : vector<128x256xi1>, vector<128x256xbf16>
    %c1_46 = arith.constant 1 : index
    %c0_47 = arith.constant 0 : index
    %c0_48 = arith.constant 0 : index
    %82 = vector.load %arg3[%c1_46, %c0_47, %c0_48] : memref<5x256x256xbf16, #tpu.memory_space<vmem>>, vector<1x256x256xbf16>
    %83 = vector.shape_cast %82 : vector<1x256x256xbf16> to vector<256x256xbf16>
    %cst_49 = arith.constant dense<0.000000e+00> : vector<128x256xf32>
    %84 = tpu.matmul %81, %83, %cst_49 {dimension_numbers = #tpu.dot_dimension_numbers<[1], [0], [0], [1], [0, 0, 1, 1], [], []>} : vector<128x256xbf16>, vector<256x256xbf16>, vector<128x256xf32> -> vector<128x256xf32>
    %85 = arith.addf %74, %84 : vector<128x256xf32>
    %c16_50 = arith.constant 16 : index
    %c0_51 = arith.constant 0 : index
    %86 = vector.load %arg7[%c16_50, %c0_51] : memref<146x256xbf16, #tpu.memory_space<vmem>>, vector<128x256xbf16>
    %c2_52 = arith.constant 2 : index
    %c0_53 = arith.constant 0 : index
    %c0_54 = arith.constant 0 : index
    %87 = vector.load %arg3[%c2_52, %c0_53, %c0_54] : memref<5x256x256xbf16, #tpu.memory_space<vmem>>, vector<1x256x256xbf16>
    %88 = vector.shape_cast %87 : vector<1x256x256xbf16> to vector<256x256xbf16>
    %cst_55 = arith.constant dense<0.000000e+00> : vector<128x256xf32>
    %89 = tpu.matmul %86, %88, %cst_55 {dimension_numbers = #tpu.dot_dimension_numbers<[1], [0], [0], [1], [0, 0, 1, 1], [], []>} : vector<128x256xbf16>, vector<256x256xbf16>, vector<128x256xf32> -> vector<128x256xf32>
    %90 = arith.addf %85, %89 : vector<128x256xf32>
    %c17_56 = arith.constant 17 : index
    %c0_57 = arith.constant 0 : index
    %91 = vector.load %arg7[%c17_56, %c0_57] : memref<146x256xbf16, #tpu.memory_space<vmem>>, vector<128x256xbf16>
    %c15_i32_58 = arith.constant 15 : i32
    %92 = vector.broadcast %c15_i32_58 : i32 to vector<128x1xi32>
    %93 = arith.cmpi slt, %2, %92 : vector<128x1xi32>
    %cst_59 = arith.constant 0.000000e+00 : bf16
    %94 = vector.broadcast %cst_59 : bf16 to vector<128x256xbf16>
    %95 = vector.shape_cast %93 : vector<128x1xi1> to vector<128x1xi1>
    %96 = vector.broadcast %95 : vector<128x1xi1> to vector<128x256xi1>
    %97 = arith.select %96, %91, %94 : vector<128x256xi1>, vector<128x256xbf16>
    %c3_60 = arith.constant 3 : index
    %c0_61 = arith.constant 0 : index
    %c0_62 = arith.constant 0 : index
    %98 = vector.load %arg3[%c3_60, %c0_61, %c0_62] : memref<5x256x256xbf16, #tpu.memory_space<vmem>>, vector<1x256x256xbf16>
    %99 = vector.shape_cast %98 : vector<1x256x256xbf16> to vector<256x256xbf16>
    %cst_63 = arith.constant dense<0.000000e+00> : vector<128x256xf32>
    %100 = tpu.matmul %97, %99, %cst_63 {dimension_numbers = #tpu.dot_dimension_numbers<[1], [0], [0], [1], [0, 0, 1, 1], [], []>} : vector<128x256xbf16>, vector<256x256xbf16>, vector<128x256xf32> -> vector<128x256xf32>
    %101 = arith.addf %90, %100 : vector<128x256xf32>
    %c18_64 = arith.constant 18 : index
    %c0_65 = arith.constant 0 : index
    %102 = vector.load %arg7[%c18_64, %c0_65] : memref<146x256xbf16, #tpu.memory_space<vmem>>, vector<128x256xbf16>
    %c14_i32_66 = arith.constant 14 : i32
    %103 = vector.broadcast %c14_i32_66 : i32 to vector<128x1xi32>
    %104 = arith.cmpi slt, %2, %103 : vector<128x1xi32>
    %cst_67 = arith.constant 0.000000e+00 : bf16
    %105 = vector.broadcast %cst_67 : bf16 to vector<128x256xbf16>
    %106 = vector.shape_cast %104 : vector<128x1xi1> to vector<128x1xi1>
    %107 = vector.broadcast %106 : vector<128x1xi1> to vector<128x256xi1>
    %108 = arith.select %107, %102, %105 : vector<128x256xi1>, vector<128x256xbf16>
    %c4_68 = arith.constant 4 : index
    %c0_69 = arith.constant 0 : index
    %c0_70 = arith.constant 0 : index
    %109 = vector.load %arg3[%c4_68, %c0_69, %c0_70] : memref<5x256x256xbf16, #tpu.memory_space<vmem>>, vector<1x256x256xbf16>
    %110 = vector.shape_cast %109 : vector<1x256x256xbf16> to vector<256x256xbf16>
    %cst_71 = arith.constant dense<0.000000e+00> : vector<128x256xf32>
    %111 = tpu.matmul %108, %110, %cst_71 {dimension_numbers = #tpu.dot_dimension_numbers<[1], [0], [0], [1], [0, 0, 1, 1], [], []>} : vector<128x256xbf16>, vector<256x256xbf16>, vector<128x256xf32> -> vector<128x256xf32>
    %112 = arith.addf %101, %111 : vector<128x256xf32>
    %cst_72 = arith.constant 0.000000e+00 : f32
    %113 = vector.broadcast %cst_72 : f32 to vector<128x256xf32>
    %114 = arith.cmpf ogt, %112, %113 : vector<128x256xf32>
    %cst_73 = arith.constant 0.00999999977 : f32
    %115 = vector.broadcast %cst_73 : f32 to vector<128x256xf32>
    %116 = arith.mulf %115, %112 : vector<128x256xf32>
    %117 = arith.select %114, %112, %116 : vector<128x256xi1>, vector<128x256xf32>
    %118 = tpu.iota {dimensions = array<i32: 0>} : vector<8x128xi32>
    %119 = tpu.iota {dimensions = array<i32: 1>} : vector<8x128xi32>
    %c16_i32 = arith.constant 16 : i32
    %120 = vector.broadcast %c16_i32 : i32 to vector<8x128xi32>
    %121 = arith.muli %118, %120 : vector<8x128xi32>
    %122 = arith.cmpi sge, %119, %121 : vector<8x128xi32>
    %c16_i32_74 = arith.constant 16 : i32
    %123 = vector.broadcast %c16_i32_74 : i32 to vector<8x128xi32>
    %124 = arith.muli %118, %123 : vector<8x128xi32>
    %c16_i32_75 = arith.constant 16 : i32
    %125 = vector.broadcast %c16_i32_75 : i32 to vector<8x128xi32>
    %126 = arith.addi %124, %125 : vector<8x128xi32>
    %127 = arith.cmpi slt, %119, %126 : vector<8x128xi32>
    %128 = arith.andi %122, %127 : vector<8x128xi1>
    %cst_76 = arith.constant 1.000000e+00 : f32
    %cst_77 = arith.constant 0.000000e+00 : f32
    %129 = vector.broadcast %cst_76 : f32 to vector<8x128xf32>
    %130 = vector.broadcast %cst_77 : f32 to vector<8x128xf32>
    %131 = arith.select %128, %129, %130 : vector<8x128xi1>, vector<8x128xf32>
    %132 = tpu.iota {dimensions = array<i32: 0>} : vector<128x8xi32>
    %133 = tpu.iota {dimensions = array<i32: 1>} : vector<128x8xi32>
    %c16_i32_78 = arith.constant 16 : i32
    %134 = vector.broadcast %c16_i32_78 : i32 to vector<128x8xi32>
    %135 = arith.muli %133, %134 : vector<128x8xi32>
    %136 = arith.cmpi sge, %132, %135 : vector<128x8xi32>
    %c16_i32_79 = arith.constant 16 : i32
    %137 = vector.broadcast %c16_i32_79 : i32 to vector<128x8xi32>
    %138 = arith.muli %133, %137 : vector<128x8xi32>
    %c16_i32_80 = arith.constant 16 : i32
    %139 = vector.broadcast %c16_i32_80 : i32 to vector<128x8xi32>
    %140 = arith.addi %138, %139 : vector<128x8xi32>
    %141 = arith.cmpi slt, %132, %140 : vector<128x8xi32>
    %142 = arith.andi %136, %141 : vector<128x8xi1>
    %cst_81 = arith.constant 1.000000e+00 : f32
    %cst_82 = arith.constant 0.000000e+00 : f32
    %143 = vector.broadcast %cst_81 : f32 to vector<128x8xf32>
    %144 = vector.broadcast %cst_82 : f32 to vector<128x8xf32>
    %145 = arith.select %142, %143, %144 : vector<128x8xi1>, vector<128x8xf32>
    %cst_83 = arith.constant dense<0.000000e+00> : vector<8x256xf32>
    %146 = tpu.matmul %131, %117, %cst_83 {dimension_numbers = #tpu.dot_dimension_numbers<[1], [0], [0], [1], [0, 0, 1, 1], [], []>} : vector<8x128xf32>, vector<128x256xf32>, vector<8x256xf32> -> vector<8x256xf32>
    %cst_84 = arith.constant 0.000000e+00 : f32
    %147 = vector.broadcast %cst_84 : f32 to vector<8x256xf32>
    %c0_85 = arith.constant 0 : index
    %c0_86 = arith.constant 0 : index
    %148 = vector.load %arg4[%c0_85, %c0_86] : memref<1x256xf32, #tpu.memory_space<vmem>>, vector<1x256xf32>
    %149 = vector.broadcast %148 : vector<1x256xf32> to vector<8x256xf32>
    %150 = arith.mulf %146, %149 : vector<8x256xf32>
    %cst_87 = arith.constant dense<0.000000e+00> : vector<8xf32>
    %151 = vector.multi_reduction <add>, %150, %cst_87 [1] : vector<8x256xf32> to vector<8xf32>
    %152 = vector.shape_cast %151 : vector<8xf32> to vector<8x1xf32>
    %cst_88 = arith.constant 0.000000e+00 : f32
    %153 = vector.broadcast %cst_88 : f32 to vector<8x1xf32>
    %154 = arith.maximumf %152, %153 : vector<8x1xf32>
    %c0_89 = arith.constant 0 : index
    %c0_90 = arith.constant 0 : index
    %155 = vector.load %arg5[%c0_89, %c0_90] : memref<1x256xf32, #tpu.memory_space<vmem>>, vector<1x256xf32>
    %156 = vector.broadcast %154 : vector<8x1xf32> to vector<8x256xf32>
    %157 = vector.broadcast %155 : vector<1x256xf32> to vector<8x256xf32>
    %158 = arith.mulf %156, %157 : vector<8x256xf32>
    %159 = arith.addf %147, %158 : vector<8x256xf32>
    %160 = arith.negf %159 : vector<8x256xf32>
    %161 = math.exp %160 : vector<8x256xf32>
    %cst_91 = arith.constant 1.000000e+00 : f32
    %162 = vector.broadcast %cst_91 : f32 to vector<8x256xf32>
    %163 = arith.addf %162, %161 : vector<8x256xf32>
    %164 = arith.divf %162, %163 : vector<8x256xf32>
    %cst_92 = arith.constant dense<0.000000e+00> : vector<128x256xf32>
    %165 = tpu.matmul %145, %164, %cst_92 {dimension_numbers = #tpu.dot_dimension_numbers<[1], [0], [0], [1], [0, 0, 1, 1], [], []>} : vector<128x8xf32>, vector<8x256xf32>, vector<128x256xf32> -> vector<128x256xf32>
    %166 = arith.mulf %117, %165 : vector<128x256xf32>
    %167 = arith.addf %166, %3 : vector<128x256xf32>
    %cst_93 = arith.constant 0.000000e+00 : f32
    %168 = vector.broadcast %cst_93 : f32 to vector<128x256xf32>
    %169 = arith.cmpf ogt, %167, %168 : vector<128x256xf32>
    %cst_94 = arith.constant 0.00999999977 : f32
    %170 = vector.broadcast %cst_94 : f32 to vector<128x256xf32>
    %171 = arith.mulf %170, %167 : vector<128x256xf32>
    %172 = arith.select %169, %167, %171 : vector<128x256xi1>, vector<128x256xf32>
    %c0_95 = arith.constant 0 : index
    %c0_96 = arith.constant 0 : index
    %173 = vector.load %arg6[%c0_95, %c0_96] : memref<128x256xf32, #tpu.memory_space<vmem>>, vector<128x256xf32>
    tpu.vector_store %arg6[%c0_95, %c0_96], %172 {strides = array<i32>} : memref<128x256xf32, #tpu.memory_space<vmem>>, vector<128x256xf32>,
    return
  }
  func.func @transform_0(%arg0: i32) -> (i32, i32) {
    %c0_i32 = arith.constant 0 : i32
    %c0_i32_0 = arith.constant 0 : i32
    return %arg0, %c0_i32 : i32, i32
  }
  func.func @transform_1(%arg0: i32) -> (i32, i32, i32) {
    %c0_i32 = arith.constant 0 : i32
    %c0_i32_0 = arith.constant 0 : i32
    %c0_i32_1 = arith.constant 0 : i32
    %c0_i32_2 = arith.constant 0 : i32
    return %c0_i32, %c0_i32_0, %c0_i32_1 : i32, i32, i32
  }
  func.func @transform_2(%arg0: i32) -> (i32, i32, i32) {
    %c0_i32 = arith.constant 0 : i32
    %c0_i32_0 = arith.constant 0 : i32
    %c0_i32_1 = arith.constant 0 : i32
    %c0_i32_2 = arith.constant 0 : i32
    return %c0_i32, %c0_i32_0, %c0_i32_1 : i32, i32, i32
  }
  func.func @transform_3(%arg0: i32) -> (i32, i32) {
    %c0_i32 = arith.constant 0 : i32
    %c0_i32_0 = arith.constant 0 : i32
    %c0_i32_1 = arith.constant 0 : i32
    return %c0_i32, %c0_i32_0 : i32, i32
  }
  func.func @transform_4(%arg0: i32) -> (i32, i32) {
    %c0_i32 = arith.constant 0 : i32
    %c0_i32_0 = arith.constant 0 : i32
    %c0_i32_1 = arith.constant 0 : i32
    return %c0_i32, %c0_i32_0 : i32, i32
  }
  func.func @transform_5(%arg0: i32) -> (i32, i32) {
    %c0_i32 = arith.constant 0 : i32
    %c0_i32_0 = arith.constant 0 : i32
    return %arg0, %c0_i32 : i32, i32
  }
}

</mosaic_0001>

<llo_original>
// kernel: tpu_custom_call.1
$region0: #{tpu_custom_call.1}
  #allocation0 [shape = 'u32[]', space=smem, size = 0x4, offset = 0x4, fixed_abs, tag = 'smem constant byte address 0x4 - core index']
  #allocation1 [shape = 'u32[144,128]{1,0:T(1,128)}', space=vmem, size = 0x12000, scoped, tag = 'internal scratch']
  #allocation2 [shape = 'bf16[146,256]{1,0:T(8,128)(2,1)}', space=vmem, size = 0x13000, scoped, tag = 'scratch operand']
  %s0 = inlined_call_operand.hbm [shape: f32[128,256], index: 0, kind: input, shape index: {}]
  %s1 = inlined_call_operand.hbm [shape: bf16[5,256,256], index: 1, kind: input, shape index: {}]
  %s2 = inlined_call_operand.hbm [shape: bf16[5,256,256], index: 2, kind: input, shape index: {}]
  %s3 = inlined_call_operand.vmem [shape: f32[1,256], index: 3, kind: input, shape index: {}]
  %s4 = inlined_call_operand.vmem [shape: f32[1,256], index: 4, kind: input, shape index: {}]
  %s5 = inlined_call_operand.hbm [shape: f32[128,256], index: 5, kind: output, shape index: {}]
  %s6 = sld [smem:[#allocation0]]
  $region42: #{tpu_custom_call.1} parent=0
    _
  %s8 = ssub.s32 1, %s6
  %s9 = scalar_select 0, %s8, %s6
  $region1: #{tpu_custom_call.1} parent=0
    #allocation3 [shape = 'u8[131072]{0}', space=vmem, size = 0x20000, scoped, tag = 'input window, operand 0, single buffered']
    #allocation4 [shape = 's32[1]{0}', space=sflag, size = 0x4, scoped, tag = 'scoped memory for tpu_custom_call.1']
    #allocation5 [shape = 's32[1]{0}', space=sflag, size = 0x4, scoped, tag = 'scoped memory for tpu_custom_call.1']
    #allocation6 [shape = 'u8[655360]{0}', space=vmem, size = 0xa0000, scoped, tag = 'input window, operand 1, single buffered']
    #allocation7 [shape = 's32[1]{0}', space=sflag, size = 0x4, scoped, tag = 'scoped memory for tpu_custom_call.1']
    #allocation8 [shape = 'u8[655360]{0}', space=vmem, size = 0xa0000, scoped, tag = 'input window, operand 2, single buffered']
    #allocation9 [shape = 'u8[131072]{0}', space=vmem, size = 0x20000, scoped, tag = 'output window, operand 0, single buffered']
    %10 = vsyncpa [#allocation4], 0
    %11 = vsyncpa [#allocation7], 0
    %12 = vsyncpa [#allocation5], 0
    // Predicated region
    $region2: #{tpu_custom_call.1} parent=1 // pred_check
      _
    $region3: #{tpu_custom_call.1} parent=1 // pred_check_branch
      %14 = sbr.rel (0) target = $region5
    $region4: #{tpu_custom_call.1} parent=1 // pred_region
      %s16 = ssub.s32 4096, 4096
      %17 = vsyncadd [#allocation4], %s16
      %s18 = sshll.u32 [#allocation3], 4
      %s19 = int_to_ptr.vmem [resolvable:$true] %s18
      %24 = dma.hbm_to_vmem [thread:$0]  %s0, 4096, %s19, [#allocation4], 256, 256, 16
    $region5: #{tpu_custom_call.1} parent=1 // pred_fallthru
      _
    // Predicated region
    $region6: #{tpu_custom_call.1} parent=1 // pred_check
      _
    $region7: #{tpu_custom_call.1} parent=1 // pred_check_branch
      %26 = sbr.rel (0) target = $region9
    $region8: #{tpu_custom_call.1} parent=1 // pred_region
      %s28 = ssub.s32 20480, 20480
      %29 = vsyncadd [#allocation7], %s28
      %s30 = sshll.u32 [#allocation6], 4
      %s31 = int_to_ptr.vmem [resolvable:$true] %s30
      %36 = dma.hbm_to_vmem [thread:$0]  %s1, 20480, %s31, [#allocation7], 128, 128, 8
    $region9: #{tpu_custom_call.1} parent=1 // pred_fallthru
      _
    // Predicated region
    $region10: #{tpu_custom_call.1} parent=1 // pred_check
      _
    $region11: #{tpu_custom_call.1} parent=1 // pred_check_branch
      %38 = sbr.rel (0) target = $region13
    $region12: #{tpu_custom_call.1} parent=1 // pred_region
      %s40 = ssub.s32 20480, 20480
      %41 = vsyncadd [#allocation7], %s40
      %s42 = sshll.u32 [#allocation8], 4
      %s43 = int_to_ptr.vmem [resolvable:$true] %s42
      %48 = dma.hbm_to_vmem [thread:$0]  %s2, 20480, %s43, [#allocation7], 128, 128, 8
    $region13: #{tpu_custom_call.1} parent=1 // pred_fallthru
      _
    // Predicated region
    $region14: #{tpu_custom_call.1} parent=1 // pred_check
      _
    $region15: #{tpu_custom_call.1} parent=1 // pred_check_branch
      %50 = sbr.rel (0) target = $region17
    $region16: #{tpu_custom_call.1} parent=1 // pred_region
      _
    $region17: #{tpu_custom_call.1} parent=1 // pred_fallthru
      _
    // Predicated region
    $region18: #{tpu_custom_call.1} parent=1 // pred_check
      _
    $region19: #{tpu_custom_call.1} parent=1 // pred_check_branch
      %52 = sbr.rel (0) target = $region21
    $region20: #{tpu_custom_call.1} parent=1 // pred_region
      _
    $region21: #{tpu_custom_call.1} parent=1 // pred_fallthru
      _
    // Predicated region
    $region22: #{tpu_custom_call.1} parent=1 // pred_check
      _
    $region23: #{tpu_custom_call.1} parent=1 // pred_check_branch
      %54 = sbr.rel (0) target = $region25
    $region24: #{tpu_custom_call.1} parent=1 // pred_region
      %55 = dma.done [#allocation4], 4096
    $region25: #{tpu_custom_call.1} parent=1 // pred_fallthru
      _
    // Predicated region
    $region26: #{tpu_custom_call.1} parent=1 // pred_check
      _
    $region27: #{tpu_custom_call.1} parent=1 // pred_check_branch
      %57 = sbr.rel (0) target = $region29
    $region28: #{tpu_custom_call.1} parent=1 // pred_region
      %58 = dma.done [#allocation7], 20480
    $region29: #{tpu_custom_call.1} parent=1 // pred_fallthru
      _
    // Predicated region
    $region30: #{tpu_custom_call.1} parent=1 // pred_check
      _
    $region31: #{tpu_custom_call.1} parent=1 // pred_check_branch
      %60 = sbr.rel (0) target = $region33
    $region32: #{tpu_custom_call.1} parent=1 // pred_region
      %61 = dma.done [#allocation7], 20480
    $region33: #{tpu_custom_call.1} parent=1 // pred_fallthru
      _
    %v65 = vlaneseq
    %v66 = vshrl.u32 %v65, 7
    %v67 = vadd.s32 %v66, 8
    %v68 = vadd.s32 %v66, 16
    %v69 = vadd.s32 %v66, 24
    %v70 = vadd.s32 %v66, 32
    %v71 = vadd.s32 %v66, 40
    %v72 = vadd.s32 %v66, 48
    %v73 = vadd.s32 %v66, 56
    %v74 = vadd.s32 %v66, 64
    %v75 = vadd.s32 %v66, 72
    %v76 = vadd.s32 %v66, 80
    %v77 = vadd.s32 %v66, 88
    %v78 = vadd.s32 %v66, 96
    %v79 = vadd.s32 %v66, 104
    %v80 = vadd.s32 %v66, 112
    %v81 = vadd.s32 %v66, 120
    %v82 = vand.u32 %v66, 15
    %v83 = vand.u32 %v67, 15
    %v84 = vand.u32 %v68, 15
    %v85 = vand.u32 %v69, 15
    %v86 = vand.u32 %v70, 15
    %v87 = vand.u32 %v71, 15
    %v88 = vand.u32 %v72, 15
    %v89 = vand.u32 %v73, 15
    %v90 = vand.u32 %v74, 15
    %v91 = vand.u32 %v75, 15
    %v92 = vand.u32 %v76, 15
    %v93 = vand.u32 %v77, 15
    %v94 = vand.u32 %v78, 15
    %v95 = vand.u32 %v79, 15
    %v96 = vand.u32 %v80, 15
    %v97 = vand.u32 %v81, 15
    %v98 = vld [vmem:[#allocation3] sm:$0xff]
    %v99 = vld [vmem:[#allocation3 + $0x8] sm:$0xff]
    %v100 = vld [vmem:[#allocation3 + $0x10] sm:$0xff]
    %v101 = vld [vmem:[#allocation3 + $0x18] sm:$0xff]
    %v102 = vld [vmem:[#allocation3 + $0x20] sm:$0xff]
    %v103 = vld [vmem:[#allocation3 + $0x28] sm:$0xff]
    %v104 = vld [vmem:[#allocation3 + $0x30] sm:$0xff]
    %v105 = vld [vmem:[#allocation3 + $0x38] sm:$0xff]
    %v106 = vld [vmem:[#allocation3 + $0x40] sm:$0xff]
    %v107 = vld [vmem:[#allocation3 + $0x48] sm:$0xff]
    %v108 = vld [vmem:[#allocation3 + $0x50] sm:$0xff]
    %v109 = vld [vmem:[#allocation3 + $0x58] sm:$0xff]
    %v110 = vld [vmem:[#allocation3 + $0x60] sm:$0xff]
    %v111 = vld [vmem:[#allocation3 + $0x68] sm:$0xff]
    %v112 = vld [vmem:[#allocation3 + $0x70] sm:$0xff]
    %v113 = vld [vmem:[#allocation3 + $0x78] sm:$0xff]
    %v114 = vld [vmem:[#allocation3 + $0x80] sm:$0xff]
    %v115 = vld [vmem:[#allocation3 + $0x88] sm:$0xff]
    %v116 = vld [vmem:[#allocation3 + $0x90] sm:$0xff]
    %v117 = vld [vmem:[#allocation3 + $0x98] sm:$0xff]
    %v118 = vld [vmem:[#allocation3 + $0xa0] sm:$0xff]
    %v119 = vld [vmem:[#allocation3 + $0xa8] sm:$0xff]
    %v120 = vld [vmem:[#allocation3 + $0xb0] sm:$0xff]
    %v121 = vld [vmem:[#allocation3 + $0xb8] sm:$0xff]
    %v122 = vld [vmem:[#allocation3 + $0xc0] sm:$0xff]
    %v123 = vld [vmem:[#allocation3 + $0xc8] sm:$0xff]
    %v124 = vld [vmem:[#allocation3 + $0xd0] sm:$0xff]
    %v125 = vld [vmem:[#allocation3 + $0xd8] sm:$0xff]
    %v126 = vld [vmem:[#allocation3 + $0xe0] sm:$0xff]
    %v127 = vld [vmem:[#allocation3 + $0xe8] sm:$0xff]
    %v128 = vld [vmem:[#allocation3 + $0xf0] sm:$0xff]
    %v129 = vld [vmem:[#allocation3 + $0xf8] sm:$0xff]
    %v130 = vpack.c.bf16 %v100, %v98
    %v131 = vpack.c.bf16 %v101, %v99
    %v132 = vpack.c.bf16 %v104, %v102
    %v133 = vpack.c.bf16 %v105, %v103
    %v134 = vpack.c.bf16 %v108, %v106
    %v135 = vpack.c.bf16 %v109, %v107
    %v136 = vpack.c.bf16 %v112, %v110
    %v137 = vpack.c.bf16 %v113, %v111
    %v138 = vpack.c.bf16 %v116, %v114
    %v139 = vpack.c.bf16 %v117, %v115
    %v140 = vpack.c.bf16 %v120, %v118
    %v141 = vpack.c.bf16 %v121, %v119
    %v142 = vpack.c.bf16 %v124, %v122
    %v143 = vpack.c.bf16 %v125, %v123
    %v144 = vpack.c.bf16 %v128, %v126
    %v145 = vpack.c.bf16 %v129, %v127
    %v162 = vunpack.c.l.b16 %v130
    %v163 = vunpack.c.l.b16 %v131
    %v164 = vunpack.c.h.b16 %v130
    %v165 = vunpack.c.h.b16 %v131
    %v166 = vunpack.c.l.b16 %v132
    %v167 = vunpack.c.l.b16 %v133
    %v168 = vunpack.c.h.b16 %v132
    %v169 = vunpack.c.h.b16 %v133
    %v170 = vunpack.c.l.b16 %v134
    %v171 = vunpack.c.l.b16 %v135
    %v172 = vunpack.c.h.b16 %v134
    %v173 = vunpack.c.h.b16 %v135
    %v174 = vunpack.c.l.b16 %v136
    %v175 = vunpack.c.l.b16 %v137
    %v176 = vunpack.c.h.b16 %v136
    %v177 = vunpack.c.h.b16 %v137
    %v178 = vunpack.c.l.b16 %v138
    %v179 = vunpack.c.l.b16 %v139
    %v180 = vunpack.c.h.b16 %v138
    %v181 = vunpack.c.h.b16 %v139
    %v182 = vunpack.c.l.b16 %v140
    %v183 = vunpack.c.l.b16 %v141
    %v184 = vunpack.c.h.b16 %v140
    %v185 = vunpack.c.h.b16 %v141
    %v186 = vunpack.c.l.b16 %v142
    %v187 = vunpack.c.l.b16 %v143
    %v188 = vunpack.c.h.b16 %v142
    %v189 = vunpack.c.h.b16 %v143
    %v190 = vunpack.c.l.b16 %v144
    %v191 = vunpack.c.l.b16 %v145
    %v192 = vunpack.c.h.b16 %v144
    %v193 = vunpack.c.h.b16 %v145
    %v194 = vpack.c.b16 %v163, %v162
    %v195 = vpack.c.b16 %v165, %v164
    %v196 = vpack.c.b16 %v167, %v166
    %v197 = vpack.c.b16 %v169, %v168
    %v198 = vpack.c.b16 %v171, %v170
    %v199 = vpack.c.b16 %v173, %v172
    %v200 = vpack.c.b16 %v175, %v174
    %v201 = vpack.c.b16 %v177, %v176
    %v202 = vpack.c.b16 %v179, %v178
    %v203 = vpack.c.b16 %v181, %v180
    %v204 = vpack.c.b16 %v183, %v182
    %v205 = vpack.c.b16 %v185, %v184
    %v206 = vpack.c.b16 %v187, %v186
    %v207 = vpack.c.b16 %v189, %v188
    %v208 = vpack.c.b16 %v191, %v190
    %v209 = vpack.c.b16 %v193, %v192
    %226 = vst [vmem:[#allocation2 + $0x10] sm:$0xff] %v194
    %227 = vst [vmem:[#allocation2 + $0x18] sm:$0xff] %v195
    %228 = vst [vmem:[#allocation2 + $0x20] sm:$0xff] %v196
    %229 = vst [vmem:[#allocation2 + $0x28] sm:$0xff] %v197
    %230 = vst [vmem:[#allocation2 + $0x30] sm:$0xff] %v198
    %231 = vst [vmem:[#allocation2 + $0x38] sm:$0xff] %v199
    %232 = vst [vmem:[#allocation2 + $0x40] sm:$0xff] %v200
    %233 = vst [vmem:[#allocation2 + $0x48] sm:$0xff] %v201
    %234 = vst [vmem:[#allocation2 + $0x50] sm:$0xff] %v202
    %235 = vst [vmem:[#allocation2 + $0x58] sm:$0xff] %v203
    %236 = vst [vmem:[#allocation2 + $0x60] sm:$0xff] %v204
    %237 = vst [vmem:[#allocation2 + $0x68] sm:$0xff] %v205
    %238 = vst [vmem:[#allocation2 + $0x70] sm:$0xff] %v206
    %239 = vst [vmem:[#allocation2 + $0x78] sm:$0xff] %v207
    %240 = vst [vmem:[#allocation2 + $0x80] sm:$0xff] %v208
    %241 = vst [vmem:[#allocation2 + $0x88] sm:$0xff] %v209
    %v242 = vld [vmem:[#allocation2 + $0x8] sm:$0x88]
    %v243 = vld [vmem:[#allocation2 + $0x10] sm:$0xff]
    %v244 = vld [vmem:[#allocation2 + $0x18] sm:$0xff]
    %v245 = vld [vmem:[#allocation2 + $0x20] sm:$0xff]
    %v246 = vld [vmem:[#allocation2 + $0x28] sm:$0xff]
    %v247 = vld [vmem:[#allocation2 + $0x30] sm:$0xff]
    %v248 = vld [vmem:[#allocation2 + $0x38] sm:$0xff]
    %v249 = vld [vmem:[#allocation2 + $0x40] sm:$0xff]
    %v250 = vld [vmem:[#allocation2 + $0x48] sm:$0xff]
    %v251 = vld [vmem:[#allocation2 + $0x50] sm:$0xff]
    %v252 = vld [vmem:[#allocation2 + $0x58] sm:$0xff]
    %v253 = vld [vmem:[#allocation2 + $0x60] sm:$0xff]
    %v254 = vld [vmem:[#allocation2 + $0x68] sm:$0xff]
    %v255 = vld [vmem:[#allocation2 + $0x70] sm:$0xff]
    %v256 = vld [vmem:[#allocation2 + $0x78] sm:$0xff]
    %v257 = vld [vmem:[#allocation2 + $0x80] sm:$0xff]
    %v258 = vld [vmem:[#allocation2 + $0x88] sm:$0x77]
    %vm259 = vcmp.ge.s32.totalorder %v82, 2
    %vm260 = vcmp.ge.s32.totalorder %v83, 2
    %vm261 = vcmp.ge.s32.totalorder %v84, 2
    %vm262 = vcmp.ge.s32.totalorder %v85, 2
    %vm263 = vcmp.ge.s32.totalorder %v86, 2
    %vm264 = vcmp.ge.s32.totalorder %v87, 2
    %vm265 = vcmp.ge.s32.totalorder %v88, 2
    %vm266 = vcmp.ge.s32.totalorder %v89, 2
    %vm267 = vcmp.ge.s32.totalorder %v90, 2
    %vm268 = vcmp.ge.s32.totalorder %v91, 2
    %vm269 = vcmp.ge.s32.totalorder %v92, 2
    %vm270 = vcmp.ge.s32.totalorder %v93, 2
    %vm271 = vcmp.ge.s32.totalorder %v94, 2
    %vm272 = vcmp.ge.s32.totalorder %v95, 2
    %vm273 = vcmp.ge.s32.totalorder %v96, 2
    %vm274 = vcmp.ge.s32.totalorder %v97, 2
    %v275 = vsel %vm259, 1, 0
    %v276 = vsel %vm260, 1, 0
    %v277 = vsel %vm261, 1, 0
    %v278 = vsel %vm262, 1, 0
    %v279 = vsel %vm263, 1, 0
    %v280 = vsel %vm264, 1, 0
    %v281 = vsel %vm265, 1, 0
    %v282 = vsel %vm266, 1, 0
    %v283 = vsel %vm267, 1, 0
    %v284 = vsel %vm268, 1, 0
    %v285 = vsel %vm269, 1, 0
    %v286 = vsel %vm270, 1, 0
    %v287 = vsel %vm271, 1, 0
    %v288 = vsel %vm272, 1, 0
    %v289 = vsel %vm273, 1, 0
    %v290 = vsel %vm274, 1, 0
    %vm291 = vcmp.eq.s32.totalorder %v275, 1
    %vm292 = vcmp.eq.s32.totalorder %v276, 1
    %vm293 = vcmp.eq.s32.totalorder %v277, 1
    %vm294 = vcmp.eq.s32.totalorder %v278, 1
    %vm295 = vcmp.eq.s32.totalorder %v279, 1
    %vm296 = vcmp.eq.s32.totalorder %v280, 1
    %vm297 = vcmp.eq.s32.totalorder %v281, 1
    %vm298 = vcmp.eq.s32.totalorder %v282, 1
    %vm299 = vcmp.eq.s32.totalorder %v283, 1
    %vm300 = vcmp.eq.s32.totalorder %v284, 1
    %vm301 = vcmp.eq.s32.totalorder %v285, 1
    %vm302 = vcmp.eq.s32.totalorder %v286, 1
    %vm303 = vcmp.eq.s32.totalorder %v287, 1
    %vm304 = vcmp.eq.s32.totalorder %v288, 1
    %vm305 = vcmp.eq.s32.totalorder %v289, 1
    %vm306 = vcmp.eq.s32.totalorder %v290, 1
    %vm307 = vmpackc.low %vm291, %vm291
    %vm308 = vmpackc.low %vm292, %vm292
    %vm309 = vmpackc.low %vm293, %vm293
    %vm310 = vmpackc.low %vm294, %vm294
    %vm311 = vmpackc.low %vm295, %vm295
    %vm312 = vmpackc.low %vm296, %vm296
    %vm313 = vmpackc.low %vm297, %vm297
    %vm314 = vmpackc.low %vm298, %vm298
    %vm315 = vmpackc.low %vm299, %vm299
    %vm316 = vmpackc.low %vm300, %vm300
    %vm317 = vmpackc.low %vm301, %vm301
    %vm318 = vmpackc.low %vm302, %vm302
    %vm319 = vmpackc.low %vm303, %vm303
    %vm320 = vmpackc.low %vm304, %vm304
    %vm321 = vmpackc.low %vm305, %vm305
    %vm322 = vmpackc.low %vm306, %vm306
    %v323 = vsel %vm307, 65537, 0
    %v324 = vsel %vm308, 65537, 0
    %v325 = vsel %vm309, 65537, 0
    %v326 = vsel %vm310, 65537, 0
    %v327 = vsel %vm311, 65537, 0
    %v328 = vsel %vm312, 65537, 0
    %v329 = vsel %vm313, 65537, 0
    %v330 = vsel %vm314, 65537, 0
    %v331 = vsel %vm315, 65537, 0
    %v332 = vsel %vm316, 65537, 0
    %v333 = vsel %vm317, 65537, 0
    %v334 = vsel %vm318, 65537, 0
    %v335 = vsel %vm319, 65537, 0
    %v336 = vsel %vm320, 65537, 0
    %v337 = vsel %vm321, 65537, 0
    %v338 = vsel %vm322, 65537, 0
    %vm339 = vcmask 1042432
    %vm340 = vcmask 1046532
    %vm341 = vmor %vm339, %vm340
    %v342 = vrot.slane %v323, 5
    %v343 = vrot.slane %v342, 4
    %v344 = vrot.slane %v324, 5
    %v345 = vsel %vm341, %v343, %v344
    %v346 = vrot.slane %v344, 4
    %v347 = vrot.slane %v325, 5
    %v348 = vsel %vm341, %v346, %v347
    %v349 = vrot.slane %v347, 4
    %v350 = vrot.slane %v326, 5
    %v351 = vsel %vm341, %v349, %v350
    %v352 = vrot.slane %v350, 4
    %v353 = vrot.slane %v327, 5
    %v354 = vsel %vm341, %v352, %v353
    %v355 = vrot.slane %v353, 4
    %v356 = vrot.slane %v328, 5
    %v357 = vsel %vm341, %v355, %v356
    %v358 = vrot.slane %v356, 4
    %v359 = vrot.slane %v329, 5
    %v360 = vsel %vm341, %v358, %v359
    %v361 = vrot.slane %v359, 4
    %v362 = vrot.slane %v330, 5
    %v363 = vsel %vm341, %v361, %v362
    %v364 = vrot.slane %v362, 4
    %v365 = vrot.slane %v331, 5
    %v366 = vsel %vm341, %v364, %v365
    %v367 = vrot.slane %v365, 4
    %v368 = vrot.slane %v332, 5
    %v369 = vsel %vm341, %v367, %v368
    %v370 = vrot.slane %v368, 4
    %v371 = vrot.slane %v333, 5
    %v372 = vsel %vm341, %v370, %v371
    %v373 = vrot.slane %v371, 4
    %v374 = vrot.slane %v334, 5
    %v375 = vsel %vm341, %v373, %v374
    %v376 = vrot.slane %v374, 4
    %v377 = vrot.slane %v335, 5
    %v378 = vsel %vm341, %v376, %v377
    %v379 = vrot.slane %v377, 4
    %v380 = vrot.slane %v336, 5
    %v381 = vsel %vm341, %v379, %v380
    %v382 = vrot.slane %v380, 4
    %v383 = vrot.slane %v337, 5
    %v384 = vsel %vm341, %v382, %v383
    %v385 = vrot.slane %v383, 4
    %v386 = vrot.slane %v338, 5
    %v387 = vsel %vm341, %v385, %v386
    %v388 = vrot.slane %v386, 4
    %vm389 = vcmp.ne.s16.totalorder %v342, 0
    %vm390 = vcmp.ne.s16.totalorder %v345, 0
    %vm391 = vcmp.ne.s16.totalorder %v348, 0
    %vm392 = vcmp.ne.s16.totalorder %v351, 0
    %vm393 = vcmp.ne.s16.totalorder %v354, 0
    %vm394 = vcmp.ne.s16.totalorder %v357, 0
    %vm395 = vcmp.ne.s16.totalorder %v360, 0
    %vm396 = vcmp.ne.s16.totalorder %v363, 0
    %vm397 = vcmp.ne.s16.totalorder %v366, 0
    %vm398 = vcmp.ne.s16.totalorder %v369, 0
    %vm399 = vcmp.ne.s16.totalorder %v372, 0
    %vm400 = vcmp.ne.s16.totalorder %v375, 0
    %vm401 = vcmp.ne.s16.totalorder %v378, 0
    %vm402 = vcmp.ne.s16.totalorder %v381, 0
    %vm403 = vcmp.ne.s16.totalorder %v384, 0
    %vm404 = vcmp.ne.s16.totalorder %v387, 0
    %vm405 = vcmp.ne.s16.totalorder %v388, 0
    %v406 = vsel %vm389, %v242, 0
    %v407 = vsel %vm390, %v243, 0
    %v408 = vsel %vm391, %v244, 0
    %v409 = vsel %vm392, %v245, 0
    %v410 = vsel %vm393, %v246, 0
    %v411 = vsel %vm394, %v247, 0
    %v412 = vsel %vm395, %v248, 0
    %v413 = vsel %vm396, %v249, 0
    %v414 = vsel %vm397, %v250, 0
    %v415 = vsel %vm398, %v251, 0
    %v416 = vsel %vm399, %v252, 0
    %v417 = vsel %vm400, %v253, 0
    %v418 = vsel %vm401, %v254, 0
    %v419 = vsel %vm402, %v255, 0
    %v420 = vsel %vm403, %v256, 0
    %v421 = vsel %vm404, %v257, 0
    %v422 = vsel %vm405, %v258, 0
    %v423 = vld [vmem:[#allocation6] sm:$0xff]
    %v424 = vld [vmem:[#allocation6 + $0x8] sm:$0xff]
    %v425 = vld [vmem:[#allocation6 + $0x10] sm:$0xff]
    %v426 = vld [vmem:[#allocation6 + $0x18] sm:$0xff]
    %v427 = vld [vmem:[#allocation6 + $0x20] sm:$0xff]
    %v428 = vld [vmem:[#allocation6 + $0x28] sm:$0xff]
    %v429 = vld [vmem:[#allocation6 + $0x30] sm:$0xff]
    %v430 = vld [vmem:[#allocation6 + $0x38] sm:$0xff]
    %v431 = vld [vmem:[#allocation6 + $0x40] sm:$0xff]
    %v432 = vld [vmem:[#allocation6 + $0x48] sm:$0xff]
    %v433 = vld [vmem:[#allocation6 + $0x50] sm:$0xff]
    %v434 = vld [vmem:[#allocation6 + $0x58] sm:$0xff]
    %v435 = vld [vmem:[#allocation6 + $0x60] sm:$0xff]
    %v436 = vld [vmem:[#allocation6 + $0x68] sm:$0xff]
    %v437 = vld [vmem:[#allocation6 + $0x70] sm:$0xff]
    %v438 = vld [vmem:[#allocation6 + $0x78] sm:$0xff]
    %v439 = vld [vmem:[#allocation6 + $0x80] sm:$0xff]
    %v440 = vld [vmem:[#allocation6 + $0x88] sm:$0xff]
    %v441 = vld [vmem:[#allocation6 + $0x90] sm:$0xff]
    %v442 = vld [vmem:[#allocation6 + $0x98] sm:$0xff]
    %v443 = vld [vmem:[#allocation6 + $0xa0] sm:$0xff]
    %v444 = vld [vmem:[#allocation6 + $0xa8] sm:$0xff]
    %v445 = vld [vmem:[#allocation6 + $0xb0] sm:$0xff]
    %v446 = vld [vmem:[#allocation6 + $0xb8] sm:$0xff]
    %v447 = vld [vmem:[#allocation6 + $0xc0] sm:$0xff]
    %v448 = vld [vmem:[#allocation6 + $0xc8] sm:$0xff]
    %v449 = vld [vmem:[#allocation6 + $0xd0] sm:$0xff]
    %v450 = vld [vmem:[#allocation6 + $0xd8] sm:$0xff]
    %v451 = vld [vmem:[#allocation6 + $0xe0] sm:$0xff]
    %v452 = vld [vmem:[#allocation6 + $0xe8] sm:$0xff]
    %v453 = vld [vmem:[#allocation6 + $0xf0] sm:$0xff]
    %v454 = vld [vmem:[#allocation6 + $0xf8] sm:$0xff]
    %v455 = vld [vmem:[#allocation2 + $0x88] sm:$0xff]
    %vm456 = vcmp.ge.s32.totalorder %v82, 1
    %vm457 = vcmp.ge.s32.totalorder %v83, 1
    %vm458 = vcmp.ge.s32.totalorder %v84, 1
    %vm459 = vcmp.ge.s32.totalorder %v85, 1
    %vm460 = vcmp.ge.s32.totalorder %v86, 1
    %vm461 = vcmp.ge.s32.totalorder %v87, 1
    %vm462 = vcmp.ge.s32.totalorder %v88, 1
    %vm463 = vcmp.ge.s32.totalorder %v89, 1
    %vm464 = vcmp.ge.s32.totalorder %v90, 1
    %vm465 = vcmp.ge.s32.totalorder %v91, 1
    %vm466 = vcmp.ge.s32.totalorder %v92, 1
    %vm467 = vcmp.ge.s32.totalorder %v93, 1
    %vm468 = vcmp.ge.s32.totalorder %v94, 1
    %vm469 = vcmp.ge.s32.totalorder %v95, 1
    %vm470 = vcmp.ge.s32.totalorder %v96, 1
    %vm471 = vcmp.ge.s32.totalorder %v97, 1
    %v472 = vsel %vm456, 1, 0
    %v473 = vsel %vm457, 1, 0
    %v474 = vsel %vm458, 1, 0
    %v475 = vsel %vm459, 1, 0
    %v476 = vsel %vm460, 1, 0
    %v477 = vsel %vm461, 1, 0
    %v478 = vsel %vm462, 1, 0
    %v479 = vsel %vm463, 1, 0
    %v480 = vsel %vm464, 1, 0
    %v481 = vsel %vm465, 1, 0
    %v482 = vsel %vm466, 1, 0
    %v483 = vsel %vm467, 1, 0
    %v484 = vsel %vm468, 1, 0
    %v485 = vsel %vm469, 1, 0
    %v486 = vsel %vm470, 1, 0
    %v487 = vsel %vm471, 1, 0
    %vm488 = vcmp.eq.s32.totalorder %v472, 1
    %vm489 = vcmp.eq.s32.totalorder %v473, 1
    %vm490 = vcmp.eq.s32.totalorder %v474, 1
    %vm491 = vcmp.eq.s32.totalorder %v475, 1
    %vm492 = vcmp.eq.s32.totalorder %v476, 1
    %vm493 = vcmp.eq.s32.totalorder %v477, 1
    %vm494 = vcmp.eq.s32.totalorder %v478, 1
    %vm495 = vcmp.eq.s32.totalorder %v479, 1
    %vm496 = vcmp.eq.s32.totalorder %v480, 1
    %vm497 = vcmp.eq.s32.totalorder %v481, 1
    %vm498 = vcmp.eq.s32.totalorder %v482, 1
    %vm499 = vcmp.eq.s32.totalorder %v483, 1
    %vm500 = vcmp.eq.s32.totalorder %v484, 1
    %vm501 = vcmp.eq.s32.totalorder %v485, 1
    %vm502 = vcmp.eq.s32.totalorder %v486, 1
    %vm503 = vcmp.eq.s32.totalorder %v487, 1
    %vm504 = vmpackc.low %vm488, %vm488
    %vm505 = vmpackc.low %vm489, %vm489
    %vm506 = vmpackc.low %vm490, %vm490
    %vm507 = vmpackc.low %vm491, %vm491
    %vm508 = vmpackc.low %vm492, %vm492
    %vm509 = vmpackc.low %vm493, %vm493
    %vm510 = vmpackc.low %vm494, %vm494
    %vm511 = vmpackc.low %vm495, %vm495
    %vm512 = vmpackc.low %vm496, %vm496
    %vm513 = vmpackc.low %vm497, %vm497
    %vm514 = vmpackc.low %vm498, %vm498
    %vm515 = vmpackc.low %vm499, %vm499
    %vm516 = vmpackc.low %vm500, %vm500
    %vm517 = vmpackc.low %vm501, %vm501
    %vm518 = vmpackc.low %vm502, %vm502
    %vm519 = vmpackc.low %vm503, %vm503
    %v520 = vsel %vm504, 65537, 0
    %v521 = vsel %vm505, 65537, 0
    %v522 = vsel %vm506, 65537, 0
    %v523 = vsel %vm507, 65537, 0
    %v524 = vsel %vm508, 65537, 0
    %v525 = vsel %vm509, 65537, 0
    %v526 = vsel %vm510, 65537, 0
    %v527 = vsel %vm511, 65537, 0
    %v528 = vsel %vm512, 65537, 0
    %v529 = vsel %vm513, 65537, 0
    %v530 = vsel %vm514, 65537, 0
    %v531 = vsel %vm515, 65537, 0
    %v532 = vsel %vm516, 65537, 0
    %v533 = vsel %vm517, 65537, 0
    %v534 = vsel %vm518, 65537, 0
    %v535 = vsel %vm519, 65537, 0
    %vm536 = vsmask.f32 3328
    %vm537 = vsmask.f32 7440
    %vm538 = vmor %vm536, %vm537
    %v540 = vshll.u32 %v520, 16
    %v542 = vrot.slane %v540, 5
    %v543 = vshrl.u32 %v520, 16
    %v545 = vrot.slane %v543, 4
    %v546 = vor.u32 %v545, %v542
    %v547 = vrot.slane %v546, 4
    %v549 = vshll.u32 %v521, 16
    %v551 = vrot.slane %v549, 5
    %v552 = vsel %vm538, %v547, %v551
    %v553 = vshrl.u32 %v521, 16
    %v555 = vrot.slane %v553, 4
    %v556 = vor.u32 %v555, %v551
    %v557 = vrot.slane %v556, 4
    %v559 = vshll.u32 %v522, 16
    %v561 = vrot.slane %v559, 5
    %v562 = vsel %vm538, %v557, %v561
    %v563 = vshrl.u32 %v522, 16
    %v565 = vrot.slane %v563, 4
    %v566 = vor.u32 %v565, %v561
    %v567 = vrot.slane %v566, 4
    %v569 = vshll.u32 %v523, 16
    %v571 = vrot.slane %v569, 5
    %v572 = vsel %vm538, %v567, %v571
    %v573 = vshrl.u32 %v523, 16
    %v575 = vrot.slane %v573, 4
    %v576 = vor.u32 %v575, %v571
    %v577 = vrot.slane %v576, 4
    %v579 = vshll.u32 %v524, 16
    %v581 = vrot.slane %v579, 5
    %v582 = vsel %vm538, %v577, %v581
    %v583 = vshrl.u32 %v524, 16
    %v585 = vrot.slane %v583, 4
    %v586 = vor.u32 %v585, %v581
    %v587 = vrot.slane %v586, 4
    %v589 = vshll.u32 %v525, 16
    %v591 = vrot.slane %v589, 5
    %v592 = vsel %vm538, %v587, %v591
    %v593 = vshrl.u32 %v525, 16
    %v595 = vrot.slane %v593, 4
    %v596 = vor.u32 %v595, %v591
    %v597 = vrot.slane %v596, 4
    %v599 = vshll.u32 %v526, 16
    %v601 = vrot.slane %v599, 5
    %v602 = vsel %vm538, %v597, %v601
    %v603 = vshrl.u32 %v526, 16
    %v605 = vrot.slane %v603, 4
    %v606 = vor.u32 %v605, %v601
    %v607 = vrot.slane %v606, 4
    %v609 = vshll.u32 %v527, 16
    %v611 = vrot.slane %v609, 5
    %v612 = vsel %vm538, %v607, %v611
    %v613 = vshrl.u32 %v527, 16
    %v615 = vrot.slane %v613, 4
    %v616 = vor.u32 %v615, %v611
    %v617 = vrot.slane %v616, 4
    %v619 = vshll.u32 %v528, 16
    %v621 = vrot.slane %v619, 5
    %v622 = vsel %vm538, %v617, %v621
    %v623 = vshrl.u32 %v528, 16
    %v625 = vrot.slane %v623, 4
    %v626 = vor.u32 %v625, %v621
    %v627 = vrot.slane %v626, 4
    %v629 = vshll.u32 %v529, 16
    %v631 = vrot.slane %v629, 5
    %v632 = vsel %vm538, %v627, %v631
    %v633 = vshrl.u32 %v529, 16
    %v635 = vrot.slane %v633, 4
    %v636 = vor.u32 %v635, %v631
    %v637 = vrot.slane %v636, 4
    %v639 = vshll.u32 %v530, 16
    %v641 = vrot.slane %v639, 5
    %v642 = vsel %vm538, %v637, %v641
    %v643 = vshrl.u32 %v530, 16
    %v645 = vrot.slane %v643, 4
    %v646 = vor.u32 %v645, %v641
    %v647 = vrot.slane %v646, 4
    %v649 = vshll.u32 %v531, 16
    %v651 = vrot.slane %v649, 5
    %v652 = vsel %vm538, %v647, %v651
    %v653 = vshrl.u32 %v531, 16
    %v655 = vrot.slane %v653, 4
    %v656 = vor.u32 %v655, %v651
    %v657 = vrot.slane %v656, 4
    %v659 = vshll.u32 %v532, 16
    %v661 = vrot.slane %v659, 5
    %v662 = vsel %vm538, %v657, %v661
    %v663 = vshrl.u32 %v532, 16
    %v665 = vrot.slane %v663, 4
    %v666 = vor.u32 %v665, %v661
    %v667 = vrot.slane %v666, 4
    %v669 = vshll.u32 %v533, 16
    %v671 = vrot.slane %v669, 5
    %v672 = vsel %vm538, %v667, %v671
    %v673 = vshrl.u32 %v533, 16
    %v675 = vrot.slane %v673, 4
    %v676 = vor.u32 %v675, %v671
    %v677 = vrot.slane %v676, 4
    %v679 = vshll.u32 %v534, 16
    %v681 = vrot.slane %v679, 5
    %v682 = vsel %vm538, %v677, %v681
    %v683 = vshrl.u32 %v534, 16
    %v685 = vrot.slane %v683, 4
    %v686 = vor.u32 %v685, %v681
    %v687 = vrot.slane %v686, 4
    %v689 = vshll.u32 %v535, 16
    %v691 = vrot.slane %v689, 5
    %v692 = vsel %vm538, %v687, %v691
    %v693 = vshrl.u32 %v535, 16
    %v695 = vrot.slane %v693, 4
    %v696 = vor.u32 %v695, %v691
    %v697 = vrot.slane %v696, 4
    %vm698 = vcmp.ne.s16.totalorder %v542, 0
    %vm699 = vcmp.ne.s16.totalorder %v552, 0
    %vm700 = vcmp.ne.s16.totalorder %v562, 0
    %vm701 = vcmp.ne.s16.totalorder %v572, 0
    %vm702 = vcmp.ne.s16.totalorder %v582, 0
    %vm703 = vcmp.ne.s16.totalorder %v592, 0
    %vm704 = vcmp.ne.s16.totalorder %v602, 0
    %vm705 = vcmp.ne.s16.totalorder %v612, 0
    %vm706 = vcmp.ne.s16.totalorder %v622, 0
    %vm707 = vcmp.ne.s16.totalorder %v632, 0
    %vm708 = vcmp.ne.s16.totalorder %v642, 0
    %vm709 = vcmp.ne.s16.totalorder %v652, 0
    %vm710 = vcmp.ne.s16.totalorder %v662, 0
    %vm711 = vcmp.ne.s16.totalorder %v672, 0
    %vm712 = vcmp.ne.s16.totalorder %v682, 0
    %vm713 = vcmp.ne.s16.totalorder %v692, 0
    %vm714 = vcmp.ne.s16.totalorder %v697, 0
    %v715 = vsel %vm698, %v242, 0
    %v716 = vsel %vm699, %v243, 0
    %v717 = vsel %vm700, %v244, 0
    %v718 = vsel %vm701, %v245, 0
    %v719 = vsel %vm702, %v246, 0
    %v720 = vsel %vm703, %v247, 0
    %v721 = vsel %vm704, %v248, 0
    %v722 = vsel %vm705, %v249, 0
    %v723 = vsel %vm706, %v250, 0
    %v724 = vsel %vm707, %v251, 0
    %v725 = vsel %vm708, %v252, 0
    %v726 = vsel %vm709, %v253, 0
    %v727 = vsel %vm710, %v254, 0
    %v728 = vsel %vm711, %v255, 0
    %v729 = vsel %vm712, %v256, 0
    %v730 = vsel %vm713, %v257, 0
    %v731 = vsel %vm714, %v455, 0
    %s732 = scalar_lea.vmem [#allocation6], 256
    %v733 = vld [vmem:[%s732] sm:$0xff]
    %v734 = vld [vmem:[%s732 + $0x8] sm:$0xff]
    %v735 = vld [vmem:[%s732 + $0x10] sm:$0xff]
    %v736 = vld [vmem:[%s732 + $0x18] sm:$0xff]
    %v737 = vld [vmem:[%s732 + $0x20] sm:$0xff]
    %v738 = vld [vmem:[%s732 + $0x28] sm:$0xff]
    %v739 = vld [vmem:[%s732 + $0x30] sm:$0xff]
    %v740 = vld [vmem:[%s732 + $0x38] sm:$0xff]
    %v741 = vld [vmem:[%s732 + $0x40] sm:$0xff]
    %v742 = vld [vmem:[%s732 + $0x48] sm:$0xff]
    %v743 = vld [vmem:[%s732 + $0x50] sm:$0xff]
    %v744 = vld [vmem:[%s732 + $0x58] sm:$0xff]
    %v745 = vld [vmem:[%s732 + $0x60] sm:$0xff]
    %v746 = vld [vmem:[%s732 + $0x68] sm:$0xff]
    %v747 = vld [vmem:[%s732 + $0x70] sm:$0xff]
    %v748 = vld [vmem:[%s732 + $0x78] sm:$0xff]
    %v749 = vld [vmem:[%s732 + $0x80] sm:$0xff]
    %v750 = vld [vmem:[%s732 + $0x88] sm:$0xff]
    %v751 = vld [vmem:[%s732 + $0x90] sm:$0xff]
    %v752 = vld [vmem:[%s732 + $0x98] sm:$0xff]
    %v753 = vld [vmem:[%s732 + $0xa0] sm:$0xff]
    %v754 = vld [vmem:[%s732 + $0xa8] sm:$0xff]
    %v755 = vld [vmem:[%s732 + $0xb0] sm:$0xff]
    %v756 = vld [vmem:[%s732 + $0xb8] sm:$0xff]
    %v757 = vld [vmem:[%s732 + $0xc0] sm:$0xff]
    %v758 = vld [vmem:[%s732 + $0xc8] sm:$0xff]
    %v759 = vld [vmem:[%s732 + $0xd0] sm:$0xff]
    %v760 = vld [vmem:[%s732 + $0xd8] sm:$0xff]
    %v761 = vld [vmem:[%s732 + $0xe0] sm:$0xff]
    %v762 = vld [vmem:[%s732 + $0xe8] sm:$0xff]
    %v763 = vld [vmem:[%s732 + $0xf0] sm:$0xff]
    %v764 = vld [vmem:[%s732 + $0xf8] sm:$0xff]
    %v782 = vunpack.c.l.b16 %v715
    %v783 = vunpack.c.h.b16 %v715
    %v784 = vunpack.c.l.b16 %v716
    %v785 = vunpack.c.h.b16 %v716
    %v786 = vunpack.c.l.b16 %v717
    %v787 = vunpack.c.h.b16 %v717
    %v788 = vunpack.c.l.b16 %v718
    %v789 = vunpack.c.h.b16 %v718
    %v790 = vunpack.c.l.b16 %v719
    %v791 = vunpack.c.h.b16 %v719
    %v792 = vunpack.c.l.b16 %v720
    %v793 = vunpack.c.h.b16 %v720
    %v794 = vunpack.c.l.b16 %v721
    %v795 = vunpack.c.h.b16 %v721
    %v796 = vunpack.c.l.b16 %v722
    %v797 = vunpack.c.h.b16 %v722
    %v798 = vunpack.c.l.b16 %v723
    %v799 = vunpack.c.h.b16 %v723
    %v800 = vunpack.c.l.b16 %v724
    %v801 = vunpack.c.h.b16 %v724
    %v802 = vunpack.c.l.b16 %v725
    %v803 = vunpack.c.h.b16 %v725
    %v804 = vunpack.c.l.b16 %v726
    %v805 = vunpack.c.h.b16 %v726
    %v806 = vunpack.c.l.b16 %v727
    %v807 = vunpack.c.h.b16 %v727
    %v808 = vunpack.c.l.b16 %v728
    %v809 = vunpack.c.h.b16 %v728
    %v810 = vunpack.c.l.b16 %v729
    %v811 = vunpack.c.h.b16 %v729
    %v812 = vunpack.c.l.b16 %v730
    %v813 = vunpack.c.h.b16 %v730
    %v814 = vunpack.c.l.b16 %v731
    %v815 = vunpack.c.h.b16 %v731
    %v816 = vpack.c.b16 %v784, %v782
    %v817 = vpack.c.b16 %v785, %v783
    %v818 = vpack.c.b16 %v788, %v786
    %v819 = vpack.c.b16 %v789, %v787
    %v820 = vpack.c.b16 %v792, %v790
    %v821 = vpack.c.b16 %v793, %v791
    %v822 = vpack.c.b16 %v796, %v794
    %v823 = vpack.c.b16 %v797, %v795
    %v824 = vpack.c.b16 %v800, %v798
    %v825 = vpack.c.b16 %v801, %v799
    %v826 = vpack.c.b16 %v804, %v802
    %v827 = vpack.c.b16 %v805, %v803
    %v828 = vpack.c.b16 %v808, %v806
    %v829 = vpack.c.b16 %v809, %v807
    %v830 = vpack.c.b16 %v812, %v810
    %v831 = vpack.c.b16 %v813, %v811
    %v832 = vpack.c.b16 %v814, %v814
    %v833 = vpack.c.b16 %v815, %v815
    %vm834 = vsmask.f32 4352
    %v836 = vshrl.u32 %v816, 16
    %v838 = vrot.slane %v836, 3
    %v839 = vshll.u32 %v816, 16
    %v841 = vrot.slane %v839, 4
    %v842 = vor.u32 %v838, %v841
    %v844 = vshrl.u32 %v818, 16
    %v846 = vrot.slane %v844, 3
    %v847 = vshll.u32 %v818, 16
    %v849 = vrot.slane %v847, 4
    %v850 = vor.u32 %v846, %v849
    %v851 = vsel %vm834, %v842, %v850
    %v853 = vshrl.u32 %v817, 16
    %v855 = vrot.slane %v853, 3
    %v856 = vshll.u32 %v817, 16
    %v858 = vrot.slane %v856, 4
    %v859 = vor.u32 %v855, %v858
    %v861 = vshrl.u32 %v819, 16
    %v863 = vrot.slane %v861, 3
    %v864 = vshll.u32 %v819, 16
    %v866 = vrot.slane %v864, 4
    %v867 = vor.u32 %v863, %v866
    %v868 = vsel %vm834, %v859, %v867
    %v870 = vshrl.u32 %v820, 16
    %v872 = vrot.slane %v870, 3
    %v873 = vshll.u32 %v820, 16
    %v875 = vrot.slane %v873, 4
    %v876 = vor.u32 %v872, %v875
    %v877 = vsel %vm834, %v850, %v876
    %v879 = vshrl.u32 %v821, 16
    %v881 = vrot.slane %v879, 3
    %v882 = vshll.u32 %v821, 16
    %v884 = vrot.slane %v882, 4
    %v885 = vor.u32 %v881, %v884
    %v886 = vsel %vm834, %v867, %v885
    %v888 = vshrl.u32 %v822, 16
    %v890 = vrot.slane %v888, 3
    %v891 = vshll.u32 %v822, 16
    %v893 = vrot.slane %v891, 4
    %v894 = vor.u32 %v890, %v893
    %v895 = vsel %vm834, %v876, %v894
    %v897 = vshrl.u32 %v823, 16
    %v899 = vrot.slane %v897, 3
    %v900 = vshll.u32 %v823, 16
    %v902 = vrot.slane %v900, 4
    %v903 = vor.u32 %v899, %v902
    %v904 = vsel %vm834, %v885, %v903
    %v906 = vshrl.u32 %v824, 16
    %v908 = vrot.slane %v906, 3
    %v909 = vshll.u32 %v824, 16
    %v911 = vrot.slane %v909, 4
    %v912 = vor.u32 %v908, %v911
    %v913 = vsel %vm834, %v894, %v912
    %v915 = vshrl.u32 %v825, 16
    %v917 = vrot.slane %v915, 3
    %v918 = vshll.u32 %v825, 16
    %v920 = vrot.slane %v918, 4
    %v921 = vor.u32 %v917, %v920
    %v922 = vsel %vm834, %v903, %v921
    %v924 = vshrl.u32 %v826, 16
    %v926 = vrot.slane %v924, 3
    %v927 = vshll.u32 %v826, 16
    %v929 = vrot.slane %v927, 4
    %v930 = vor.u32 %v926, %v929
    %v931 = vsel %vm834, %v912, %v930
    %v933 = vshrl.u32 %v827, 16
    %v935 = vrot.slane %v933, 3
    %v936 = vshll.u32 %v827, 16
    %v938 = vrot.slane %v936, 4
    %v939 = vor.u32 %v935, %v938
    %v940 = vsel %vm834, %v921, %v939
    %v942 = vshrl.u32 %v828, 16
    %v944 = vrot.slane %v942, 3
    %v945 = vshll.u32 %v828, 16
    %v947 = vrot.slane %v945, 4
    %v948 = vor.u32 %v944, %v947
    %v949 = vsel %vm834, %v930, %v948
    %v951 = vshrl.u32 %v829, 16
    %v953 = vrot.slane %v951, 3
    %v954 = vshll.u32 %v829, 16
    %v956 = vrot.slane %v954, 4
    %v957 = vor.u32 %v953, %v956
    %v958 = vsel %vm834, %v939, %v957
    %v960 = vshrl.u32 %v830, 16
    %v962 = vrot.slane %v960, 3
    %v963 = vshll.u32 %v830, 16
    %v965 = vrot.slane %v963, 4
    %v966 = vor.u32 %v962, %v965
    %v967 = vsel %vm834, %v948, %v966
    %v969 = vshrl.u32 %v831, 16
    %v971 = vrot.slane %v969, 3
    %v972 = vshll.u32 %v831, 16
    %v974 = vrot.slane %v972, 4
    %v975 = vor.u32 %v971, %v974
    %v976 = vsel %vm834, %v957, %v975
    %v978 = vshrl.u32 %v832, 16
    %v980 = vrot.slane %v978, 3
    %v981 = vshll.u32 %v832, 16
    %v983 = vrot.slane %v981, 4
    %v984 = vor.u32 %v980, %v983
    %v985 = vsel %vm834, %v966, %v984
    %v987 = vshrl.u32 %v833, 16
    %v989 = vrot.slane %v987, 3
    %v990 = vshll.u32 %v833, 16
    %v992 = vrot.slane %v990, 4
    %v993 = vor.u32 %v989, %v992
    %v994 = vsel %vm834, %v975, %v993
    %v1043 = vunpack.c.l.b16 %v733
    %v1044 = vunpack.c.h.b16 %v733
    %v1045 = vunpack.c.l.b16 %v734
    %v1046 = vunpack.c.h.b16 %v734
    %v1047 = vunpack.c.l.b16 %v735
    %v1048 = vunpack.c.h.b16 %v735
    %v1049 = vunpack.c.l.b16 %v736
    %v1050 = vunpack.c.h.b16 %v736
    %v1051 = vunpack.c.l.b16 %v737
    %v1052 = vunpack.c.h.b16 %v737
    %v1053 = vunpack.c.l.b16 %v738
    %v1054 = vunpack.c.h.b16 %v738
    %v1055 = vunpack.c.l.b16 %v739
    %v1056 = vunpack.c.h.b16 %v739
    %v1057 = vunpack.c.l.b16 %v740
    %v1058 = vunpack.c.h.b16 %v740
    %v1059 = vunpack.c.l.b16 %v741
    %v1060 = vunpack.c.h.b16 %v741
    %v1061 = vunpack.c.l.b16 %v742
    %v1062 = vunpack.c.h.b16 %v742
    %v1063 = vunpack.c.l.b16 %v743
    %v1064 = vunpack.c.h.b16 %v743
    %v1065 = vunpack.c.l.b16 %v744
    %v1066 = vunpack.c.h.b16 %v744
    %v1067 = vunpack.c.l.b16 %v745
    %v1068 = vunpack.c.h.b16 %v745
    %v1069 = vunpack.c.l.b16 %v746
    %v1070 = vunpack.c.h.b16 %v746
    %v1071 = vunpack.c.l.b16 %v747
    %v1072 = vunpack.c.h.b16 %v747
    %v1073 = vunpack.c.l.b16 %v748
    %v1074 = vunpack.c.h.b16 %v748
    %v1075 = vunpack.c.l.b16 %v749
    %v1076 = vunpack.c.h.b16 %v749
    %v1077 = vunpack.c.l.b16 %v750
    %v1078 = vunpack.c.h.b16 %v750
    %v1079 = vunpack.c.l.b16 %v751
    %v1080 = vunpack.c.h.b16 %v751
    %v1081 = vunpack.c.l.b16 %v752
    %v1082 = vunpack.c.h.b16 %v752
    %v1083 = vunpack.c.l.b16 %v753
    %v1084 = vunpack.c.h.b16 %v753
    %v1085 = vunpack.c.l.b16 %v754
    %v1086 = vunpack.c.h.b16 %v754
    %v1087 = vunpack.c.l.b16 %v755
    %v1088 = vunpack.c.h.b16 %v755
    %v1089 = vunpack.c.l.b16 %v756
    %v1090 = vunpack.c.h.b16 %v756
    %v1091 = vunpack.c.l.b16 %v757
    %v1092 = vunpack.c.h.b16 %v757
    %v1093 = vunpack.c.l.b16 %v758
    %v1094 = vunpack.c.h.b16 %v758
    %v1095 = vunpack.c.l.b16 %v759
    %v1096 = vunpack.c.h.b16 %v759
    %v1097 = vunpack.c.l.b16 %v760
    %v1098 = vunpack.c.h.b16 %v760
    %v1099 = vunpack.c.l.b16 %v761
    %v1100 = vunpack.c.h.b16 %v761
    %v1101 = vunpack.c.l.b16 %v762
    %v1102 = vunpack.c.h.b16 %v762
    %v1103 = vunpack.c.l.b16 %v763
    %v1104 = vunpack.c.h.b16 %v763
    %v1105 = vunpack.c.l.b16 %v764
    %v1106 = vunpack.c.h.b16 %v764
    %v1107 = vpack.c.b16 %v1045, %v1043
    %v1108 = vpack.c.b16 %v1046, %v1044
    %v1109 = vpack.c.b16 %v1049, %v1047
    %v1110 = vpack.c.b16 %v1050, %v1048
    %v1111 = vpack.c.b16 %v1053, %v1051
    %v1112 = vpack.c.b16 %v1054, %v1052
    %v1113 = vpack.c.b16 %v1057, %v1055
    %v1114 = vpack.c.b16 %v1058, %v1056
    %v1115 = vpack.c.b16 %v1061, %v1059
    %v1116 = vpack.c.b16 %v1062, %v1060
    %v1117 = vpack.c.b16 %v1065, %v1063
    %v1118 = vpack.c.b16 %v1066, %v1064
    %v1119 = vpack.c.b16 %v1069, %v1067
    %v1120 = vpack.c.b16 %v1070, %v1068
    %v1121 = vpack.c.b16 %v1073, %v1071
    %v1122 = vpack.c.b16 %v1074, %v1072
    %v1123 = vpack.c.b16 %v1077, %v1075
    %v1124 = vpack.c.b16 %v1078, %v1076
    %v1125 = vpack.c.b16 %v1081, %v1079
    %v1126 = vpack.c.b16 %v1082, %v1080
    %v1127 = vpack.c.b16 %v1085, %v1083
    %v1128 = vpack.c.b16 %v1086, %v1084
    %v1129 = vpack.c.b16 %v1089, %v1087
    %v1130 = vpack.c.b16 %v1090, %v1088
    %v1131 = vpack.c.b16 %v1093, %v1091
    %v1132 = vpack.c.b16 %v1094, %v1092
    %v1133 = vpack.c.b16 %v1097, %v1095
    %v1134 = vpack.c.b16 %v1098, %v1096
    %v1135 = vpack.c.b16 %v1101, %v1099
    %v1136 = vpack.c.b16 %v1102, %v1100
    %v1137 = vpack.c.b16 %v1105, %v1103
    %v1138 = vpack.c.b16 %v1106, %v1104
    %1171 = vmatprep.subr.bf16.mxu0 %v1108
    %1172 = vmatpush1.bf16.msra.mxu0 %v1107
    %1173 = vmatprep.subr.bf16.mxu0 %v1110
    %1174 = vmatpush1.bf16.msra.mxu0 %v1109
    %1175 = vmatprep.subr.bf16.mxu0 %v1112
    %1176 = vmatpush1.bf16.msra.mxu0 %v1111
    %1177 = vmatprep.subr.bf16.mxu0 %v1114
    %1178 = vmatpush1.bf16.msra.mxu0 %v1113
    %1179 = vmatprep.subr.bf16.mxu0 %v1116
    %1180 = vmatpush1.bf16.msra.mxu0 %v1115
    %1181 = vmatprep.subr.bf16.mxu0 %v1118
    %1182 = vmatpush1.bf16.msra.mxu0 %v1117
    %1183 = vmatprep.subr.bf16.mxu0 %v1120
    %1184 = vmatpush1.bf16.msra.mxu0 %v1119
    %1185 = vmatprep.subr.bf16.mxu0 %v1122
    %1186 = vmatpush1.bf16.msra.mxu0 %v1121
    %1187 = vmatprep.subr.bf16.mxu0 %v1124
    %1188 = vmatpush1.bf16.msra.mxu0 %v1123
    %1189 = vmatprep.subr.bf16.mxu0 %v1126
    %1190 = vmatpush1.bf16.msra.mxu0 %v1125
    %1191 = vmatprep.subr.bf16.mxu0 %v1128
    %1192 = vmatpush1.bf16.msra.mxu0 %v1127
    %1193 = vmatprep.subr.bf16.mxu0 %v1130
    %1194 = vmatpush1.bf16.msra.mxu0 %v1129
    %1195 = vmatprep.subr.bf16.mxu0 %v1132
    %1196 = vmatpush1.bf16.msra.mxu0 %v1131
    %1197 = vmatprep.subr.bf16.mxu0 %v1134
    %1198 = vmatpush1.bf16.msra.mxu0 %v1133
    %1199 = vmatprep.subr.bf16.mxu0 %v1136
    %1200 = vmatpush1.bf16.msra.mxu0 %v1135
    %1201 = vmatprep.subr.bf16.mxu0 %v1138
    %1202 = vmatpush1.bf16.msra.mxu0 %v1137
    %1203 = vmatprep.mubr.bf16.mxu0 %v868
    %1204 = vmatmul.mubr.bf16.gmra.mrb[0].mxu0 %v851
    %v1205 = vpop.f32.mrb[0].mxu0
    %v1206 = vadd.f32 0.0, %v1205
    %v1207 = vpop.f32.mrb[0].mxu0
    %v1208 = vadd.f32 0.0, %v1207
    %v1209 = vpop.f32.mrb[0].mxu0
    %v1210 = vadd.f32 0.0, %v1209
    %v1211 = vpop.f32.mrb[0].mxu0
    %v1212 = vadd.f32 0.0, %v1211
    %1213 = vmatprep.mubr.bf16.mxu0 %v886
    %1214 = vmatmul.mubr.bf16.gmra.mrb[0].mxu0 %v877
    %v1215 = vpop.f32.mrb[0].mxu0
    %v1216 = vadd.f32 0.0, %v1215
    %v1217 = vpop.f32.mrb[0].mxu0
    %v1218 = vadd.f32 0.0, %v1217
    %v1219 = vpop.f32.mrb[0].mxu0
    %v1220 = vadd.f32 0.0, %v1219
    %v1221 = vpop.f32.mrb[0].mxu0
    %v1222 = vadd.f32 0.0, %v1221
    %1223 = vmatprep.mubr.bf16.mxu0 %v904
    %1224 = vmatmul.mubr.bf16.gmra.mrb[0].mxu0 %v895
    %v1225 = vpop.f32.mrb[0].mxu0
    %v1226 = vadd.f32 0.0, %v1225
    %v1227 = vpop.f32.mrb[0].mxu0
    %v1228 = vadd.f32 0.0, %v1227
    %v1229 = vpop.f32.mrb[0].mxu0
    %v1230 = vadd.f32 0.0, %v1229
    %v1231 = vpop.f32.mrb[0].mxu0
    %v1232 = vadd.f32 0.0, %v1231
    %1233 = vmatprep.mubr.bf16.mxu0 %v922
    %1234 = vmatmul.mubr.bf16.gmra.mrb[0].mxu0 %v913
    %v1235 = vpop.f32.mrb[0].mxu0
    %v1236 = vadd.f32 0.0, %v1235
    %v1237 = vpop.f32.mrb[0].mxu0
    %v1238 = vadd.f32 0.0, %v1237
    %v1239 = vpop.f32.mrb[0].mxu0
    %v1240 = vadd.f32 0.0, %v1239
    %v1241 = vpop.f32.mrb[0].mxu0
    %v1242 = vadd.f32 0.0, %v1241
    %1243 = vmatprep.mubr.bf16.mxu0 %v940
    %1244 = vmatmul.mubr.bf16.gmra.mrb[0].mxu0 %v931
    %v1245 = vpop.f32.mrb[0].mxu0
    %v1246 = vadd.f32 0.0, %v1245
    %v1247 = vpop.f32.mrb[0].mxu0
    %v1248 = vadd.f32 0.0, %v1247
    %v1249 = vpop.f32.mrb[0].mxu0
    %v1250 = vadd.f32 0.0, %v1249
    %v1251 = vpop.f32.mrb[0].mxu0
    %v1252 = vadd.f32 0.0, %v1251
    %1253 = vmatprep.mubr.bf16.mxu0 %v958
    %1254 = vmatmul.mubr.bf16.gmra.mrb[0].mxu0 %v949
    %v1255 = vpop.f32.mrb[0].mxu0
    %v1256 = vadd.f32 0.0, %v1255
    %v1257 = vpop.f32.mrb[0].mxu0
    %v1258 = vadd.f32 0.0, %v1257
    %v1259 = vpop.f32.mrb[0].mxu0
    %v1260 = vadd.f32 0.0, %v1259
    %v1261 = vpop.f32.mrb[0].mxu0
    %v1262 = vadd.f32 0.0, %v1261
    %1263 = vmatprep.mubr.bf16.mxu0 %v976
    %1264 = vmatmul.mubr.bf16.gmra.mrb[0].mxu0 %v967
    %v1265 = vpop.f32.mrb[0].mxu0
    %v1266 = vadd.f32 0.0, %v1265
    %v1267 = vpop.f32.mrb[0].mxu0
    %v1268 = vadd.f32 0.0, %v1267
    %v1269 = vpop.f32.mrb[0].mxu0
    %v1270 = vadd.f32 0.0, %v1269
    %v1271 = vpop.f32.mrb[0].mxu0
    %v1272 = vadd.f32 0.0, %v1271
    %1273 = vmatprep.mubr.bf16.mxu0 %v994
    %1274 = vmatmul.mubr.bf16.gmra.mrb[0].mxu0 %v985
    %v1275 = vpop.f32.mrb[0].mxu0
    %v1276 = vadd.f32 0.0, %v1275
    %v1277 = vpop.f32.mrb[0].mxu0
    %v1278 = vadd.f32 0.0, %v1277
    %v1279 = vpop.f32.mrb[0].mxu0
    %v1280 = vadd.f32 0.0, %v1279
    %v1281 = vpop.f32.mrb[0].mxu0
    %v1282 = vadd.f32 0.0, %v1281
    %1283 = vdwg.mxu0
    %v1301 = vunpack.c.l.b16 %v406
    %v1302 = vunpack.c.h.b16 %v406
    %v1303 = vunpack.c.l.b16 %v407
    %v1304 = vunpack.c.h.b16 %v407
    %v1305 = vunpack.c.l.b16 %v408
    %v1306 = vunpack.c.h.b16 %v408
    %v1307 = vunpack.c.l.b16 %v409
    %v1308 = vunpack.c.h.b16 %v409
    %v1309 = vunpack.c.l.b16 %v410
    %v1310 = vunpack.c.h.b16 %v410
    %v1311 = vunpack.c.l.b16 %v411
    %v1312 = vunpack.c.h.b16 %v411
    %v1313 = vunpack.c.l.b16 %v412
    %v1314 = vunpack.c.h.b16 %v412
    %v1315 = vunpack.c.l.b16 %v413
    %v1316 = vunpack.c.h.b16 %v413
    %v1317 = vunpack.c.l.b16 %v414
    %v1318 = vunpack.c.h.b16 %v414
    %v1319 = vunpack.c.l.b16 %v415
    %v1320 = vunpack.c.h.b16 %v415
    %v1321 = vunpack.c.l.b16 %v416
    %v1322 = vunpack.c.h.b16 %v416
    %v1323 = vunpack.c.l.b16 %v417
    %v1324 = vunpack.c.h.b16 %v417
    %v1325 = vunpack.c.l.b16 %v418
    %v1326 = vunpack.c.h.b16 %v418
    %v1327 = vunpack.c.l.b16 %v419
    %v1328 = vunpack.c.h.b16 %v419
    %v1329 = vunpack.c.l.b16 %v420
    %v1330 = vunpack.c.h.b16 %v420
    %v1331 = vunpack.c.l.b16 %v421
    %v1332 = vunpack.c.h.b16 %v421
    %v1333 = vunpack.c.l.b16 %v422
    %v1334 = vunpack.c.h.b16 %v422
    %v1335 = vpack.c.b16 %v1303, %v1301
    %v1336 = vpack.c.b16 %v1304, %v1302
    %v1337 = vpack.c.b16 %v1307, %v1305
    %v1338 = vpack.c.b16 %v1308, %v1306
    %v1339 = vpack.c.b16 %v1311, %v1309
    %v1340 = vpack.c.b16 %v1312, %v1310
    %v1341 = vpack.c.b16 %v1315, %v1313
    %v1342 = vpack.c.b16 %v1316, %v1314
    %v1343 = vpack.c.b16 %v1319, %v1317
    %v1344 = vpack.c.b16 %v1320, %v1318
    %v1345 = vpack.c.b16 %v1323, %v1321
    %v1346 = vpack.c.b16 %v1324, %v1322
    %v1347 = vpack.c.b16 %v1327, %v1325
    %v1348 = vpack.c.b16 %v1328, %v1326
    %v1349 = vpack.c.b16 %v1331, %v1329
    %v1350 = vpack.c.b16 %v1332, %v1330
    %v1351 = vpack.c.b16 %v1333, %v1333
    %v1352 = vpack.c.b16 %v1334, %v1334
    %vm1353 = vcmask 1044480
    %v1354 = vrot.slane %v1335, 3
    %v1355 = vrot.slane %v1337, 3
    %v1356 = vsel %vm1353, %v1354, %v1355
    %v1357 = vrot.slane %v1336, 3
    %v1358 = vrot.slane %v1338, 3
    %v1359 = vsel %vm1353, %v1357, %v1358
    %v1360 = vrot.slane %v1339, 3
    %v1361 = vsel %vm1353, %v1355, %v1360
    %v1362 = vrot.slane %v1340, 3
    %v1363 = vsel %vm1353, %v1358, %v1362
    %v1364 = vrot.slane %v1341, 3
    %v1365 = vsel %vm1353, %v1360, %v1364
    %v1366 = vrot.slane %v1342, 3
    %v1367 = vsel %vm1353, %v1362, %v1366
    %v1368 = vrot.slane %v1343, 3
    %v1369 = vsel %vm1353, %v1364, %v1368
    %v1370 = vrot.slane %v1344, 3
    %v1371 = vsel %vm1353, %v1366, %v1370
    %v1372 = vrot.slane %v1345, 3
    %v1373 = vsel %vm1353, %v1368, %v1372
    %v1374 = vrot.slane %v1346, 3
    %v1375 = vsel %vm1353, %v1370, %v1374
    %v1376 = vrot.slane %v1347, 3
    %v1377 = vsel %vm1353, %v1372, %v1376
    %v1378 = vrot.slane %v1348, 3
    %v1379 = vsel %vm1353, %v1374, %v1378
    %v1380 = vrot.slane %v1349, 3
    %v1381 = vsel %vm1353, %v1376, %v1380
    %v1382 = vrot.slane %v1350, 3
    %v1383 = vsel %vm1353, %v1378, %v1382
    %v1384 = vrot.slane %v1351, 3
    %v1385 = vsel %vm1353, %v1380, %v1384
    %v1386 = vrot.slane %v1352, 3
    %v1387 = vsel %vm1353, %v1382, %v1386
    %v1436 = vunpack.c.l.b16 %v423
    %v1437 = vunpack.c.h.b16 %v423
    %v1438 = vunpack.c.l.b16 %v424
    %v1439 = vunpack.c.h.b16 %v424
    %v1440 = vunpack.c.l.b16 %v425
    %v1441 = vunpack.c.h.b16 %v425
    %v1442 = vunpack.c.l.b16 %v426
    %v1443 = vunpack.c.h.b16 %v426
    %v1444 = vunpack.c.l.b16 %v427
    %v1445 = vunpack.c.h.b16 %v427
    %v1446 = vunpack.c.l.b16 %v428
    %v1447 = vunpack.c.h.b16 %v428
    %v1448 = vunpack.c.l.b16 %v429
    %v1449 = vunpack.c.h.b16 %v429
    %v1450 = vunpack.c.l.b16 %v430
    %v1451 = vunpack.c.h.b16 %v430
    %v1452 = vunpack.c.l.b16 %v431
    %v1453 = vunpack.c.h.b16 %v431
    %v1454 = vunpack.c.l.b16 %v432
    %v1455 = vunpack.c.h.b16 %v432
    %v1456 = vunpack.c.l.b16 %v433
    %v1457 = vunpack.c.h.b16 %v433
    %v1458 = vunpack.c.l.b16 %v434
    %v1459 = vunpack.c.h.b16 %v434
    %v1460 = vunpack.c.l.b16 %v435
    %v1461 = vunpack.c.h.b16 %v435
    %v1462 = vunpack.c.l.b16 %v436
    %v1463 = vunpack.c.h.b16 %v436
    %v1464 = vunpack.c.l.b16 %v437
    %v1465 = vunpack.c.h.b16 %v437
    %v1466 = vunpack.c.l.b16 %v438
    %v1467 = vunpack.c.h.b16 %v438
    %v1468 = vunpack.c.l.b16 %v439
    %v1469 = vunpack.c.h.b16 %v439
    %v1470 = vunpack.c.l.b16 %v440
    %v1471 = vunpack.c.h.b16 %v440
    %v1472 = vunpack.c.l.b16 %v441
    %v1473 = vunpack.c.h.b16 %v441
    %v1474 = vunpack.c.l.b16 %v442
    %v1475 = vunpack.c.h.b16 %v442
    %v1476 = vunpack.c.l.b16 %v443
    %v1477 = vunpack.c.h.b16 %v443
    %v1478 = vunpack.c.l.b16 %v444
    %v1479 = vunpack.c.h.b16 %v444
    %v1480 = vunpack.c.l.b16 %v445
    %v1481 = vunpack.c.h.b16 %v445
    %v1482 = vunpack.c.l.b16 %v446
    %v1483 = vunpack.c.h.b16 %v446
    %v1484 = vunpack.c.l.b16 %v447
    %v1485 = vunpack.c.h.b16 %v447
    %v1486 = vunpack.c.l.b16 %v448
    %v1487 = vunpack.c.h.b16 %v448
    %v1488 = vunpack.c.l.b16 %v449
    %v1489 = vunpack.c.h.b16 %v449
    %v1490 = vunpack.c.l.b16 %v450
    %v1491 = vunpack.c.h.b16 %v450
    %v1492 = vunpack.c.l.b16 %v451
    %v1493 = vunpack.c.h.b16 %v451
    %v1494 = vunpack.c.l.b16 %v452
    %v1495 = vunpack.c.h.b16 %v452
    %v1496 = vunpack.c.l.b16 %v453
    %v1497 = vunpack.c.h.b16 %v453
    %v1498 = vunpack.c.l.b16 %v454
    %v1499 = vunpack.c.h.b16 %v454
    %v1500 = vpack.c.b16 %v1438, %v1436
    %v1501 = vpack.c.b16 %v1439, %v1437
    %v1502 = vpack.c.b16 %v1442, %v1440
    %v1503 = vpack.c.b16 %v1443, %v1441
    %v1504 = vpack.c.b16 %v1446, %v1444
    %v1505 = vpack.c.b16 %v1447, %v1445
    %v1506 = vpack.c.b16 %v1450, %v1448
    %v1507 = vpack.c.b16 %v1451, %v1449
    %v1508 = vpack.c.b16 %v1454, %v1452
    %v1509 = vpack.c.b16 %v1455, %v1453
    %v1510 = vpack.c.b16 %v1458, %v1456
    %v1511 = vpack.c.b16 %v1459, %v1457
    %v1512 = vpack.c.b16 %v1462, %v1460
    %v1513 = vpack.c.b16 %v1463, %v1461
    %v1514 = vpack.c.b16 %v1466, %v1464
    %v1515 = vpack.c.b16 %v1467, %v1465
    %v1516 = vpack.c.b16 %v1470, %v1468
    %v1517 = vpack.c.b16 %v1471, %v1469
    %v1518 = vpack.c.b16 %v1474, %v1472
    %v1519 = vpack.c.b16 %v1475, %v1473
    %v1520 = vpack.c.b16 %v1478, %v1476
    %v1521 = vpack.c.b16 %v1479, %v1477
    %v1522 = vpack.c.b16 %v1482, %v1480
    %v1523 = vpack.c.b16 %v1483, %v1481
    %v1524 = vpack.c.b16 %v1486, %v1484
    %v1525 = vpack.c.b16 %v1487, %v1485
    %v1526 = vpack.c.b16 %v1490, %v1488
    %v1527 = vpack.c.b16 %v1491, %v1489
    %v1528 = vpack.c.b16 %v1494, %v1492
    %v1529 = vpack.c.b16 %v1495, %v1493
    %v1530 = vpack.c.b16 %v1498, %v1496
    %v1531 = vpack.c.b16 %v1499, %v1497
    %1564 = vmatprep.subr.bf16.mxu0 %v1501
    %1565 = vmatpush1.bf16.msra.mxu0 %v1500
    %1566 = vmatprep.subr.bf16.mxu0 %v1503
    %1567 = vmatpush1.bf16.msra.mxu0 %v1502
    %1568 = vmatprep.subr.bf16.mxu0 %v1505
    %1569 = vmatpush1.bf16.msra.mxu0 %v1504
    %1570 = vmatprep.subr.bf16.mxu0 %v1507
    %1571 = vmatpush1.bf16.msra.mxu0 %v1506
    %1572 = vmatprep.subr.bf16.mxu0 %v1509
    %1573 = vmatpush1.bf16.msra.mxu0 %v1508
    %1574 = vmatprep.subr.bf16.mxu0 %v1511
    %1575 = vmatpush1.bf16.msra.mxu0 %v1510
    %1576 = vmatprep.subr.bf16.mxu0 %v1513
    %1577 = vmatpush1.bf16.msra.mxu0 %v1512
    %1578 = vmatprep.subr.bf16.mxu0 %v1515
    %1579 = vmatpush1.bf16.msra.mxu0 %v1514
    %1580 = vmatprep.subr.bf16.mxu0 %v1517
    %1581 = vmatpush1.bf16.msra.mxu0 %v1516
    %1582 = vmatprep.subr.bf16.mxu0 %v1519
    %1583 = vmatpush1.bf16.msra.mxu0 %v1518
    %1584 = vmatprep.subr.bf16.mxu0 %v1521
    %1585 = vmatpush1.bf16.msra.mxu0 %v1520
    %1586 = vmatprep.subr.bf16.mxu0 %v1523
    %1587 = vmatpush1.bf16.msra.mxu0 %v1522
    %1588 = vmatprep.subr.bf16.mxu0 %v1525
    %1589 = vmatpush1.bf16.msra.mxu0 %v1524
    %1590 = vmatprep.subr.bf16.mxu0 %v1527
    %1591 = vmatpush1.bf16.msra.mxu0 %v1526
    %1592 = vmatprep.subr.bf16.mxu0 %v1529
    %1593 = vmatpush1.bf16.msra.mxu0 %v1528
    %1594 = vmatprep.subr.bf16.mxu0 %v1531
    %1595 = vmatpush1.bf16.msra.mxu0 %v1530
    %1596 = vmatprep.mubr.bf16.mxu0 %v1359
    %1597 = vmatmul.mubr.bf16.gmra.mrb[0].mxu0 %v1356
    %v1598 = vpop.f32.mrb[0].mxu0
    %v1599 = vadd.f32 %v1206, %v1598
    %v1600 = vpop.f32.mrb[0].mxu0
    %v1601 = vadd.f32 %v1208, %v1600
    %v1602 = vpop.f32.mrb[0].mxu0
    %v1603 = vadd.f32 %v1210, %v1602
    %v1604 = vpop.f32.mrb[0].mxu0
    %v1605 = vadd.f32 %v1212, %v1604
    %1606 = vmatprep.mubr.bf16.mxu0 %v1363
    %1607 = vmatmul.mubr.bf16.gmra.mrb[0].mxu0 %v1361
    %v1608 = vpop.f32.mrb[0].mxu0
    %v1609 = vadd.f32 %v1216, %v1608
    %v1610 = vpop.f32.mrb[0].mxu0
    %v1611 = vadd.f32 %v1218, %v1610
    %v1612 = vpop.f32.mrb[0].mxu0
    %v1613 = vadd.f32 %v1220, %v1612
    %v1614 = vpop.f32.mrb[0].mxu0
    %v1615 = vadd.f32 %v1222, %v1614
    %1616 = vmatprep.mubr.bf16.mxu0 %v1367
    %1617 = vmatmul.mubr.bf16.gmra.mrb[0].mxu0 %v1365
    %v1618 = vpop.f32.mrb[0].mxu0
    %v1619 = vadd.f32 %v1226, %v1618
    %v1620 = vpop.f32.mrb[0].mxu0
    %v1621 = vadd.f32 %v1228, %v1620
    %v1622 = vpop.f32.mrb[0].mxu0
    %v1623 = vadd.f32 %v1230, %v1622
    %v1624 = vpop.f32.mrb[0].mxu0
    %v1625 = vadd.f32 %v1232, %v1624
    %1626 = vmatprep.mubr.bf16.mxu0 %v1371
    %1627 = vmatmul.mubr.bf16.gmra.mrb[0].mxu0 %v1369
    %v1628 = vpop.f32.mrb[0].mxu0
    %v1629 = vadd.f32 %v1236, %v1628
    %v1630 = vpop.f32.mrb[0].mxu0
    %v1631 = vadd.f32 %v1238, %v1630
    %v1632 = vpop.f32.mrb[0].mxu0
    %v1633 = vadd.f32 %v1240, %v1632
    %v1634 = vpop.f32.mrb[0].mxu0
    %v1635 = vadd.f32 %v1242, %v1634
    %1636 = vmatprep.mubr.bf16.mxu0 %v1375
    %1637 = vmatmul.mubr.bf16.gmra.mrb[0].mxu0 %v1373
    %v1638 = vpop.f32.mrb[0].mxu0
    %v1639 = vadd.f32 %v1246, %v1638
    %v1640 = vpop.f32.mrb[0].mxu0
    %v1641 = vadd.f32 %v1248, %v1640
    %v1642 = vpop.f32.mrb[0].mxu0
    %v1643 = vadd.f32 %v1250, %v1642
    %v1644 = vpop.f32.mrb[0].mxu0
    %v1645 = vadd.f32 %v1252, %v1644
    %1646 = vmatprep.mubr.bf16.mxu0 %v1379
    %1647 = vmatmul.mubr.bf16.gmra.mrb[0].mxu0 %v1377
    %v1648 = vpop.f32.mrb[0].mxu0
    %v1649 = vadd.f32 %v1256, %v1648
    %v1650 = vpop.f32.mrb[0].mxu0
    %v1651 = vadd.f32 %v1258, %v1650
    %v1652 = vpop.f32.mrb[0].mxu0
    %v1653 = vadd.f32 %v1260, %v1652
    %v1654 = vpop.f32.mrb[0].mxu0
    %v1655 = vadd.f32 %v1262, %v1654
    %1656 = vmatprep.mubr.bf16.mxu0 %v1383
    %1657 = vmatmul.mubr.bf16.gmra.mrb[0].mxu0 %v1381
    %v1658 = vpop.f32.mrb[0].mxu0
    %v1659 = vadd.f32 %v1266, %v1658
    %v1660 = vpop.f32.mrb[0].mxu0
    %v1661 = vadd.f32 %v1268, %v1660
    %v1662 = vpop.f32.mrb[0].mxu0
    %v1663 = vadd.f32 %v1270, %v1662
    %v1664 = vpop.f32.mrb[0].mxu0
    %v1665 = vadd.f32 %v1272, %v1664
    %1666 = vmatprep.mubr.bf16.mxu0 %v1387
    %1667 = vmatmul.mubr.bf16.gmra.mrb[0].mxu0 %v1385
    %v1668 = vpop.f32.mrb[0].mxu0
    %v1669 = vadd.f32 %v1276, %v1668
    %v1670 = vpop.f32.mrb[0].mxu0
    %v1671 = vadd.f32 %v1278, %v1670
    %v1672 = vpop.f32.mrb[0].mxu0
    %v1673 = vadd.f32 %v1280, %v1672
    %v1674 = vpop.f32.mrb[0].mxu0
    %v1675 = vadd.f32 %v1282, %v1674
    %1676 = vdwg.mxu0
    %s1677 = scalar_lea.vmem [#allocation6], 512
    %v1678 = vld [vmem:[%s1677] sm:$0xff]
    %v1679 = vld [vmem:[%s1677 + $0x8] sm:$0xff]
    %v1680 = vld [vmem:[%s1677 + $0x10] sm:$0xff]
    %v1681 = vld [vmem:[%s1677 + $0x18] sm:$0xff]
    %v1682 = vld [vmem:[%s1677 + $0x20] sm:$0xff]
    %v1683 = vld [vmem:[%s1677 + $0x28] sm:$0xff]
    %v1684 = vld [vmem:[%s1677 + $0x30] sm:$0xff]
    %v1685 = vld [vmem:[%s1677 + $0x38] sm:$0xff]
    %v1686 = vld [vmem:[%s1677 + $0x40] sm:$0xff]
    %v1687 = vld [vmem:[%s1677 + $0x48] sm:$0xff]
    %v1688 = vld [vmem:[%s1677 + $0x50] sm:$0xff]
    %v1689 = vld [vmem:[%s1677 + $0x58] sm:$0xff]
    %v1690 = vld [vmem:[%s1677 + $0x60] sm:$0xff]
    %v1691 = vld [vmem:[%s1677 + $0x68] sm:$0xff]
    %v1692 = vld [vmem:[%s1677 + $0x70] sm:$0xff]
    %v1693 = vld [vmem:[%s1677 + $0x78] sm:$0xff]
    %v1694 = vld [vmem:[%s1677 + $0x80] sm:$0xff]
    %v1695 = vld [vmem:[%s1677 + $0x88] sm:$0xff]
    %v1696 = vld [vmem:[%s1677 + $0x90] sm:$0xff]
    %v1697 = vld [vmem:[%s1677 + $0x98] sm:$0xff]
    %v1698 = vld [vmem:[%s1677 + $0xa0] sm:$0xff]
    %v1699 = vld [vmem:[%s1677 + $0xa8] sm:$0xff]
    %v1700 = vld [vmem:[%s1677 + $0xb0] sm:$0xff]
    %v1701 = vld [vmem:[%s1677 + $0xb8] sm:$0xff]
    %v1702 = vld [vmem:[%s1677 + $0xc0] sm:$0xff]
    %v1703 = vld [vmem:[%s1677 + $0xc8] sm:$0xff]
    %v1704 = vld [vmem:[%s1677 + $0xd0] sm:$0xff]
    %v1705 = vld [vmem:[%s1677 + $0xd8] sm:$0xff]
    %v1706 = vld [vmem:[%s1677 + $0xe0] sm:$0xff]
    %v1707 = vld [vmem:[%s1677 + $0xe8] sm:$0xff]
    %v1708 = vld [vmem:[%s1677 + $0xf0] sm:$0xff]
    %v1709 = vld [vmem:[%s1677 + $0xf8] sm:$0xff]
    %v1726 = vunpack.c.l.b16 %v243
    %v1727 = vunpack.c.h.b16 %v243
    %v1728 = vunpack.c.l.b16 %v244
    %v1729 = vunpack.c.h.b16 %v244
    %v1730 = vunpack.c.l.b16 %v245
    %v1731 = vunpack.c.h.b16 %v245
    %v1732 = vunpack.c.l.b16 %v246
    %v1733 = vunpack.c.h.b16 %v246
    %v1734 = vunpack.c.l.b16 %v247
    %v1735 = vunpack.c.h.b16 %v247
    %v1736 = vunpack.c.l.b16 %v248
    %v1737 = vunpack.c.h.b16 %v248
    %v1738 = vunpack.c.l.b16 %v249
    %v1739 = vunpack.c.h.b16 %v249
    %v1740 = vunpack.c.l.b16 %v250
    %v1741 = vunpack.c.h.b16 %v250
    %v1742 = vunpack.c.l.b16 %v251
    %v1743 = vunpack.c.h.b16 %v251
    %v1744 = vunpack.c.l.b16 %v252
    %v1745 = vunpack.c.h.b16 %v252
    %v1746 = vunpack.c.l.b16 %v253
    %v1747 = vunpack.c.h.b16 %v253
    %v1748 = vunpack.c.l.b16 %v254
    %v1749 = vunpack.c.h.b16 %v254
    %v1750 = vunpack.c.l.b16 %v255
    %v1751 = vunpack.c.h.b16 %v255
    %v1752 = vunpack.c.l.b16 %v256
    %v1753 = vunpack.c.h.b16 %v256
    %v1754 = vunpack.c.l.b16 %v257
    %v1755 = vunpack.c.h.b16 %v257
    %v1756 = vunpack.c.l.b16 %v455
    %v1757 = vunpack.c.h.b16 %v455
    %v1758 = vpack.c.b16 %v1728, %v1726
    %v1759 = vpack.c.b16 %v1729, %v1727
    %v1760 = vpack.c.b16 %v1732, %v1730
    %v1761 = vpack.c.b16 %v1733, %v1731
    %v1762 = vpack.c.b16 %v1736, %v1734
    %v1763 = vpack.c.b16 %v1737, %v1735
    %v1764 = vpack.c.b16 %v1740, %v1738
    %v1765 = vpack.c.b16 %v1741, %v1739
    %v1766 = vpack.c.b16 %v1744, %v1742
    %v1767 = vpack.c.b16 %v1745, %v1743
    %v1768 = vpack.c.b16 %v1748, %v1746
    %v1769 = vpack.c.b16 %v1749, %v1747
    %v1770 = vpack.c.b16 %v1752, %v1750
    %v1771 = vpack.c.b16 %v1753, %v1751
    %v1772 = vpack.c.b16 %v1756, %v1754
    %v1773 = vpack.c.b16 %v1757, %v1755
    %v1822 = vunpack.c.l.b16 %v1678
    %v1823 = vunpack.c.h.b16 %v1678
    %v1824 = vunpack.c.l.b16 %v1679
    %v1825 = vunpack.c.h.b16 %v1679
    %v1826 = vunpack.c.l.b16 %v1680
    %v1827 = vunpack.c.h.b16 %v1680
    %v1828 = vunpack.c.l.b16 %v1681
    %v1829 = vunpack.c.h.b16 %v1681
    %v1830 = vunpack.c.l.b16 %v1682
    %v1831 = vunpack.c.h.b16 %v1682
    %v1832 = vunpack.c.l.b16 %v1683
    %v1833 = vunpack.c.h.b16 %v1683
    %v1834 = vunpack.c.l.b16 %v1684
    %v1835 = vunpack.c.h.b16 %v1684
    %v1836 = vunpack.c.l.b16 %v1685
    %v1837 = vunpack.c.h.b16 %v1685
    %v1838 = vunpack.c.l.b16 %v1686
    %v1839 = vunpack.c.h.b16 %v1686
    %v1840 = vunpack.c.l.b16 %v1687
    %v1841 = vunpack.c.h.b16 %v1687
    %v1842 = vunpack.c.l.b16 %v1688
    %v1843 = vunpack.c.h.b16 %v1688
    %v1844 = vunpack.c.l.b16 %v1689
    %v1845 = vunpack.c.h.b16 %v1689
    %v1846 = vunpack.c.l.b16 %v1690
    %v1847 = vunpack.c.h.b16 %v1690
    %v1848 = vunpack.c.l.b16 %v1691
    %v1849 = vunpack.c.h.b16 %v1691
    %v1850 = vunpack.c.l.b16 %v1692
    %v1851 = vunpack.c.h.b16 %v1692
    %v1852 = vunpack.c.l.b16 %v1693
    %v1853 = vunpack.c.h.b16 %v1693
    %v1854 = vunpack.c.l.b16 %v1694
    %v1855 = vunpack.c.h.b16 %v1694
    %v1856 = vunpack.c.l.b16 %v1695
    %v1857 = vunpack.c.h.b16 %v1695
    %v1858 = vunpack.c.l.b16 %v1696
    %v1859 = vunpack.c.h.b16 %v1696
    %v1860 = vunpack.c.l.b16 %v1697
    %v1861 = vunpack.c.h.b16 %v1697
    %v1862 = vunpack.c.l.b16 %v1698
    %v1863 = vunpack.c.h.b16 %v1698
    %v1864 = vunpack.c.l.b16 %v1699
    %v1865 = vunpack.c.h.b16 %v1699
    %v1866 = vunpack.c.l.b16 %v1700
    %v1867 = vunpack.c.h.b16 %v1700
    %v1868 = vunpack.c.l.b16 %v1701
    %v1869 = vunpack.c.h.b16 %v1701
    %v1870 = vunpack.c.l.b16 %v1702
    %v1871 = vunpack.c.h.b16 %v1702
    %v1872 = vunpack.c.l.b16 %v1703
    %v1873 = vunpack.c.h.b16 %v1703
    %v1874 = vunpack.c.l.b16 %v1704
    %v1875 = vunpack.c.h.b16 %v1704
    %v1876 = vunpack.c.l.b16 %v1705
    %v1877 = vunpack.c.h.b16 %v1705
    %v1878 = vunpack.c.l.b16 %v1706
    %v1879 = vunpack.c.h.b16 %v1706
    %v1880 = vunpack.c.l.b16 %v1707
    %v1881 = vunpack.c.h.b16 %v1707
    %v1882 = vunpack.c.l.b16 %v1708
    %v1883 = vunpack.c.h.b16 %v1708
    %v1884 = vunpack.c.l.b16 %v1709
    %v1885 = vunpack.c.h.b16 %v1709
    %v1886 = vpack.c.b16 %v1824, %v1822
    %v1887 = vpack.c.b16 %v1825, %v1823
    %v1888 = vpack.c.b16 %v1828, %v1826
    %v1889 = vpack.c.b16 %v1829, %v1827
    %v1890 = vpack.c.b16 %v1832, %v1830
    %v1891 = vpack.c.b16 %v1833, %v1831
    %v1892 = vpack.c.b16 %v1836, %v1834
    %v1893 = vpack.c.b16 %v1837, %v1835
    %v1894 = vpack.c.b16 %v1840, %v1838
    %v1895 = vpack.c.b16 %v1841, %v1839
    %v1896 = vpack.c.b16 %v1844, %v1842
    %v1897 = vpack.c.b16 %v1845, %v1843
    %v1898 = vpack.c.b16 %v1848, %v1846
    %v1899 = vpack.c.b16 %v1849, %v1847
    %v1900 = vpack.c.b16 %v1852, %v1850
    %v1901 = vpack.c.b16 %v1853, %v1851
    %v1902 = vpack.c.b16 %v1856, %v1854
    %v1903 = vpack.c.b16 %v1857, %v1855
    %v1904 = vpack.c.b16 %v1860, %v1858
    %v1905 = vpack.c.b16 %v1861, %v1859
    %v1906 = vpack.c.b16 %v1864, %v1862
    %v1907 = vpack.c.b16 %v1865, %v1863
    %v1908 = vpack.c.b16 %v1868, %v1866
    %v1909 = vpack.c.b16 %v1869, %v1867
    %v1910 = vpack.c.b16 %v1872, %v1870
    %v1911 = vpack.c.b16 %v1873, %v1871
    %v1912 = vpack.c.b16 %v1876, %v1874
    %v1913 = vpack.c.b16 %v1877, %v1875
    %v1914 = vpack.c.b16 %v1880, %v1878
    %v1915 = vpack.c.b16 %v1881, %v1879
    %v1916 = vpack.c.b16 %v1884, %v1882
    %v1917 = vpack.c.b16 %v1885, %v1883
    %1950 = vmatprep.subr.bf16.mxu0 %v1887
    %1951 = vmatpush1.bf16.msra.mxu0 %v1886
    %1952 = vmatprep.subr.bf16.mxu0 %v1889
    %1953 = vmatpush1.bf16.msra.mxu0 %v1888
    %1954 = vmatprep.subr.bf16.mxu0 %v1891
    %1955 = vmatpush1.bf16.msra.mxu0 %v1890
    %1956 = vmatprep.subr.bf16.mxu0 %v1893
    %1957 = vmatpush1.bf16.msra.mxu0 %v1892
    %1958 = vmatprep.subr.bf16.mxu0 %v1895
    %1959 = vmatpush1.bf16.msra.mxu0 %v1894
    %1960 = vmatprep.subr.bf16.mxu0 %v1897
    %1961 = vmatpush1.bf16.msra.mxu0 %v1896
    %1962 = vmatprep.subr.bf16.mxu0 %v1899
    %1963 = vmatpush1.bf16.msra.mxu0 %v1898
    %1964 = vmatprep.subr.bf16.mxu0 %v1901
    %1965 = vmatpush1.bf16.msra.mxu0 %v1900
    %1966 = vmatprep.subr.bf16.mxu0 %v1903
    %1967 = vmatpush1.bf16.msra.mxu0 %v1902
    %1968 = vmatprep.subr.bf16.mxu0 %v1905
    %1969 = vmatpush1.bf16.msra.mxu0 %v1904
    %1970 = vmatprep.subr.bf16.mxu0 %v1907
    %1971 = vmatpush1.bf16.msra.mxu0 %v1906
    %1972 = vmatprep.subr.bf16.mxu0 %v1909
    %1973 = vmatpush1.bf16.msra.mxu0 %v1908
    %1974 = vmatprep.subr.bf16.mxu0 %v1911
    %1975 = vmatpush1.bf16.msra.mxu0 %v1910
    %1976 = vmatprep.subr.bf16.mxu0 %v1913
    %1977 = vmatpush1.bf16.msra.mxu0 %v1912
    %1978 = vmatprep.subr.bf16.mxu0 %v1915
    %1979 = vmatpush1.bf16.msra.mxu0 %v1914
    %1980 = vmatprep.subr.bf16.mxu0 %v1917
    %1981 = vmatpush1.bf16.msra.mxu0 %v1916
    %1982 = vmatprep.mubr.bf16.mxu0 %v1759
    %1983 = vmatmul.mubr.bf16.gmra.mrb[0].mxu0 %v1758
    %v1984 = vpop.f32.mrb[0].mxu0
    %v1985 = vadd.f32 0.0, %v1984
    %v1986 = vpop.f32.mrb[0].mxu0
    %v1987 = vadd.f32 0.0, %v1986
    %v1988 = vpop.f32.mrb[0].mxu0
    %v1989 = vadd.f32 0.0, %v1988
    %v1990 = vpop.f32.mrb[0].mxu0
    %v1991 = vadd.f32 0.0, %v1990
    %1992 = vmatprep.mubr.bf16.mxu0 %v1761
    %1993 = vmatmul.mubr.bf16.gmra.mrb[0].mxu0 %v1760
    %v1994 = vpop.f32.mrb[0].mxu0
    %v1995 = vadd.f32 0.0, %v1994
    %v1996 = vpop.f32.mrb[0].mxu0
    %v1997 = vadd.f32 0.0, %v1996
    %v1998 = vpop.f32.mrb[0].mxu0
    %v1999 = vadd.f32 0.0, %v1998
    %v2000 = vpop.f32.mrb[0].mxu0
    %v2001 = vadd.f32 0.0, %v2000
    %2002 = vmatprep.mubr.bf16.mxu0 %v1763
    %2003 = vmatmul.mubr.bf16.gmra.mrb[0].mxu0 %v1762
    %v2004 = vpop.f32.mrb[0].mxu0
    %v2005 = vadd.f32 0.0, %v2004
    %v2006 = vpop.f32.mrb[0].mxu0
    %v2007 = vadd.f32 0.0, %v2006
    %v2008 = vpop.f32.mrb[0].mxu0
    %v2009 = vadd.f32 0.0, %v2008
    %v2010 = vpop.f32.mrb[0].mxu0
    %v2011 = vadd.f32 0.0, %v2010
    %2012 = vmatprep.mubr.bf16.mxu0 %v1765
    %2013 = vmatmul.mubr.bf16.gmra.mrb[0].mxu0 %v1764
    %v2014 = vpop.f32.mrb[0].mxu0
    %v2015 = vadd.f32 0.0, %v2014
    %v2016 = vpop.f32.mrb[0].mxu0
    %v2017 = vadd.f32 0.0, %v2016
    %v2018 = vpop.f32.mrb[0].mxu0
    %v2019 = vadd.f32 0.0, %v2018
    %v2020 = vpop.f32.mrb[0].mxu0
    %v2021 = vadd.f32 0.0, %v2020
    %2022 = vmatprep.mubr.bf16.mxu0 %v1767
    %2023 = vmatmul.mubr.bf16.gmra.mrb[0].mxu0 %v1766
    %v2024 = vpop.f32.mrb[0].mxu0
    %v2025 = vadd.f32 0.0, %v2024
    %v2026 = vpop.f32.mrb[0].mxu0
    %v2027 = vadd.f32 0.0, %v2026
    %v2028 = vpop.f32.mrb[0].mxu0
    %v2029 = vadd.f32 0.0, %v2028
    %v2030 = vpop.f32.mrb[0].mxu0
    %v2031 = vadd.f32 0.0, %v2030
    %2032 = vmatprep.mubr.bf16.mxu0 %v1769
    %2033 = vmatmul.mubr.bf16.gmra.mrb[0].mxu0 %v1768
    %v2034 = vpop.f32.mrb[0].mxu0
    %v2035 = vadd.f32 0.0, %v2034
    %v2036 = vpop.f32.mrb[0].mxu0
    %v2037 = vadd.f32 0.0, %v2036
    %v2038 = vpop.f32.mrb[0].mxu0
    %v2039 = vadd.f32 0.0, %v2038
    %v2040 = vpop.f32.mrb[0].mxu0
    %v2041 = vadd.f32 0.0, %v2040
    %2042 = vmatprep.mubr.bf16.mxu0 %v1771
    %2043 = vmatmul.mubr.bf16.gmra.mrb[0].mxu0 %v1770
    %v2044 = vpop.f32.mrb[0].mxu0
    %v2045 = vadd.f32 0.0, %v2044
    %v2046 = vpop.f32.mrb[0].mxu0
    %v2047 = vadd.f32 0.0, %v2046
    %v2048 = vpop.f32.mrb[0].mxu0
    %v2049 = vadd.f32 0.0, %v2048
    %v2050 = vpop.f32.mrb[0].mxu0
    %v2051 = vadd.f32 0.0, %v2050
    %2052 = vmatprep.mubr.bf16.mxu0 %v1773
    %2053 = vmatmul.mubr.bf16.gmra.mrb[0].mxu0 %v1772
    %v2054 = vpop.f32.mrb[0].mxu0
    %v2055 = vadd.f32 0.0, %v2054
    %v2056 = vpop.f32.mrb[0].mxu0
    %v2057 = vadd.f32 0.0, %v2056
    %v2058 = vpop.f32.mrb[0].mxu0
    %v2059 = vadd.f32 0.0, %v2058
    %v2060 = vpop.f32.mrb[0].mxu0
    %v2061 = vadd.f32 0.0, %v2060
    %2062 = vdwg.mxu0
    %v2063 = vadd.f32 %v1599, %v1985
    %v2064 = vadd.f32 %v1601, %v1987
    %v2065 = vadd.f32 %v1603, %v1989
    %v2066 = vadd.f32 %v1605, %v1991
    %v2067 = vadd.f32 %v1609, %v1995
    %v2068 = vadd.f32 %v1611, %v1997
    %v2069 = vadd.f32 %v1613, %v1999
    %v2070 = vadd.f32 %v1615, %v2001
    %v2071 = vadd.f32 %v1619, %v2005
    %v2072 = vadd.f32 %v1621, %v2007
    %v2073 = vadd.f32 %v1623, %v2009
    %v2074 = vadd.f32 %v1625, %v2011
    %v2075 = vadd.f32 %v1629, %v2015
    %v2076 = vadd.f32 %v1631, %v2017
    %v2077 = vadd.f32 %v1633, %v2019
    %v2078 = vadd.f32 %v1635, %v2021
    %v2079 = vadd.f32 %v1639, %v2025
    %v2080 = vadd.f32 %v1641, %v2027
    %v2081 = vadd.f32 %v1643, %v2029
    %v2082 = vadd.f32 %v1645, %v2031
    %v2083 = vadd.f32 %v1649, %v2035
    %v2084 = vadd.f32 %v1651, %v2037
    %v2085 = vadd.f32 %v1653, %v2039
    %v2086 = vadd.f32 %v1655, %v2041
    %v2087 = vadd.f32 %v1659, %v2045
    %v2088 = vadd.f32 %v1661, %v2047
    %v2089 = vadd.f32 %v1663, %v2049
    %v2090 = vadd.f32 %v1665, %v2051
    %v2091 = vadd.f32 %v1669, %v2055
    %v2092 = vadd.f32 %v1671, %v2057
    %v2093 = vadd.f32 %v1673, %v2059
    %v2094 = vadd.f32 %v1675, %v2061
    %v2095 = vld [vmem:[#allocation2 + $0x10] sm:$0xff]
    %v2096 = vld [vmem:[#allocation2 + $0x18] sm:$0xff]
    %v2097 = vld [vmem:[#allocation2 + $0x20] sm:$0xff]
    %v2098 = vld [vmem:[#allocation2 + $0x28] sm:$0xff]
    %v2099 = vld [vmem:[#allocation2 + $0x30] sm:$0xff]
    %v2100 = vld [vmem:[#allocation2 + $0x38] sm:$0xff]
    %v2101 = vld [vmem:[#allocation2 + $0x40] sm:$0xff]
    %v2102 = vld [vmem:[#allocation2 + $0x48] sm:$0xff]
    %v2103 = vld [vmem:[#allocation2 + $0x50] sm:$0xff]
    %v2104 = vld [vmem:[#allocation2 + $0x58] sm:$0xff]
    %v2105 = vld [vmem:[#allocation2 + $0x60] sm:$0xff]
    %v2106 = vld [vmem:[#allocation2 + $0x68] sm:$0xff]
    %v2107 = vld [vmem:[#allocation2 + $0x70] sm:$0xff]
    %v2108 = vld [vmem:[#allocation2 + $0x78] sm:$0xff]
    %v2109 = vld [vmem:[#allocation2 + $0x80] sm:$0xff]
    %v2110 = vld [vmem:[#allocation2 + $0x88] sm:$0xff]
    %v2111 = vld [vmem:[#allocation2 + $0x90] sm:$0x11]
    %vm2112 = vcmp.lt.s32.totalorder %v82, 15
    %vm2113 = vcmp.lt.s32.totalorder %v83, 15
    %vm2114 = vcmp.lt.s32.totalorder %v84, 15
    %vm2115 = vcmp.lt.s32.totalorder %v85, 15
    %vm2116 = vcmp.lt.s32.totalorder %v86, 15
    %vm2117 = vcmp.lt.s32.totalorder %v87, 15
    %vm2118 = vcmp.lt.s32.totalorder %v88, 15
    %vm2119 = vcmp.lt.s32.totalorder %v89, 15
    %vm2120 = vcmp.lt.s32.totalorder %v90, 15
    %vm2121 = vcmp.lt.s32.totalorder %v91, 15
    %vm2122 = vcmp.lt.s32.totalorder %v92, 15
    %vm2123 = vcmp.lt.s32.totalorder %v93, 15
    %vm2124 = vcmp.lt.s32.totalorder %v94, 15
    %vm2125 = vcmp.lt.s32.totalorder %v95, 15
    %vm2126 = vcmp.lt.s32.totalorder %v96, 15
    %vm2127 = vcmp.lt.s32.totalorder %v97, 15
    %v2128 = vsel %vm2112, 1, 0
    %v2129 = vsel %vm2113, 1, 0
    %v2130 = vsel %vm2114, 1, 0
    %v2131 = vsel %vm2115, 1, 0
    %v2132 = vsel %vm2116, 1, 0
    %v2133 = vsel %vm2117, 1, 0
    %v2134 = vsel %vm2118, 1, 0
    %v2135 = vsel %vm2119, 1, 0
    %v2136 = vsel %vm2120, 1, 0
    %v2137 = vsel %vm2121, 1, 0
    %v2138 = vsel %vm2122, 1, 0
    %v2139 = vsel %vm2123, 1, 0
    %v2140 = vsel %vm2124, 1, 0
    %v2141 = vsel %vm2125, 1, 0
    %v2142 = vsel %vm2126, 1, 0
    %v2143 = vsel %vm2127, 1, 0
    %vm2144 = vcmp.eq.s32.totalorder %v2128, 1
    %vm2145 = vcmp.eq.s32.totalorder %v2129, 1
    %vm2146 = vcmp.eq.s32.totalorder %v2130, 1
    %vm2147 = vcmp.eq.s32.totalorder %v2131, 1
    %vm2148 = vcmp.eq.s32.totalorder %v2132, 1
    %vm2149 = vcmp.eq.s32.totalorder %v2133, 1
    %vm2150 = vcmp.eq.s32.totalorder %v2134, 1
    %vm2151 = vcmp.eq.s32.totalorder %v2135, 1
    %vm2152 = vcmp.eq.s32.totalorder %v2136, 1
    %vm2153 = vcmp.eq.s32.totalorder %v2137, 1
    %vm2154 = vcmp.eq.s32.totalorder %v2138, 1
    %vm2155 = vcmp.eq.s32.totalorder %v2139, 1
    %vm2156 = vcmp.eq.s32.totalorder %v2140, 1
    %vm2157 = vcmp.eq.s32.totalorder %v2141, 1
    %vm2158 = vcmp.eq.s32.totalorder %v2142, 1
    %vm2159 = vcmp.eq.s32.totalorder %v2143, 1
    %vm2160 = vmpackc.low %vm2144, %vm2144
    %vm2161 = vmpackc.low %vm2145, %vm2145
    %vm2162 = vmpackc.low %vm2146, %vm2146
    %vm2163 = vmpackc.low %vm2147, %vm2147
    %vm2164 = vmpackc.low %vm2148, %vm2148
    %vm2165 = vmpackc.low %vm2149, %vm2149
    %vm2166 = vmpackc.low %vm2150, %vm2150
    %vm2167 = vmpackc.low %vm2151, %vm2151
    %vm2168 = vmpackc.low %vm2152, %vm2152
    %vm2169 = vmpackc.low %vm2153, %vm2153
    %vm2170 = vmpackc.low %vm2154, %vm2154
    %vm2171 = vmpackc.low %vm2155, %vm2155
    %vm2172 = vmpackc.low %vm2156, %vm2156
    %vm2173 = vmpackc.low %vm2157, %vm2157
    %vm2174 = vmpackc.low %vm2158, %vm2158
    %vm2175 = vmpackc.low %vm2159, %vm2159
    %v2176 = vsel %vm2160, 65537, 0
    %v2177 = vsel %vm2161, 65537, 0
    %v2178 = vsel %vm2162, 65537, 0
    %v2179 = vsel %vm2163, 65537, 0
    %v2180 = vsel %vm2164, 65537, 0
    %v2181 = vsel %vm2165, 65537, 0
    %v2182 = vsel %vm2166, 65537, 0
    %v2183 = vsel %vm2167, 65537, 0
    %v2184 = vsel %vm2168, 65537, 0
    %v2185 = vsel %vm2169, 65537, 0
    %v2186 = vsel %vm2170, 65537, 0
    %v2187 = vsel %vm2171, 65537, 0
    %v2188 = vsel %vm2172, 65537, 0
    %v2189 = vsel %vm2173, 65537, 0
    %v2190 = vsel %vm2174, 65537, 0
    %v2191 = vsel %vm2175, 65537, 0
    %vm2192 = vsmask.f32 256
    %vm2193 = vsmask.f32 4368
    %vm2194 = vmor %vm2192, %vm2193
    %v2196 = vshrl.u32 %v2176, 16
    %v2198 = vrot.slane %v2196, 7
    %v2199 = vshll.u32 %v2176, 16
    %v2201 = vor.u32 %v2198, %v2199
    %v2202 = vrot.slane %v2198, 4
    %v2204 = vshrl.u32 %v2177, 16
    %v2206 = vrot.slane %v2204, 7
    %v2207 = vshll.u32 %v2177, 16
    %v2209 = vor.u32 %v2206, %v2207
    %v2210 = vsel %vm2194, %v2202, %v2209
    %v2211 = vrot.slane %v2206, 4
    %v2213 = vshrl.u32 %v2178, 16
    %v2215 = vrot.slane %v2213, 7
    %v2216 = vshll.u32 %v2178, 16
    %v2218 = vor.u32 %v2215, %v2216
    %v2219 = vsel %vm2194, %v2211, %v2218
    %v2220 = vrot.slane %v2215, 4
    %v2222 = vshrl.u32 %v2179, 16
    %v2224 = vrot.slane %v2222, 7
    %v2225 = vshll.u32 %v2179, 16
    %v2227 = vor.u32 %v2224, %v2225
    %v2228 = vsel %vm2194, %v2220, %v2227
    %v2229 = vrot.slane %v2224, 4
    %v2231 = vshrl.u32 %v2180, 16
    %v2233 = vrot.slane %v2231, 7
    %v2234 = vshll.u32 %v2180, 16
    %v2236 = vor.u32 %v2233, %v2234
    %v2237 = vsel %vm2194, %v2229, %v2236
    %v2238 = vrot.slane %v2233, 4
    %v2240 = vshrl.u32 %v2181, 16
    %v2242 = vrot.slane %v2240, 7
    %v2243 = vshll.u32 %v2181, 16
    %v2245 = vor.u32 %v2242, %v2243
    %v2246 = vsel %vm2194, %v2238, %v2245
    %v2247 = vrot.slane %v2242, 4
    %v2249 = vshrl.u32 %v2182, 16
    %v2251 = vrot.slane %v2249, 7
    %v2252 = vshll.u32 %v2182, 16
    %v2254 = vor.u32 %v2251, %v2252
    %v2255 = vsel %vm2194, %v2247, %v2254
    %v2256 = vrot.slane %v2251, 4
    %v2258 = vshrl.u32 %v2183, 16
    %v2260 = vrot.slane %v2258, 7
    %v2261 = vshll.u32 %v2183, 16
    %v2263 = vor.u32 %v2260, %v2261
    %v2264 = vsel %vm2194, %v2256, %v2263
    %v2265 = vrot.slane %v2260, 4
    %v2267 = vshrl.u32 %v2184, 16
    %v2269 = vrot.slane %v2267, 7
    %v2270 = vshll.u32 %v2184, 16
    %v2272 = vor.u32 %v2269, %v2270
    %v2273 = vsel %vm2194, %v2265, %v2272
    %v2274 = vrot.slane %v2269, 4
    %v2276 = vshrl.u32 %v2185, 16
    %v2278 = vrot.slane %v2276, 7
    %v2279 = vshll.u32 %v2185, 16
    %v2281 = vor.u32 %v2278, %v2279
    %v2282 = vsel %vm2194, %v2274, %v2281
    %v2283 = vrot.slane %v2278, 4
    %v2285 = vshrl.u32 %v2186, 16
    %v2287 = vrot.slane %v2285, 7
    %v2288 = vshll.u32 %v2186, 16
    %v2290 = vor.u32 %v2287, %v2288
    %v2291 = vsel %vm2194, %v2283, %v2290
    %v2292 = vrot.slane %v2287, 4
    %v2294 = vshrl.u32 %v2187, 16
    %v2296 = vrot.slane %v2294, 7
    %v2297 = vshll.u32 %v2187, 16
    %v2299 = vor.u32 %v2296, %v2297
    %v2300 = vsel %vm2194, %v2292, %v2299
    %v2301 = vrot.slane %v2296, 4
    %v2303 = vshrl.u32 %v2188, 16
    %v2305 = vrot.slane %v2303, 7
    %v2306 = vshll.u32 %v2188, 16
    %v2308 = vor.u32 %v2305, %v2306
    %v2309 = vsel %vm2194, %v2301, %v2308
    %v2310 = vrot.slane %v2305, 4
    %v2312 = vshrl.u32 %v2189, 16
    %v2314 = vrot.slane %v2312, 7
    %v2315 = vshll.u32 %v2189, 16
    %v2317 = vor.u32 %v2314, %v2315
    %v2318 = vsel %vm2194, %v2310, %v2317
    %v2319 = vrot.slane %v2314, 4
    %v2321 = vshrl.u32 %v2190, 16
    %v2323 = vrot.slane %v2321, 7
    %v2324 = vshll.u32 %v2190, 16
    %v2326 = vor.u32 %v2323, %v2324
    %v2327 = vsel %vm2194, %v2319, %v2326
    %v2328 = vrot.slane %v2323, 4
    %v2330 = vshrl.u32 %v2191, 16
    %v2332 = vrot.slane %v2330, 7
    %v2333 = vshll.u32 %v2191, 16
    %v2335 = vor.u32 %v2332, %v2333
    %v2336 = vsel %vm2194, %v2328, %v2335
    %v2337 = vrot.slane %v2332, 4
    %vm2338 = vcmp.ne.s16.totalorder %v2201, 0
    %vm2339 = vcmp.ne.s16.totalorder %v2210, 0
    %vm2340 = vcmp.ne.s16.totalorder %v2219, 0
    %vm2341 = vcmp.ne.s16.totalorder %v2228, 0
    %vm2342 = vcmp.ne.s16.totalorder %v2237, 0
    %vm2343 = vcmp.ne.s16.totalorder %v2246, 0
    %vm2344 = vcmp.ne.s16.totalorder %v2255, 0
    %vm2345 = vcmp.ne.s16.totalorder %v2264, 0
    %vm2346 = vcmp.ne.s16.totalorder %v2273, 0
    %vm2347 = vcmp.ne.s16.totalorder %v2282, 0
    %vm2348 = vcmp.ne.s16.totalorder %v2291, 0
    %vm2349 = vcmp.ne.s16.totalorder %v2300, 0
    %vm2350 = vcmp.ne.s16.totalorder %v2309, 0
    %vm2351 = vcmp.ne.s16.totalorder %v2318, 0
    %vm2352 = vcmp.ne.s16.totalorder %v2327, 0
    %vm2353 = vcmp.ne.s16.totalorder %v2336, 0
    %vm2354 = vcmp.ne.s16.totalorder %v2337, 0
    %v2355 = vsel %vm2338, %v2095, 0
    %v2356 = vsel %vm2339, %v2096, 0
    %v2357 = vsel %vm2340, %v2097, 0
    %v2358 = vsel %vm2341, %v2098, 0
    %v2359 = vsel %vm2342, %v2099, 0
    %v2360 = vsel %vm2343, %v2100, 0
    %v2361 = vsel %vm2344, %v2101, 0
    %v2362 = vsel %vm2345, %v2102, 0
    %v2363 = vsel %vm2346, %v2103, 0
    %v2364 = vsel %vm2347, %v2104, 0
    %v2365 = vsel %vm2348, %v2105, 0
    %v2366 = vsel %vm2349, %v2106, 0
    %v2367 = vsel %vm2350, %v2107, 0
    %v2368 = vsel %vm2351, %v2108, 0
    %v2369 = vsel %vm2352, %v2109, 0
    %v2370 = vsel %vm2353, %v2110, 0
    %v2371 = vsel %vm2354, %v2111, 0
    %s2372 = scalar_lea.vmem [#allocation6], 768
    %v2373 = vld [vmem:[%s2372] sm:$0xff]
    %v2374 = vld [vmem:[%s2372 + $0x8] sm:$0xff]
    %v2375 = vld [vmem:[%s2372 + $0x10] sm:$0xff]
    %v2376 = vld [vmem:[%s2372 + $0x18] sm:$0xff]
    %v2377 = vld [vmem:[%s2372 + $0x20] sm:$0xff]
    %v2378 = vld [vmem:[%s2372 + $0x28] sm:$0xff]
    %v2379 = vld [vmem:[%s2372 + $0x30] sm:$0xff]
    %v2380 = vld [vmem:[%s2372 + $0x38] sm:$0xff]
    %v2381 = vld [vmem:[%s2372 + $0x40] sm:$0xff]
    %v2382 = vld [vmem:[%s2372 + $0x48] sm:$0xff]
    %v2383 = vld [vmem:[%s2372 + $0x50] sm:$0xff]
    %v2384 = vld [vmem:[%s2372 + $0x58] sm:$0xff]
    %v2385 = vld [vmem:[%s2372 + $0x60] sm:$0xff]
    %v2386 = vld [vmem:[%s2372 + $0x68] sm:$0xff]
    %v2387 = vld [vmem:[%s2372 + $0x70] sm:$0xff]
    %v2388 = vld [vmem:[%s2372 + $0x78] sm:$0xff]
    %v2389 = vld [vmem:[%s2372 + $0x80] sm:$0xff]
    %v2390 = vld [vmem:[%s2372 + $0x88] sm:$0xff]
    %v2391 = vld [vmem:[%s2372 + $0x90] sm:$0xff]
    %v2392 = vld [vmem:[%s2372 + $0x98] sm:$0xff]
    %v2393 = vld [vmem:[%s2372 + $0xa0] sm:$0xff]
    %v2394 = vld [vmem:[%s2372 + $0xa8] sm:$0xff]
    %v2395 = vld [vmem:[%s2372 + $0xb0] sm:$0xff]
    %v2396 = vld [vmem:[%s2372 + $0xb8] sm:$0xff]
    %v2397 = vld [vmem:[%s2372 + $0xc0] sm:$0xff]
    %v2398 = vld [vmem:[%s2372 + $0xc8] sm:$0xff]
    %v2399 = vld [vmem:[%s2372 + $0xd0] sm:$0xff]
    %v2400 = vld [vmem:[%s2372 + $0xd8] sm:$0xff]
    %v2401 = vld [vmem:[%s2372 + $0xe0] sm:$0xff]
    %v2402 = vld [vmem:[%s2372 + $0xe8] sm:$0xff]
    %v2403 = vld [vmem:[%s2372 + $0xf0] sm:$0xff]
    %v2404 = vld [vmem:[%s2372 + $0xf8] sm:$0xff]
    %v2422 = vunpack.c.l.b16 %v2355
    %v2423 = vunpack.c.h.b16 %v2355
    %v2424 = vunpack.c.l.b16 %v2356
    %v2425 = vunpack.c.h.b16 %v2356
    %v2426 = vunpack.c.l.b16 %v2357
    %v2427 = vunpack.c.h.b16 %v2357
    %v2428 = vunpack.c.l.b16 %v2358
    %v2429 = vunpack.c.h.b16 %v2358
    %v2430 = vunpack.c.l.b16 %v2359
    %v2431 = vunpack.c.h.b16 %v2359
    %v2432 = vunpack.c.l.b16 %v2360
    %v2433 = vunpack.c.h.b16 %v2360
    %v2434 = vunpack.c.l.b16 %v2361
    %v2435 = vunpack.c.h.b16 %v2361
    %v2436 = vunpack.c.l.b16 %v2362
    %v2437 = vunpack.c.h.b16 %v2362
    %v2438 = vunpack.c.l.b16 %v2363
    %v2439 = vunpack.c.h.b16 %v2363
    %v2440 = vunpack.c.l.b16 %v2364
    %v2441 = vunpack.c.h.b16 %v2364
    %v2442 = vunpack.c.l.b16 %v2365
    %v2443 = vunpack.c.h.b16 %v2365
    %v2444 = vunpack.c.l.b16 %v2366
    %v2445 = vunpack.c.h.b16 %v2366
    %v2446 = vunpack.c.l.b16 %v2367
    %v2447 = vunpack.c.h.b16 %v2367
    %v2448 = vunpack.c.l.b16 %v2368
    %v2449 = vunpack.c.h.b16 %v2368
    %v2450 = vunpack.c.l.b16 %v2369
    %v2451 = vunpack.c.h.b16 %v2369
    %v2452 = vunpack.c.l.b16 %v2370
    %v2453 = vunpack.c.h.b16 %v2370
    %v2454 = vunpack.c.l.b16 %v2371
    %v2455 = vunpack.c.h.b16 %v2371
    %v2456 = vpack.c.b16 %v2424, %v2422
    %v2457 = vpack.c.b16 %v2425, %v2423
    %v2458 = vpack.c.b16 %v2428, %v2426
    %v2459 = vpack.c.b16 %v2429, %v2427
    %v2460 = vpack.c.b16 %v2432, %v2430
    %v2461 = vpack.c.b16 %v2433, %v2431
    %v2462 = vpack.c.b16 %v2436, %v2434
    %v2463 = vpack.c.b16 %v2437, %v2435
    %v2464 = vpack.c.b16 %v2440, %v2438
    %v2465 = vpack.c.b16 %v2441, %v2439
    %v2466 = vpack.c.b16 %v2444, %v2442
    %v2467 = vpack.c.b16 %v2445, %v2443
    %v2468 = vpack.c.b16 %v2448, %v2446
    %v2469 = vpack.c.b16 %v2449, %v2447
    %v2470 = vpack.c.b16 %v2452, %v2450
    %v2471 = vpack.c.b16 %v2453, %v2451
    %v2472 = vpack.c.b16 %v2454, %v2454
    %v2473 = vpack.c.b16 %v2455, %v2455
    %vm2474 = vsmask.f32 7424
    %v2476 = vshrl.u32 %v2456, 16
    %v2478 = vshll.u32 %v2456, 16
    %v2480 = vrot.slane %v2478, 1
    %v2481 = vor.u32 %v2476, %v2480
    %v2483 = vshll.u32 %v2458, 16
    %v2485 = vrot.slane %v2483, 1
    %v2486 = vsel %vm2474, %v2481, %v2485
    %v2488 = vshrl.u32 %v2457, 16
    %v2490 = vshll.u32 %v2457, 16
    %v2492 = vrot.slane %v2490, 1
    %v2493 = vor.u32 %v2488, %v2492
    %v2495 = vshll.u32 %v2459, 16
    %v2497 = vrot.slane %v2495, 1
    %v2498 = vsel %vm2474, %v2493, %v2497
    %v2499 = vshrl.u32 %v2458, 16
    %v2501 = vor.u32 %v2499, %v2485
    %v2503 = vshll.u32 %v2460, 16
    %v2505 = vrot.slane %v2503, 1
    %v2506 = vsel %vm2474, %v2501, %v2505
    %v2507 = vshrl.u32 %v2459, 16
    %v2509 = vor.u32 %v2507, %v2497
    %v2511 = vshll.u32 %v2461, 16
    %v2513 = vrot.slane %v2511, 1
    %v2514 = vsel %vm2474, %v2509, %v2513
    %v2515 = vshrl.u32 %v2460, 16
    %v2517 = vor.u32 %v2515, %v2505
    %v2519 = vshll.u32 %v2462, 16
    %v2521 = vrot.slane %v2519, 1
    %v2522 = vsel %vm2474, %v2517, %v2521
    %v2523 = vshrl.u32 %v2461, 16
    %v2525 = vor.u32 %v2523, %v2513
    %v2527 = vshll.u32 %v2463, 16
    %v2529 = vrot.slane %v2527, 1
    %v2530 = vsel %vm2474, %v2525, %v2529
    %v2531 = vshrl.u32 %v2462, 16
    %v2533 = vor.u32 %v2531, %v2521
    %v2535 = vshll.u32 %v2464, 16
    %v2537 = vrot.slane %v2535, 1
    %v2538 = vsel %vm2474, %v2533, %v2537
    %v2539 = vshrl.u32 %v2463, 16
    %v2541 = vor.u32 %v2539, %v2529
    %v2543 = vshll.u32 %v2465, 16
    %v2545 = vrot.slane %v2543, 1
    %v2546 = vsel %vm2474, %v2541, %v2545
    %v2547 = vshrl.u32 %v2464, 16
    %v2549 = vor.u32 %v2547, %v2537
    %v2551 = vshll.u32 %v2466, 16
    %v2553 = vrot.slane %v2551, 1
    %v2554 = vsel %vm2474, %v2549, %v2553
    %v2555 = vshrl.u32 %v2465, 16
    %v2557 = vor.u32 %v2555, %v2545
    %v2559 = vshll.u32 %v2467, 16
    %v2561 = vrot.slane %v2559, 1
    %v2562 = vsel %vm2474, %v2557, %v2561
    %v2563 = vshrl.u32 %v2466, 16
    %v2565 = vor.u32 %v2563, %v2553
    %v2567 = vshll.u32 %v2468, 16
    %v2569 = vrot.slane %v2567, 1
    %v2570 = vsel %vm2474, %v2565, %v2569
    %v2571 = vshrl.u32 %v2467, 16
    %v2573 = vor.u32 %v2571, %v2561
    %v2575 = vshll.u32 %v2469, 16
    %v2577 = vrot.slane %v2575, 1
    %v2578 = vsel %vm2474, %v2573, %v2577
    %v2579 = vshrl.u32 %v2468, 16
    %v2581 = vor.u32 %v2579, %v2569
    %v2583 = vshll.u32 %v2470, 16
    %v2585 = vrot.slane %v2583, 1
    %v2586 = vsel %vm2474, %v2581, %v2585
    %v2587 = vshrl.u32 %v2469, 16
    %v2589 = vor.u32 %v2587, %v2577
    %v2591 = vshll.u32 %v2471, 16
    %v2593 = vrot.slane %v2591, 1
    %v2594 = vsel %vm2474, %v2589, %v2593
    %v2595 = vshrl.u32 %v2470, 16
    %v2597 = vor.u32 %v2595, %v2585
    %v2599 = vshll.u32 %v2472, 16
    %v2601 = vrot.slane %v2599, 1
    %v2602 = vsel %vm2474, %v2597, %v2601
    %v2603 = vshrl.u32 %v2471, 16
    %v2605 = vor.u32 %v2603, %v2593
    %v2607 = vshll.u32 %v2473, 16
    %v2609 = vrot.slane %v2607, 1
    %v2610 = vsel %vm2474, %v2605, %v2609
    %v2659 = vunpack.c.l.b16 %v2373
    %v2660 = vunpack.c.h.b16 %v2373
    %v2661 = vunpack.c.l.b16 %v2374
    %v2662 = vunpack.c.h.b16 %v2374
    %v2663 = vunpack.c.l.b16 %v2375
    %v2664 = vunpack.c.h.b16 %v2375
    %v2665 = vunpack.c.l.b16 %v2376
    %v2666 = vunpack.c.h.b16 %v2376
    %v2667 = vunpack.c.l.b16 %v2377
    %v2668 = vunpack.c.h.b16 %v2377
    %v2669 = vunpack.c.l.b16 %v2378
    %v2670 = vunpack.c.h.b16 %v2378
    %v2671 = vunpack.c.l.b16 %v2379
    %v2672 = vunpack.c.h.b16 %v2379
    %v2673 = vunpack.c.l.b16 %v2380
    %v2674 = vunpack.c.h.b16 %v2380
    %v2675 = vunpack.c.l.b16 %v2381
    %v2676 = vunpack.c.h.b16 %v2381
    %v2677 = vunpack.c.l.b16 %v2382
    %v2678 = vunpack.c.h.b16 %v2382
    %v2679 = vunpack.c.l.b16 %v2383
    %v2680 = vunpack.c.h.b16 %v2383
    %v2681 = vunpack.c.l.b16 %v2384
    %v2682 = vunpack.c.h.b16 %v2384
    %v2683 = vunpack.c.l.b16 %v2385
    %v2684 = vunpack.c.h.b16 %v2385
    %v2685 = vunpack.c.l.b16 %v2386
    %v2686 = vunpack.c.h.b16 %v2386
    %v2687 = vunpack.c.l.b16 %v2387
    %v2688 = vunpack.c.h.b16 %v2387
    %v2689 = vunpack.c.l.b16 %v2388
    %v2690 = vunpack.c.h.b16 %v2388
    %v2691 = vunpack.c.l.b16 %v2389
    %v2692 = vunpack.c.h.b16 %v2389
    %v2693 = vunpack.c.l.b16 %v2390
    %v2694 = vunpack.c.h.b16 %v2390
    %v2695 = vunpack.c.l.b16 %v2391
    %v2696 = vunpack.c.h.b16 %v2391
    %v2697 = vunpack.c.l.b16 %v2392
    %v2698 = vunpack.c.h.b16 %v2392
    %v2699 = vunpack.c.l.b16 %v2393
    %v2700 = vunpack.c.h.b16 %v2393
    %v2701 = vunpack.c.l.b16 %v2394
    %v2702 = vunpack.c.h.b16 %v2394
    %v2703 = vunpack.c.l.b16 %v2395
    %v2704 = vunpack.c.h.b16 %v2395
    %v2705 = vunpack.c.l.b16 %v2396
    %v2706 = vunpack.c.h.b16 %v2396
    %v2707 = vunpack.c.l.b16 %v2397
    %v2708 = vunpack.c.h.b16 %v2397
    %v2709 = vunpack.c.l.b16 %v2398
    %v2710 = vunpack.c.h.b16 %v2398
    %v2711 = vunpack.c.l.b16 %v2399
    %v2712 = vunpack.c.h.b16 %v2399
    %v2713 = vunpack.c.l.b16 %v2400
    %v2714 = vunpack.c.h.b16 %v2400
    %v2715 = vunpack.c.l.b16 %v2401
    %v2716 = vunpack.c.h.b16 %v2401
    %v2717 = vunpack.c.l.b16 %v2402
    %v2718 = vunpack.c.h.b16 %v2402
    %v2719 = vunpack.c.l.b16 %v2403
    %v2720 = vunpack.c.h.b16 %v2403
    %v2721 = vunpack.c.l.b16 %v2404
    %v2722 = vunpack.c.h.b16 %v2404
    %v2723 = vpack.c.b16 %v2661, %v2659
    %v2724 = vpack.c.b16 %v2662, %v2660
    %v2725 = vpack.c.b16 %v2665, %v2663
    %v2726 = vpack.c.b16 %v2666, %v2664
    %v2727 = vpack.c.b16 %v2669, %v2667
    %v2728 = vpack.c.b16 %v2670, %v2668
    %v2729 = vpack.c.b16 %v2673, %v2671
    %v2730 = vpack.c.b16 %v2674, %v2672
    %v2731 = vpack.c.b16 %v2677, %v2675
    %v2732 = vpack.c.b16 %v2678, %v2676
    %v2733 = vpack.c.b16 %v2681, %v2679
    %v2734 = vpack.c.b16 %v2682, %v2680
    %v2735 = vpack.c.b16 %v2685, %v2683
    %v2736 = vpack.c.b16 %v2686, %v2684
    %v2737 = vpack.c.b16 %v2689, %v2687
    %v2738 = vpack.c.b16 %v2690, %v2688
    %v2739 = vpack.c.b16 %v2693, %v2691
    %v2740 = vpack.c.b16 %v2694, %v2692
    %v2741 = vpack.c.b16 %v2697, %v2695
    %v2742 = vpack.c.b16 %v2698, %v2696
    %v2743 = vpack.c.b16 %v2701, %v2699
    %v2744 = vpack.c.b16 %v2702, %v2700
    %v2745 = vpack.c.b16 %v2705, %v2703
    %v2746 = vpack.c.b16 %v2706, %v2704
    %v2747 = vpack.c.b16 %v2709, %v2707
    %v2748 = vpack.c.b16 %v2710, %v2708
    %v2749 = vpack.c.b16 %v2713, %v2711
    %v2750 = vpack.c.b16 %v2714, %v2712
    %v2751 = vpack.c.b16 %v2717, %v2715
    %v2752 = vpack.c.b16 %v2718, %v2716
    %v2753 = vpack.c.b16 %v2721, %v2719
    %v2754 = vpack.c.b16 %v2722, %v2720
    %2787 = vmatprep.subr.bf16.mxu0 %v2724
    %2788 = vmatpush1.bf16.msra.mxu0 %v2723
    %2789 = vmatprep.subr.bf16.mxu0 %v2726
    %2790 = vmatpush1.bf16.msra.mxu0 %v2725
    %2791 = vmatprep.subr.bf16.mxu0 %v2728
    %2792 = vmatpush1.bf16.msra.mxu0 %v2727
    %2793 = vmatprep.subr.bf16.mxu0 %v2730
    %2794 = vmatpush1.bf16.msra.mxu0 %v2729
    %2795 = vmatprep.subr.bf16.mxu0 %v2732
    %2796 = vmatpush1.bf16.msra.mxu0 %v2731
    %2797 = vmatprep.subr.bf16.mxu0 %v2734
    %2798 = vmatpush1.bf16.msra.mxu0 %v2733
    %2799 = vmatprep.subr.bf16.mxu0 %v2736
    %2800 = vmatpush1.bf16.msra.mxu0 %v2735
    %2801 = vmatprep.subr.bf16.mxu0 %v2738
    %2802 = vmatpush1.bf16.msra.mxu0 %v2737
    %2803 = vmatprep.subr.bf16.mxu0 %v2740
    %2804 = vmatpush1.bf16.msra.mxu0 %v2739
    %2805 = vmatprep.subr.bf16.mxu0 %v2742
    %2806 = vmatpush1.bf16.msra.mxu0 %v2741
    %2807 = vmatprep.subr.bf16.mxu0 %v2744
    %2808 = vmatpush1.bf16.msra.mxu0 %v2743
    %2809 = vmatprep.subr.bf16.mxu0 %v2746
    %2810 = vmatpush1.bf16.msra.mxu0 %v2745
    %2811 = vmatprep.subr.bf16.mxu0 %v2748
    %2812 = vmatpush1.bf16.msra.mxu0 %v2747
    %2813 = vmatprep.subr.bf16.mxu0 %v2750
    %2814 = vmatpush1.bf16.msra.mxu0 %v2749
    %2815 = vmatprep.subr.bf16.mxu0 %v2752
    %2816 = vmatpush1.bf16.msra.mxu0 %v2751
    %2817 = vmatprep.subr.bf16.mxu0 %v2754
    %2818 = vmatpush1.bf16.msra.mxu0 %v2753
    %2819 = vmatprep.mubr.bf16.mxu0 %v2498
    %2820 = vmatmul.mubr.bf16.gmra.mrb[0].mxu0 %v2486
    %v2821 = vpop.f32.mrb[0].mxu0
    %v2822 = vadd.f32 0.0, %v2821
    %v2823 = vpop.f32.mrb[0].mxu0
    %v2824 = vadd.f32 0.0, %v2823
    %v2825 = vpop.f32.mrb[0].mxu0
    %v2826 = vadd.f32 0.0, %v2825
    %v2827 = vpop.f32.mrb[0].mxu0
    %v2828 = vadd.f32 0.0, %v2827
    %2829 = vmatprep.mubr.bf16.mxu0 %v2514
    %2830 = vmatmul.mubr.bf16.gmra.mrb[0].mxu0 %v2506
    %v2831 = vpop.f32.mrb[0].mxu0
    %v2832 = vadd.f32 0.0, %v2831
    %v2833 = vpop.f32.mrb[0].mxu0
    %v2834 = vadd.f32 0.0, %v2833
    %v2835 = vpop.f32.mrb[0].mxu0
    %v2836 = vadd.f32 0.0, %v2835
    %v2837 = vpop.f32.mrb[0].mxu0
    %v2838 = vadd.f32 0.0, %v2837
    %2839 = vmatprep.mubr.bf16.mxu0 %v2530
    %2840 = vmatmul.mubr.bf16.gmra.mrb[0].mxu0 %v2522
    %v2841 = vpop.f32.mrb[0].mxu0
    %v2842 = vadd.f32 0.0, %v2841
    %v2843 = vpop.f32.mrb[0].mxu0
    %v2844 = vadd.f32 0.0, %v2843
    %v2845 = vpop.f32.mrb[0].mxu0
    %v2846 = vadd.f32 0.0, %v2845
    %v2847 = vpop.f32.mrb[0].mxu0
    %v2848 = vadd.f32 0.0, %v2847
    %2849 = vmatprep.mubr.bf16.mxu0 %v2546
    %2850 = vmatmul.mubr.bf16.gmra.mrb[0].mxu0 %v2538
    %v2851 = vpop.f32.mrb[0].mxu0
    %v2852 = vadd.f32 0.0, %v2851
    %v2853 = vpop.f32.mrb[0].mxu0
    %v2854 = vadd.f32 0.0, %v2853
    %v2855 = vpop.f32.mrb[0].mxu0
    %v2856 = vadd.f32 0.0, %v2855
    %v2857 = vpop.f32.mrb[0].mxu0
    %v2858 = vadd.f32 0.0, %v2857
    %2859 = vmatprep.mubr.bf16.mxu0 %v2562
    %2860 = vmatmul.mubr.bf16.gmra.mrb[0].mxu0 %v2554
    %v2861 = vpop.f32.mrb[0].mxu0
    %v2862 = vadd.f32 0.0, %v2861
    %v2863 = vpop.f32.mrb[0].mxu0
    %v2864 = vadd.f32 0.0, %v2863
    %v2865 = vpop.f32.mrb[0].mxu0
    %v2866 = vadd.f32 0.0, %v2865
    %v2867 = vpop.f32.mrb[0].mxu0
    %v2868 = vadd.f32 0.0, %v2867
    %2869 = vmatprep.mubr.bf16.mxu0 %v2578
    %2870 = vmatmul.mubr.bf16.gmra.mrb[0].mxu0 %v2570
    %v2871 = vpop.f32.mrb[0].mxu0
    %v2872 = vadd.f32 0.0, %v2871
    %v2873 = vpop.f32.mrb[0].mxu0
    %v2874 = vadd.f32 0.0, %v2873
    %v2875 = vpop.f32.mrb[0].mxu0
    %v2876 = vadd.f32 0.0, %v2875
    %v2877 = vpop.f32.mrb[0].mxu0
    %v2878 = vadd.f32 0.0, %v2877
    %2879 = vmatprep.mubr.bf16.mxu0 %v2594
    %2880 = vmatmul.mubr.bf16.gmra.mrb[0].mxu0 %v2586
    %v2881 = vpop.f32.mrb[0].mxu0
    %v2882 = vadd.f32 0.0, %v2881
    %v2883 = vpop.f32.mrb[0].mxu0
    %v2884 = vadd.f32 0.0, %v2883
    %v2885 = vpop.f32.mrb[0].mxu0
    %v2886 = vadd.f32 0.0, %v2885
    %v2887 = vpop.f32.mrb[0].mxu0
    %v2888 = vadd.f32 0.0, %v2887
    %2889 = vmatprep.mubr.bf16.mxu0 %v2610
    %2890 = vmatmul.mubr.bf16.gmra.mrb[0].mxu0 %v2602
    %v2891 = vpop.f32.mrb[0].mxu0
    %v2892 = vadd.f32 0.0, %v2891
    %v2893 = vpop.f32.mrb[0].mxu0
    %v2894 = vadd.f32 0.0, %v2893
    %v2895 = vpop.f32.mrb[0].mxu0
    %v2896 = vadd.f32 0.0, %v2895
    %v2897 = vpop.f32.mrb[0].mxu0
    %v2898 = vadd.f32 0.0, %v2897
    %2899 = vdwg.mxu0
    %v2900 = vadd.f32 %v2063, %v2822
    %v2901 = vadd.f32 %v2064, %v2824
    %v2902 = vadd.f32 %v2065, %v2826
    %v2903 = vadd.f32 %v2066, %v2828
    %v2904 = vadd.f32 %v2067, %v2832
    %v2905 = vadd.f32 %v2068, %v2834
    %v2906 = vadd.f32 %v2069, %v2836
    %v2907 = vadd.f32 %v2070, %v2838
    %v2908 = vadd.f32 %v2071, %v2842
    %v2909 = vadd.f32 %v2072, %v2844
    %v2910 = vadd.f32 %v2073, %v2846
    %v2911 = vadd.f32 %v2074, %v2848
    %v2912 = vadd.f32 %v2075, %v2852
    %v2913 = vadd.f32 %v2076, %v2854
    %v2914 = vadd.f32 %v2077, %v2856
    %v2915 = vadd.f32 %v2078, %v2858
    %v2916 = vadd.f32 %v2079, %v2862
    %v2917 = vadd.f32 %v2080, %v2864
    %v2918 = vadd.f32 %v2081, %v2866
    %v2919 = vadd.f32 %v2082, %v2868
    %v2920 = vadd.f32 %v2083, %v2872
    %v2921 = vadd.f32 %v2084, %v2874
    %v2922 = vadd.f32 %v2085, %v2876
    %v2923 = vadd.f32 %v2086, %v2878
    %v2924 = vadd.f32 %v2087, %v2882
    %v2925 = vadd.f32 %v2088, %v2884
    %v2926 = vadd.f32 %v2089, %v2886
    %v2927 = vadd.f32 %v2090, %v2888
    %v2928 = vadd.f32 %v2091, %v2892
    %v2929 = vadd.f32 %v2092, %v2894
    %v2930 = vadd.f32 %v2093, %v2896
    %v2931 = vadd.f32 %v2094, %v2898
    %v2932 = vld [vmem:[#allocation2 + $0x10] sm:$0xee]
    %vm2933 = vcmp.lt.s32.totalorder %v82, 14
    %vm2934 = vcmp.lt.s32.totalorder %v83, 14
    %vm2935 = vcmp.lt.s32.totalorder %v84, 14
    %vm2936 = vcmp.lt.s32.totalorder %v85, 14
    %vm2937 = vcmp.lt.s32.totalorder %v86, 14
    %vm2938 = vcmp.lt.s32.totalorder %v87, 14
    %vm2939 = vcmp.lt.s32.totalorder %v88, 14
    %vm2940 = vcmp.lt.s32.totalorder %v89, 14
    %vm2941 = vcmp.lt.s32.totalorder %v90, 14
    %vm2942 = vcmp.lt.s32.totalorder %v91, 14
    %vm2943 = vcmp.lt.s32.totalorder %v92, 14
    %vm2944 = vcmp.lt.s32.totalorder %v93, 14
    %vm2945 = vcmp.lt.s32.totalorder %v94, 14
    %vm2946 = vcmp.lt.s32.totalorder %v95, 14
    %vm2947 = vcmp.lt.s32.totalorder %v96, 14
    %vm2948 = vcmp.lt.s32.totalorder %v97, 14
    %v2949 = vsel %vm2933, 1, 0
    %v2950 = vsel %vm2934, 1, 0
    %v2951 = vsel %vm2935, 1, 0
    %v2952 = vsel %vm2936, 1, 0
    %v2953 = vsel %vm2937, 1, 0
    %v2954 = vsel %vm2938, 1, 0
    %v2955 = vsel %vm2939, 1, 0
    %v2956 = vsel %vm2940, 1, 0
    %v2957 = vsel %vm2941, 1, 0
    %v2958 = vsel %vm2942, 1, 0
    %v2959 = vsel %vm2943, 1, 0
    %v2960 = vsel %vm2944, 1, 0
    %v2961 = vsel %vm2945, 1, 0
    %v2962 = vsel %vm2946, 1, 0
    %v2963 = vsel %vm2947, 1, 0
    %v2964 = vsel %vm2948, 1, 0
    %vm2965 = vcmp.eq.s32.totalorder %v2949, 1
    %vm2966 = vcmp.eq.s32.totalorder %v2950, 1
    %vm2967 = vcmp.eq.s32.totalorder %v2951, 1
    %vm2968 = vcmp.eq.s32.totalorder %v2952, 1
    %vm2969 = vcmp.eq.s32.totalorder %v2953, 1
    %vm2970 = vcmp.eq.s32.totalorder %v2954, 1
    %vm2971 = vcmp.eq.s32.totalorder %v2955, 1
    %vm2972 = vcmp.eq.s32.totalorder %v2956, 1
    %vm2973 = vcmp.eq.s32.totalorder %v2957, 1
    %vm2974 = vcmp.eq.s32.totalorder %v2958, 1
    %vm2975 = vcmp.eq.s32.totalorder %v2959, 1
    %vm2976 = vcmp.eq.s32.totalorder %v2960, 1
    %vm2977 = vcmp.eq.s32.totalorder %v2961, 1
    %vm2978 = vcmp.eq.s32.totalorder %v2962, 1
    %vm2979 = vcmp.eq.s32.totalorder %v2963, 1
    %vm2980 = vcmp.eq.s32.totalorder %v2964, 1
    %vm2981 = vmpackc.low %vm2965, %vm2965
    %vm2982 = vmpackc.low %vm2966, %vm2966
    %vm2983 = vmpackc.low %vm2967, %vm2967
    %vm2984 = vmpackc.low %vm2968, %vm2968
    %vm2985 = vmpackc.low %vm2969, %vm2969
    %vm2986 = vmpackc.low %vm2970, %vm2970
    %vm2987 = vmpackc.low %vm2971, %vm2971
    %vm2988 = vmpackc.low %vm2972, %vm2972
    %vm2989 = vmpackc.low %vm2973, %vm2973
    %vm2990 = vmpackc.low %vm2974, %vm2974
    %vm2991 = vmpackc.low %vm2975, %vm2975
    %vm2992 = vmpackc.low %vm2976, %vm2976
    %vm2993 = vmpackc.low %vm2977, %vm2977
    %vm2994 = vmpackc.low %vm2978, %vm2978
    %vm2995 = vmpackc.low %vm2979, %vm2979
    %vm2996 = vmpackc.low %vm2980, %vm2980
    %v2997 = vsel %vm2981, 65537, 0
    %v2998 = vsel %vm2982, 65537, 0
    %v2999 = vsel %vm2983, 65537, 0
    %v3000 = vsel %vm2984, 65537, 0
    %v3001 = vsel %vm2985, 65537, 0
    %v3002 = vsel %vm2986, 65537, 0
    %v3003 = vsel %vm2987, 65537, 0
    %v3004 = vsel %vm2988, 65537, 0
    %v3005 = vsel %vm2989, 65537, 0
    %v3006 = vsel %vm2990, 65537, 0
    %v3007 = vsel %vm2991, 65537, 0
    %v3008 = vsel %vm2992, 65537, 0
    %v3009 = vsel %vm2993, 65537, 0
    %v3010 = vsel %vm2994, 65537, 0
    %v3011 = vsel %vm2995, 65537, 0
    %v3012 = vsel %vm2996, 65537, 0
    %vm3013 = vcmask 1040384
    %vm3014 = vcmask 1044484
    %vm3015 = vmor %vm3013, %vm3014
    %v3016 = vrot.slane %v2997, 7
    %v3017 = vrot.slane %v3016, 4
    %v3018 = vrot.slane %v2998, 7
    %v3019 = vsel %vm3015, %v3017, %v3018
    %v3020 = vrot.slane %v3018, 4
    %v3021 = vrot.slane %v2999, 7
    %v3022 = vsel %vm3015, %v3020, %v3021
    %v3023 = vrot.slane %v3021, 4
    %v3024 = vrot.slane %v3000, 7
    %v3025 = vsel %vm3015, %v3023, %v3024
    %v3026 = vrot.slane %v3024, 4
    %v3027 = vrot.slane %v3001, 7
    %v3028 = vsel %vm3015, %v3026, %v3027
    %v3029 = vrot.slane %v3027, 4
    %v3030 = vrot.slane %v3002, 7
    %v3031 = vsel %vm3015, %v3029, %v3030
    %v3032 = vrot.slane %v3030, 4
    %v3033 = vrot.slane %v3003, 7
    %v3034 = vsel %vm3015, %v3032, %v3033
    %v3035 = vrot.slane %v3033, 4
    %v3036 = vrot.slane %v3004, 7
    %v3037 = vsel %vm3015, %v3035, %v3036
    %v3038 = vrot.slane %v3036, 4
    %v3039 = vrot.slane %v3005, 7
    %v3040 = vsel %vm3015, %v3038, %v3039
    %v3041 = vrot.slane %v3039, 4
    %v3042 = vrot.slane %v3006, 7
    %v3043 = vsel %vm3015, %v3041, %v3042
    %v3044 = vrot.slane %v3042, 4
    %v3045 = vrot.slane %v3007, 7
    %v3046 = vsel %vm3015, %v3044, %v3045
    %v3047 = vrot.slane %v3045, 4
    %v3048 = vrot.slane %v3008, 7
    %v3049 = vsel %vm3015, %v3047, %v3048
    %v3050 = vrot.slane %v3048, 4
    %v3051 = vrot.slane %v3009, 7
    %v3052 = vsel %vm3015, %v3050, %v3051
    %v3053 = vrot.slane %v3051, 4
    %v3054 = vrot.slane %v3010, 7
    %v3055 = vsel %vm3015, %v3053, %v3054
    %v3056 = vrot.slane %v3054, 4
    %v3057 = vrot.slane %v3011, 7
    %v3058 = vsel %vm3015, %v3056, %v3057
    %v3059 = vrot.slane %v3057, 4
    %v3060 = vrot.slane %v3012, 7
    %v3061 = vsel %vm3015, %v3059, %v3060
    %v3062 = vrot.slane %v3060, 4
    %vm3063 = vcmp.ne.s16.totalorder %v3016, 0
    %vm3064 = vcmp.ne.s16.totalorder %v3019, 0
    %vm3065 = vcmp.ne.s16.totalorder %v3022, 0
    %vm3066 = vcmp.ne.s16.totalorder %v3025, 0
    %vm3067 = vcmp.ne.s16.totalorder %v3028, 0
    %vm3068 = vcmp.ne.s16.totalorder %v3031, 0
    %vm3069 = vcmp.ne.s16.totalorder %v3034, 0
    %vm3070 = vcmp.ne.s16.totalorder %v3037, 0
    %vm3071 = vcmp.ne.s16.totalorder %v3040, 0
    %vm3072 = vcmp.ne.s16.totalorder %v3043, 0
    %vm3073 = vcmp.ne.s16.totalorder %v3046, 0
    %vm3074 = vcmp.ne.s16.totalorder %v3049, 0
    %vm3075 = vcmp.ne.s16.totalorder %v3052, 0
    %vm3076 = vcmp.ne.s16.totalorder %v3055, 0
    %vm3077 = vcmp.ne.s16.totalorder %v3058, 0
    %vm3078 = vcmp.ne.s16.totalorder %v3061, 0
    %vm3079 = vcmp.ne.s16.totalorder %v3062, 0
    %v3080 = vsel %vm3063, %v2932, 0
    %v3081 = vsel %vm3064, %v2096, 0
    %v3082 = vsel %vm3065, %v2097, 0
    %v3083 = vsel %vm3066, %v2098, 0
    %v3084 = vsel %vm3067, %v2099, 0
    %v3085 = vsel %vm3068, %v2100, 0
    %v3086 = vsel %vm3069, %v2101, 0
    %v3087 = vsel %vm3070, %v2102, 0
    %v3088 = vsel %vm3071, %v2103, 0
    %v3089 = vsel %vm3072, %v2104, 0
    %v3090 = vsel %vm3073, %v2105, 0
    %v3091 = vsel %vm3074, %v2106, 0
    %v3092 = vsel %vm3075, %v2107, 0
    %v3093 = vsel %vm3076, %v2108, 0
    %v3094 = vsel %vm3077, %v2109, 0
    %v3095 = vsel %vm3078, %v2110, 0
    %v3096 = vsel %vm3079, %v2111, 0
    %s3097 = scalar_lea.vmem [#allocation6], 1024
    %v3098 = vld [vmem:[%s3097] sm:$0xff]
    %v3099 = vld [vmem:[%s3097 + $0x8] sm:$0xff]
    %v3100 = vld [vmem:[%s3097 + $0x10] sm:$0xff]
    %v3101 = vld [vmem:[%s3097 + $0x18] sm:$0xff]
    %v3102 = vld [vmem:[%s3097 + $0x20] sm:$0xff]
    %v3103 = vld [vmem:[%s3097 + $0x28] sm:$0xff]
    %v3104 = vld [vmem:[%s3097 + $0x30] sm:$0xff]
    %v3105 = vld [vmem:[%s3097 + $0x38] sm:$0xff]
    %v3106 = vld [vmem:[%s3097 + $0x40] sm:$0xff]
    %v3107 = vld [vmem:[%s3097 + $0x48] sm:$0xff]
    %v3108 = vld [vmem:[%s3097 + $0x50] sm:$0xff]
    %v3109 = vld [vmem:[%s3097 + $0x58] sm:$0xff]
    %v3110 = vld [vmem:[%s3097 + $0x60] sm:$0xff]
    %v3111 = vld [vmem:[%s3097 + $0x68] sm:$0xff]
    %v3112 = vld [vmem:[%s3097 + $0x70] sm:$0xff]
    %v3113 = vld [vmem:[%s3097 + $0x78] sm:$0xff]
    %v3114 = vld [vmem:[%s3097 + $0x80] sm:$0xff]
    %v3115 = vld [vmem:[%s3097 + $0x88] sm:$0xff]
    %v3116 = vld [vmem:[%s3097 + $0x90] sm:$0xff]
    %v3117 = vld [vmem:[%s3097 + $0x98] sm:$0xff]
    %v3118 = vld [vmem:[%s3097 + $0xa0] sm:$0xff]
    %v3119 = vld [vmem:[%s3097 + $0xa8] sm:$0xff]
    %v3120 = vld [vmem:[%s3097 + $0xb0] sm:$0xff]
    %v3121 = vld [vmem:[%s3097 + $0xb8] sm:$0xff]
    %v3122 = vld [vmem:[%s3097 + $0xc0] sm:$0xff]
    %v3123 = vld [vmem:[%s3097 + $0xc8] sm:$0xff]
    %v3124 = vld [vmem:[%s3097 + $0xd0] sm:$0xff]
    %v3125 = vld [vmem:[%s3097 + $0xd8] sm:$0xff]
    %v3126 = vld [vmem:[%s3097 + $0xe0] sm:$0xff]
    %v3127 = vld [vmem:[%s3097 + $0xe8] sm:$0xff]
    %v3128 = vld [vmem:[%s3097 + $0xf0] sm:$0xff]
    %v3129 = vld [vmem:[%s3097 + $0xf8] sm:$0xff]
    %v3147 = vunpack.c.l.b16 %v3080
    %v3148 = vunpack.c.h.b16 %v3080
    %v3149 = vunpack.c.l.b16 %v3081
    %v3150 = vunpack.c.h.b16 %v3081
    %v3151 = vunpack.c.l.b16 %v3082
    %v3152 = vunpack.c.h.b16 %v3082
    %v3153 = vunpack.c.l.b16 %v3083
    %v3154 = vunpack.c.h.b16 %v3083
    %v3155 = vunpack.c.l.b16 %v3084
    %v3156 = vunpack.c.h.b16 %v3084
    %v3157 = vunpack.c.l.b16 %v3085
    %v3158 = vunpack.c.h.b16 %v3085
    %v3159 = vunpack.c.l.b16 %v3086
    %v3160 = vunpack.c.h.b16 %v3086
    %v3161 = vunpack.c.l.b16 %v3087
    %v3162 = vunpack.c.h.b16 %v3087
    %v3163 = vunpack.c.l.b16 %v3088
    %v3164 = vunpack.c.h.b16 %v3088
    %v3165 = vunpack.c.l.b16 %v3089
    %v3166 = vunpack.c.h.b16 %v3089
    %v3167 = vunpack.c.l.b16 %v3090
    %v3168 = vunpack.c.h.b16 %v3090
    %v3169 = vunpack.c.l.b16 %v3091
    %v3170 = vunpack.c.h.b16 %v3091
    %v3171 = vunpack.c.l.b16 %v3092
    %v3172 = vunpack.c.h.b16 %v3092
    %v3173 = vunpack.c.l.b16 %v3093
    %v3174 = vunpack.c.h.b16 %v3093
    %v3175 = vunpack.c.l.b16 %v3094
    %v3176 = vunpack.c.h.b16 %v3094
    %v3177 = vunpack.c.l.b16 %v3095
    %v3178 = vunpack.c.h.b16 %v3095
    %v3179 = vunpack.c.l.b16 %v3096
    %v3180 = vunpack.c.h.b16 %v3096
    %v3181 = vpack.c.b16 %v3149, %v3147
    %v3182 = vpack.c.b16 %v3150, %v3148
    %v3183 = vpack.c.b16 %v3153, %v3151
    %v3184 = vpack.c.b16 %v3154, %v3152
    %v3185 = vpack.c.b16 %v3157, %v3155
    %v3186 = vpack.c.b16 %v3158, %v3156
    %v3187 = vpack.c.b16 %v3161, %v3159
    %v3188 = vpack.c.b16 %v3162, %v3160
    %v3189 = vpack.c.b16 %v3165, %v3163
    %v3190 = vpack.c.b16 %v3166, %v3164
    %v3191 = vpack.c.b16 %v3169, %v3167
    %v3192 = vpack.c.b16 %v3170, %v3168
    %v3193 = vpack.c.b16 %v3173, %v3171
    %v3194 = vpack.c.b16 %v3174, %v3172
    %v3195 = vpack.c.b16 %v3177, %v3175
    %v3196 = vpack.c.b16 %v3178, %v3176
    %v3197 = vpack.c.b16 %v3179, %v3179
    %v3198 = vpack.c.b16 %v3180, %v3180
    %vm3199 = vcmask 1046528
    %v3200 = vrot.slane %v3181, 1
    %v3201 = vrot.slane %v3183, 1
    %v3202 = vsel %vm3199, %v3200, %v3201
    %v3203 = vrot.slane %v3182, 1
    %v3204 = vrot.slane %v3184, 1
    %v3205 = vsel %vm3199, %v3203, %v3204
    %v3206 = vrot.slane %v3185, 1
    %v3207 = vsel %vm3199, %v3201, %v3206
    %v3208 = vrot.slane %v3186, 1
    %v3209 = vsel %vm3199, %v3204, %v3208
    %v3210 = vrot.slane %v3187, 1
    %v3211 = vsel %vm3199, %v3206, %v3210
    %v3212 = vrot.slane %v3188, 1
    %v3213 = vsel %vm3199, %v3208, %v3212
    %v3214 = vrot.slane %v3189, 1
    %v3215 = vsel %vm3199, %v3210, %v3214
    %v3216 = vrot.slane %v3190, 1
    %v3217 = vsel %vm3199, %v3212, %v3216
    %v3218 = vrot.slane %v3191, 1
    %v3219 = vsel %vm3199, %v3214, %v3218
    %v3220 = vrot.slane %v3192, 1
    %v3221 = vsel %vm3199, %v3216, %v3220
    %v3222 = vrot.slane %v3193, 1
    %v3223 = vsel %vm3199, %v3218, %v3222
    %v3224 = vrot.slane %v3194, 1
    %v3225 = vsel %vm3199, %v3220, %v3224
    %v3226 = vrot.slane %v3195, 1
    %v3227 = vsel %vm3199, %v3222, %v3226
    %v3228 = vrot.slane %v3196, 1
    %v3229 = vsel %vm3199, %v3224, %v3228
    %v3230 = vrot.slane %v3197, 1
    %v3231 = vsel %vm3199, %v3226, %v3230
    %v3232 = vrot.slane %v3198, 1
    %v3233 = vsel %vm3199, %v3228, %v3232
    %v3282 = vunpack.c.l.b16 %v3098
    %v3283 = vunpack.c.h.b16 %v3098
    %v3284 = vunpack.c.l.b16 %v3099
    %v3285 = vunpack.c.h.b16 %v3099
    %v3286 = vunpack.c.l.b16 %v3100
    %v3287 = vunpack.c.h.b16 %v3100
    %v3288 = vunpack.c.l.b16 %v3101
    %v3289 = vunpack.c.h.b16 %v3101
    %v3290 = vunpack.c.l.b16 %v3102
    %v3291 = vunpack.c.h.b16 %v3102
    %v3292 = vunpack.c.l.b16 %v3103
    %v3293 = vunpack.c.h.b16 %v3103
    %v3294 = vunpack.c.l.b16 %v3104
    %v3295 = vunpack.c.h.b16 %v3104
    %v3296 = vunpack.c.l.b16 %v3105
    %v3297 = vunpack.c.h.b16 %v3105
    %v3298 = vunpack.c.l.b16 %v3106
    %v3299 = vunpack.c.h.b16 %v3106
    %v3300 = vunpack.c.l.b16 %v3107
    %v3301 = vunpack.c.h.b16 %v3107
    %v3302 = vunpack.c.l.b16 %v3108
    %v3303 = vunpack.c.h.b16 %v3108
    %v3304 = vunpack.c.l.b16 %v3109
    %v3305 = vunpack.c.h.b16 %v3109
    %v3306 = vunpack.c.l.b16 %v3110
    %v3307 = vunpack.c.h.b16 %v3110
    %v3308 = vunpack.c.l.b16 %v3111
    %v3309 = vunpack.c.h.b16 %v3111
    %v3310 = vunpack.c.l.b16 %v3112
    %v3311 = vunpack.c.h.b16 %v3112
    %v3312 = vunpack.c.l.b16 %v3113
    %v3313 = vunpack.c.h.b16 %v3113
    %v3314 = vunpack.c.l.b16 %v3114
    %v3315 = vunpack.c.h.b16 %v3114
    %v3316 = vunpack.c.l.b16 %v3115
    %v3317 = vunpack.c.h.b16 %v3115
    %v3318 = vunpack.c.l.b16 %v3116
    %v3319 = vunpack.c.h.b16 %v3116
    %v3320 = vunpack.c.l.b16 %v3117
    %v3321 = vunpack.c.h.b16 %v3117
    %v3322 = vunpack.c.l.b16 %v3118
    %v3323 = vunpack.c.h.b16 %v3118
    %v3324 = vunpack.c.l.b16 %v3119
    %v3325 = vunpack.c.h.b16 %v3119
    %v3326 = vunpack.c.l.b16 %v3120
    %v3327 = vunpack.c.h.b16 %v3120
    %v3328 = vunpack.c.l.b16 %v3121
    %v3329 = vunpack.c.h.b16 %v3121
    %v3330 = vunpack.c.l.b16 %v3122
    %v3331 = vunpack.c.h.b16 %v3122
    %v3332 = vunpack.c.l.b16 %v3123
    %v3333 = vunpack.c.h.b16 %v3123
    %v3334 = vunpack.c.l.b16 %v3124
    %v3335 = vunpack.c.h.b16 %v3124
    %v3336 = vunpack.c.l.b16 %v3125
    %v3337 = vunpack.c.h.b16 %v3125
    %v3338 = vunpack.c.l.b16 %v3126
    %v3339 = vunpack.c.h.b16 %v3126
    %v3340 = vunpack.c.l.b16 %v3127
    %v3341 = vunpack.c.h.b16 %v3127
    %v3342 = vunpack.c.l.b16 %v3128
    %v3343 = vunpack.c.h.b16 %v3128
    %v3344 = vunpack.c.l.b16 %v3129
    %v3345 = vunpack.c.h.b16 %v3129
    %v3346 = vpack.c.b16 %v3284, %v3282
    %v3347 = vpack.c.b16 %v3285, %v3283
    %v3348 = vpack.c.b16 %v3288, %v3286
    %v3349 = vpack.c.b16 %v3289, %v3287
    %v3350 = vpack.c.b16 %v3292, %v3290
    %v3351 = vpack.c.b16 %v3293, %v3291
    %v3352 = vpack.c.b16 %v3296, %v3294
    %v3353 = vpack.c.b16 %v3297, %v3295
    %v3354 = vpack.c.b16 %v3300, %v3298
    %v3355 = vpack.c.b16 %v3301, %v3299
    %v3356 = vpack.c.b16 %v3304, %v3302
    %v3357 = vpack.c.b16 %v3305, %v3303
    %v3358 = vpack.c.b16 %v3308, %v3306
    %v3359 = vpack.c.b16 %v3309, %v3307
    %v3360 = vpack.c.b16 %v3312, %v3310
    %v3361 = vpack.c.b16 %v3313, %v3311
    %v3362 = vpack.c.b16 %v3316, %v3314
    %v3363 = vpack.c.b16 %v3317, %v3315
    %v3364 = vpack.c.b16 %v3320, %v3318
    %v3365 = vpack.c.b16 %v3321, %v3319
    %v3366 = vpack.c.b16 %v3324, %v3322
    %v3367 = vpack.c.b16 %v3325, %v3323
    %v3368 = vpack.c.b16 %v3328, %v3326
    %v3369 = vpack.c.b16 %v3329, %v3327
    %v3370 = vpack.c.b16 %v3332, %v3330
    %v3371 = vpack.c.b16 %v3333, %v3331
    %v3372 = vpack.c.b16 %v3336, %v3334
    %v3373 = vpack.c.b16 %v3337, %v3335
    %v3374 = vpack.c.b16 %v3340, %v3338
    %v3375 = vpack.c.b16 %v3341, %v3339
    %v3376 = vpack.c.b16 %v3344, %v3342
    %v3377 = vpack.c.b16 %v3345, %v3343
    %3410 = vmatprep.subr.bf16.mxu0 %v3347
    %3411 = vmatpush1.bf16.msra.mxu0 %v3346
    %3412 = vmatprep.subr.bf16.mxu0 %v3349
    %3413 = vmatpush1.bf16.msra.mxu0 %v3348
    %3414 = vmatprep.subr.bf16.mxu0 %v3351
    %3415 = vmatpush1.bf16.msra.mxu0 %v3350
    %3416 = vmatprep.subr.bf16.mxu0 %v3353
    %3417 = vmatpush1.bf16.msra.mxu0 %v3352
    %3418 = vmatprep.subr.bf16.mxu0 %v3355
    %3419 = vmatpush1.bf16.msra.mxu0 %v3354
    %3420 = vmatprep.subr.bf16.mxu0 %v3357
    %3421 = vmatpush1.bf16.msra.mxu0 %v3356
    %3422 = vmatprep.subr.bf16.mxu0 %v3359
    %3423 = vmatpush1.bf16.msra.mxu0 %v3358
    %3424 = vmatprep.subr.bf16.mxu0 %v3361
    %3425 = vmatpush1.bf16.msra.mxu0 %v3360
    %3426 = vmatprep.subr.bf16.mxu0 %v3363
    %3427 = vmatpush1.bf16.msra.mxu0 %v3362
    %3428 = vmatprep.subr.bf16.mxu0 %v3365
    %3429 = vmatpush1.bf16.msra.mxu0 %v3364
    %3430 = vmatprep.subr.bf16.mxu0 %v3367
    %3431 = vmatpush1.bf16.msra.mxu0 %v3366
    %3432 = vmatprep.subr.bf16.mxu0 %v3369
    %3433 = vmatpush1.bf16.msra.mxu0 %v3368
    %3434 = vmatprep.subr.bf16.mxu0 %v3371
    %3435 = vmatpush1.bf16.msra.mxu0 %v3370
    %3436 = vmatprep.subr.bf16.mxu0 %v3373
    %3437 = vmatpush1.bf16.msra.mxu0 %v3372
    %3438 = vmatprep.subr.bf16.mxu0 %v3375
    %3439 = vmatpush1.bf16.msra.mxu0 %v3374
    %3440 = vmatprep.subr.bf16.mxu0 %v3377
    %3441 = vmatpush1.bf16.msra.mxu0 %v3376
    %3442 = vmatprep.mubr.bf16.mxu0 %v3205
    %3443 = vmatmul.mubr.bf16.gmra.mrb[0].mxu0 %v3202
    %v3444 = vpop.f32.mrb[0].mxu0
    %v3445 = vadd.f32 0.0, %v3444
    %v3446 = vpop.f32.mrb[0].mxu0
    %v3447 = vadd.f32 0.0, %v3446
    %v3448 = vpop.f32.mrb[0].mxu0
    %v3449 = vadd.f32 0.0, %v3448
    %v3450 = vpop.f32.mrb[0].mxu0
    %v3451 = vadd.f32 0.0, %v3450
    %3452 = vmatprep.mubr.bf16.mxu0 %v3209
    %3453 = vmatmul.mubr.bf16.gmra.mrb[0].mxu0 %v3207
    %v3454 = vpop.f32.mrb[0].mxu0
    %v3455 = vadd.f32 0.0, %v3454
    %v3456 = vpop.f32.mrb[0].mxu0
    %v3457 = vadd.f32 0.0, %v3456
    %v3458 = vpop.f32.mrb[0].mxu0
    %v3459 = vadd.f32 0.0, %v3458
    %v3460 = vpop.f32.mrb[0].mxu0
    %v3461 = vadd.f32 0.0, %v3460
    %3462 = vmatprep.mubr.bf16.mxu0 %v3213
    %3463 = vmatmul.mubr.bf16.gmra.mrb[0].mxu0 %v3211
    %v3464 = vpop.f32.mrb[0].mxu0
    %v3465 = vadd.f32 0.0, %v3464
    %v3466 = vpop.f32.mrb[0].mxu0
    %v3467 = vadd.f32 0.0, %v3466
    %v3468 = vpop.f32.mrb[0].mxu0
    %v3469 = vadd.f32 0.0, %v3468
    %v3470 = vpop.f32.mrb[0].mxu0
    %v3471 = vadd.f32 0.0, %v3470
    %3472 = vmatprep.mubr.bf16.mxu0 %v3217
    %3473 = vmatmul.mubr.bf16.gmra.mrb[0].mxu0 %v3215
    %v3474 = vpop.f32.mrb[0].mxu0
    %v3475 = vadd.f32 0.0, %v3474
    %v3476 = vpop.f32.mrb[0].mxu0
    %v3477 = vadd.f32 0.0, %v3476
    %v3478 = vpop.f32.mrb[0].mxu0
    %v3479 = vadd.f32 0.0, %v3478
    %v3480 = vpop.f32.mrb[0].mxu0
    %v3481 = vadd.f32 0.0, %v3480
    %3482 = vmatprep.mubr.bf16.mxu0 %v3221
    %3483 = vmatmul.mubr.bf16.gmra.mrb[0].mxu0 %v3219
    %v3484 = vpop.f32.mrb[0].mxu0
    %v3485 = vadd.f32 0.0, %v3484
    %v3486 = vpop.f32.mrb[0].mxu0
    %v3487 = vadd.f32 0.0, %v3486
    %v3488 = vpop.f32.mrb[0].mxu0
    %v3489 = vadd.f32 0.0, %v3488
    %v3490 = vpop.f32.mrb[0].mxu0
    %v3491 = vadd.f32 0.0, %v3490
    %3492 = vmatprep.mubr.bf16.mxu0 %v3225
    %3493 = vmatmul.mubr.bf16.gmra.mrb[0].mxu0 %v3223
    %v3494 = vpop.f32.mrb[0].mxu0
    %v3495 = vadd.f32 0.0, %v3494
    %v3496 = vpop.f32.mrb[0].mxu0
    %v3497 = vadd.f32 0.0, %v3496
    %v3498 = vpop.f32.mrb[0].mxu0
    %v3499 = vadd.f32 0.0, %v3498
    %v3500 = vpop.f32.mrb[0].mxu0
    %v3501 = vadd.f32 0.0, %v3500
    %3502 = vmatprep.mubr.bf16.mxu0 %v3229
    %3503 = vmatmul.mubr.bf16.gmra.mrb[0].mxu0 %v3227
    %v3504 = vpop.f32.mrb[0].mxu0
    %v3505 = vadd.f32 0.0, %v3504
    %v3506 = vpop.f32.mrb[0].mxu0
    %v3507 = vadd.f32 0.0, %v3506
    %v3508 = vpop.f32.mrb[0].mxu0
    %v3509 = vadd.f32 0.0, %v3508
    %v3510 = vpop.f32.mrb[0].mxu0
    %v3511 = vadd.f32 0.0, %v3510
    %3512 = vmatprep.mubr.bf16.mxu0 %v3233
    %3513 = vmatmul.mubr.bf16.gmra.mrb[0].mxu0 %v3231
    %v3514 = vpop.f32.mrb[0].mxu0
    %v3515 = vadd.f32 0.0, %v3514
    %v3516 = vpop.f32.mrb[0].mxu0
    %v3517 = vadd.f32 0.0, %v3516
    %v3518 = vpop.f32.mrb[0].mxu0
    %v3519 = vadd.f32 0.0, %v3518
    %v3520 = vpop.f32.mrb[0].mxu0
    %v3521 = vadd.f32 0.0, %v3520
    %3522 = vdwg.mxu0
    %v3523 = vadd.f32 %v2900, %v3445
    %v3524 = vadd.f32 %v2901, %v3447
    %v3525 = vadd.f32 %v2902, %v3449
    %v3526 = vadd.f32 %v2903, %v3451
    %v3527 = vadd.f32 %v2904, %v3455
    %v3528 = vadd.f32 %v2905, %v3457
    %v3529 = vadd.f32 %v2906, %v3459
    %v3530 = vadd.f32 %v2907, %v3461
    %v3531 = vadd.f32 %v2908, %v3465
    %v3532 = vadd.f32 %v2909, %v3467
    %v3533 = vadd.f32 %v2910, %v3469
    %v3534 = vadd.f32 %v2911, %v3471
    %v3535 = vadd.f32 %v2912, %v3475
    %v3536 = vadd.f32 %v2913, %v3477
    %v3537 = vadd.f32 %v2914, %v3479
    %v3538 = vadd.f32 %v2915, %v3481
    %v3539 = vadd.f32 %v2916, %v3485
    %v3540 = vadd.f32 %v2917, %v3487
    %v3541 = vadd.f32 %v2918, %v3489
    %v3542 = vadd.f32 %v2919, %v3491
    %v3543 = vadd.f32 %v2920, %v3495
    %v3544 = vadd.f32 %v2921, %v3497
    %v3545 = vadd.f32 %v2922, %v3499
    %v3546 = vadd.f32 %v2923, %v3501
    %v3547 = vadd.f32 %v2924, %v3505
    %v3548 = vadd.f32 %v2925, %v3507
    %v3549 = vadd.f32 %v2926, %v3509
    %v3550 = vadd.f32 %v2927, %v3511
    %v3551 = vadd.f32 %v2928, %v3515
    %v3552 = vadd.f32 %v2929, %v3517
    %v3553 = vadd.f32 %v2930, %v3519
    %v3554 = vadd.f32 %v2931, %v3521
    %vm3555 = vcmp.gt.f32.partialorder %v3523, 0.0
    %vm3556 = vcmp.gt.f32.partialorder %v3524, 0.0
    %vm3557 = vcmp.gt.f32.partialorder %v3525, 0.0
    %vm3558 = vcmp.gt.f32.partialorder %v3526, 0.0
    %vm3559 = vcmp.gt.f32.partialorder %v3527, 0.0
    %vm3560 = vcmp.gt.f32.partialorder %v3528, 0.0
    %vm3561 = vcmp.gt.f32.partialorder %v3529, 0.0
    %vm3562 = vcmp.gt.f32.partialorder %v3530, 0.0
    %vm3563 = vcmp.gt.f32.partialorder %v3531, 0.0
    %vm3564 = vcmp.gt.f32.partialorder %v3532, 0.0
    %vm3565 = vcmp.gt.f32.partialorder %v3533, 0.0
    %vm3566 = vcmp.gt.f32.partialorder %v3534, 0.0
    %vm3567 = vcmp.gt.f32.partialorder %v3535, 0.0
    %vm3568 = vcmp.gt.f32.partialorder %v3536, 0.0
    %vm3569 = vcmp.gt.f32.partialorder %v3537, 0.0
    %vm3570 = vcmp.gt.f32.partialorder %v3538, 0.0
    %vm3571 = vcmp.gt.f32.partialorder %v3539, 0.0
    %vm3572 = vcmp.gt.f32.partialorder %v3540, 0.0
    %vm3573 = vcmp.gt.f32.partialorder %v3541, 0.0
    %vm3574 = vcmp.gt.f32.partialorder %v3542, 0.0
    %vm3575 = vcmp.gt.f32.partialorder %v3543, 0.0
    %vm3576 = vcmp.gt.f32.partialorder %v3544, 0.0
    %vm3577 = vcmp.gt.f32.partialorder %v3545, 0.0
    %vm3578 = vcmp.gt.f32.partialorder %v3546, 0.0
    %vm3579 = vcmp.gt.f32.partialorder %v3547, 0.0
    %vm3580 = vcmp.gt.f32.partialorder %v3548, 0.0
    %vm3581 = vcmp.gt.f32.partialorder %v3549, 0.0
    %vm3582 = vcmp.gt.f32.partialorder %v3550, 0.0
    %vm3583 = vcmp.gt.f32.partialorder %v3551, 0.0
    %vm3584 = vcmp.gt.f32.partialorder %v3552, 0.0
    %vm3585 = vcmp.gt.f32.partialorder %v3553, 0.0
    %vm3586 = vcmp.gt.f32.partialorder %v3554, 0.0
    %v3587 = vmul.f32 %v3523, 0.01
    %v3588 = vmul.f32 %v3524, 0.01
    %v3589 = vmul.f32 %v3525, 0.01
    %v3590 = vmul.f32 %v3526, 0.01
    %v3591 = vmul.f32 %v3527, 0.01
    %v3592 = vmul.f32 %v3528, 0.01
    %v3593 = vmul.f32 %v3529, 0.01
    %v3594 = vmul.f32 %v3530, 0.01
    %v3595 = vmul.f32 %v3531, 0.01
    %v3596 = vmul.f32 %v3532, 0.01
    %v3597 = vmul.f32 %v3533, 0.01
    %v3598 = vmul.f32 %v3534, 0.01
    %v3599 = vmul.f32 %v3535, 0.01
    %v3600 = vmul.f32 %v3536, 0.01
    %v3601 = vmul.f32 %v3537, 0.01
    %v3602 = vmul.f32 %v3538, 0.01
    %v3603 = vmul.f32 %v3539, 0.01
    %v3604 = vmul.f32 %v3540, 0.01
    %v3605 = vmul.f32 %v3541, 0.01
    %v3606 = vmul.f32 %v3542, 0.01
    %v3607 = vmul.f32 %v3543, 0.01
    %v3608 = vmul.f32 %v3544, 0.01
    %v3609 = vmul.f32 %v3545, 0.01
    %v3610 = vmul.f32 %v3546, 0.01
    %v3611 = vmul.f32 %v3547, 0.01
    %v3612 = vmul.f32 %v3548, 0.01
    %v3613 = vmul.f32 %v3549, 0.01
    %v3614 = vmul.f32 %v3550, 0.01
    %v3615 = vmul.f32 %v3551, 0.01
    %v3616 = vmul.f32 %v3552, 0.01
    %v3617 = vmul.f32 %v3553, 0.01
    %v3618 = vmul.f32 %v3554, 0.01
    %v3619 = vsel %vm3555, %v3523, %v3587
    %v3620 = vsel %vm3556, %v3524, %v3588
    %v3621 = vsel %vm3557, %v3525, %v3589
    %v3622 = vsel %vm3558, %v3526, %v3590
    %v3623 = vsel %vm3559, %v3527, %v3591
    %v3624 = vsel %vm3560, %v3528, %v3592
    %v3625 = vsel %vm3561, %v3529, %v3593
    %v3626 = vsel %vm3562, %v3530, %v3594
    %v3627 = vsel %vm3563, %v3531, %v3595
    %v3628 = vsel %vm3564, %v3532, %v3596
    %v3629 = vsel %vm3565, %v3533, %v3597
    %v3630 = vsel %vm3566, %v3534, %v3598
    %v3631 = vsel %vm3567, %v3535, %v3599
    %v3632 = vsel %vm3568, %v3536, %v3600
    %v3633 = vsel %vm3569, %v3537, %v3601
    %v3634 = vsel %vm3570, %v3538, %v3602
    %v3635 = vsel %vm3571, %v3539, %v3603
    %v3636 = vsel %vm3572, %v3540, %v3604
    %v3637 = vsel %vm3573, %v3541, %v3605
    %v3638 = vsel %vm3574, %v3542, %v3606
    %v3639 = vsel %vm3575, %v3543, %v3607
    %v3640 = vsel %vm3576, %v3544, %v3608
    %v3641 = vsel %vm3577, %v3545, %v3609
    %v3642 = vsel %vm3578, %v3546, %v3610
    %v3643 = vsel %vm3579, %v3547, %v3611
    %v3644 = vsel %vm3580, %v3548, %v3612
    %v3645 = vsel %vm3581, %v3549, %v3613
    %v3646 = vsel %vm3582, %v3550, %v3614
    %v3647 = vsel %vm3583, %v3551, %v3615
    %v3648 = vsel %vm3584, %v3552, %v3616
    %v3649 = vsel %vm3585, %v3553, %v3617
    %v3650 = vsel %vm3586, %v3554, %v3618
    %v3651 = vpack.c.bf16 %v3621, %v3619
    %v3652 = vpack.c.bf16 %v3622, %v3620
    %v3653 = vpack.c.bf16 %v3625, %v3623
    %v3654 = vpack.c.bf16 %v3626, %v3624
    %v3655 = vpack.c.bf16 %v3629, %v3627
    %v3656 = vpack.c.bf16 %v3630, %v3628
    %v3657 = vpack.c.bf16 %v3633, %v3631
    %v3658 = vpack.c.bf16 %v3634, %v3632
    %v3659 = vpack.c.bf16 %v3637, %v3635
    %v3660 = vpack.c.bf16 %v3638, %v3636
    %v3661 = vpack.c.bf16 %v3641, %v3639
    %v3662 = vpack.c.bf16 %v3642, %v3640
    %v3663 = vpack.c.bf16 %v3645, %v3643
    %v3664 = vpack.c.bf16 %v3646, %v3644
    %v3665 = vpack.c.bf16 %v3649, %v3647
    %v3666 = vpack.c.bf16 %v3650, %v3648
    %v3683 = vunpack.c.l.b16 %v3651
    %v3684 = vunpack.c.l.b16 %v3652
    %v3685 = vunpack.c.h.b16 %v3651
    %v3686 = vunpack.c.h.b16 %v3652
    %v3687 = vunpack.c.l.b16 %v3653
    %v3688 = vunpack.c.l.b16 %v3654
    %v3689 = vunpack.c.h.b16 %v3653
    %v3690 = vunpack.c.h.b16 %v3654
    %v3691 = vunpack.c.l.b16 %v3655
    %v3692 = vunpack.c.l.b16 %v3656
    %v3693 = vunpack.c.h.b16 %v3655
    %v3694 = vunpack.c.h.b16 %v3656
    %v3695 = vunpack.c.l.b16 %v3657
    %v3696 = vunpack.c.l.b16 %v3658
    %v3697 = vunpack.c.h.b16 %v3657
    %v3698 = vunpack.c.h.b16 %v3658
    %v3699 = vunpack.c.l.b16 %v3659
    %v3700 = vunpack.c.l.b16 %v3660
    %v3701 = vunpack.c.h.b16 %v3659
    %v3702 = vunpack.c.h.b16 %v3660
    %v3703 = vunpack.c.l.b16 %v3661
    %v3704 = vunpack.c.l.b16 %v3662
    %v3705 = vunpack.c.h.b16 %v3661
    %v3706 = vunpack.c.h.b16 %v3662
    %v3707 = vunpack.c.l.b16 %v3663
    %v3708 = vunpack.c.l.b16 %v3664
    %v3709 = vunpack.c.h.b16 %v3663
    %v3710 = vunpack.c.h.b16 %v3664
    %v3711 = vunpack.c.l.b16 %v3665
    %v3712 = vunpack.c.l.b16 %v3666
    %v3713 = vunpack.c.h.b16 %v3665
    %v3714 = vunpack.c.h.b16 %v3666
    %v3715 = vpack.c.b16 %v3684, %v3683
    %v3716 = vpack.c.b16 %v3686, %v3685
    %v3717 = vpack.c.b16 %v3688, %v3687
    %v3718 = vpack.c.b16 %v3690, %v3689
    %v3719 = vpack.c.b16 %v3692, %v3691
    %v3720 = vpack.c.b16 %v3694, %v3693
    %v3721 = vpack.c.b16 %v3696, %v3695
    %v3722 = vpack.c.b16 %v3698, %v3697
    %v3723 = vpack.c.b16 %v3700, %v3699
    %v3724 = vpack.c.b16 %v3702, %v3701
    %v3725 = vpack.c.b16 %v3704, %v3703
    %v3726 = vpack.c.b16 %v3706, %v3705
    %v3727 = vpack.c.b16 %v3708, %v3707
    %v3728 = vpack.c.b16 %v3710, %v3709
    %v3729 = vpack.c.b16 %v3712, %v3711
    %v3730 = vpack.c.b16 %v3714, %v3713
    %3747 = vst [vmem:[#allocation2 + $0x10] sm:$0xff] %v3715
    %3748 = vst [vmem:[#allocation2 + $0x18] sm:$0xff] %v3716
    %3749 = vst [vmem:[#allocation2 + $0x20] sm:$0xff] %v3717
    %3750 = vst [vmem:[#allocation2 + $0x28] sm:$0xff] %v3718
    %3751 = vst [vmem:[#allocation2 + $0x30] sm:$0xff] %v3719
    %3752 = vst [vmem:[#allocation2 + $0x38] sm:$0xff] %v3720
    %3753 = vst [vmem:[#allocation2 + $0x40] sm:$0xff] %v3721
    %3754 = vst [vmem:[#allocation2 + $0x48] sm:$0xff] %v3722
    %3755 = vst [vmem:[#allocation2 + $0x50] sm:$0xff] %v3723
    %3756 = vst [vmem:[#allocation2 + $0x58] sm:$0xff] %v3724
    %3757 = vst [vmem:[#allocation2 + $0x60] sm:$0xff] %v3725
    %3758 = vst [vmem:[#allocation2 + $0x68] sm:$0xff] %v3726
    %3759 = vst [vmem:[#allocation2 + $0x70] sm:$0xff] %v3727
    %3760 = vst [vmem:[#allocation2 + $0x78] sm:$0xff] %v3728
    %3761 = vst [vmem:[#allocation2 + $0x80] sm:$0xff] %v3729
    %3762 = vst [vmem:[#allocation2 + $0x88] sm:$0xff] %v3730
    %v3763 = vld [vmem:[#allocation2 + $0x8] sm:$0x88]
    %v3764 = vld [vmem:[#allocation2 + $0x10] sm:$0xff]
    %v3765 = vld [vmem:[#allocation2 + $0x18] sm:$0xff]
    %v3766 = vld [vmem:[#allocation2 + $0x20] sm:$0xff]
    %v3767 = vld [vmem:[#allocation2 + $0x28] sm:$0xff]
    %v3768 = vld [vmem:[#allocation2 + $0x30] sm:$0xff]
    %v3769 = vld [vmem:[#allocation2 + $0x38] sm:$0xff]
    %v3770 = vld [vmem:[#allocation2 + $0x40] sm:$0xff]
    %v3771 = vld [vmem:[#allocation2 + $0x48] sm:$0xff]
    %v3772 = vld [vmem:[#allocation2 + $0x50] sm:$0xff]
    %v3773 = vld [vmem:[#allocation2 + $0x58] sm:$0xff]
    %v3774 = vld [vmem:[#allocation2 + $0x60] sm:$0xff]
    %v3775 = vld [vmem:[#allocation2 + $0x68] sm:$0xff]
    %v3776 = vld [vmem:[#allocation2 + $0x70] sm:$0xff]
    %v3777 = vld [vmem:[#allocation2 + $0x78] sm:$0xff]
    %v3778 = vld [vmem:[#allocation2 + $0x80] sm:$0xff]
    %v3779 = vld [vmem:[#allocation2 + $0x88] sm:$0x77]
    %v3780 = vsel %vm389, %v3763, 0
    %v3781 = vsel %vm390, %v3764, 0
    %v3782 = vsel %vm391, %v3765, 0
    %v3783 = vsel %vm392, %v3766, 0
    %v3784 = vsel %vm393, %v3767, 0
    %v3785 = vsel %vm394, %v3768, 0
    %v3786 = vsel %vm395, %v3769, 0
    %v3787 = vsel %vm396, %v3770, 0
    %v3788 = vsel %vm397, %v3771, 0
    %v3789 = vsel %vm398, %v3772, 0
    %v3790 = vsel %vm399, %v3773, 0
    %v3791 = vsel %vm400, %v3774, 0
    %v3792 = vsel %vm401, %v3775, 0
    %v3793 = vsel %vm402, %v3776, 0
    %v3794 = vsel %vm403, %v3777, 0
    %v3795 = vsel %vm404, %v3778, 0
    %v3796 = vsel %vm405, %v3779, 0
    %v3797 = vld [vmem:[#allocation8] sm:$0xff]
    %v3798 = vld [vmem:[#allocation8 + $0x8] sm:$0xff]
    %v3799 = vld [vmem:[#allocation8 + $0x10] sm:$0xff]
    %v3800 = vld [vmem:[#allocation8 + $0x18] sm:$0xff]
    %v3801 = vld [vmem:[#allocation8 + $0x20] sm:$0xff]
    %v3802 = vld [vmem:[#allocation8 + $0x28] sm:$0xff]
    %v3803 = vld [vmem:[#allocation8 + $0x30] sm:$0xff]
    %v3804 = vld [vmem:[#allocation8 + $0x38] sm:$0xff]
    %v3805 = vld [vmem:[#allocation8 + $0x40] sm:$0xff]
    %v3806 = vld [vmem:[#allocation8 + $0x48] sm:$0xff]
    %v3807 = vld [vmem:[#allocation8 + $0x50] sm:$0xff]
    %v3808 = vld [vmem:[#allocation8 + $0x58] sm:$0xff]
    %v3809 = vld [vmem:[#allocation8 + $0x60] sm:$0xff]
    %v3810 = vld [vmem:[#allocation8 + $0x68] sm:$0xff]
    %v3811 = vld [vmem:[#allocation8 + $0x70] sm:$0xff]
    %v3812 = vld [vmem:[#allocation8 + $0x78] sm:$0xff]
    %v3813 = vld [vmem:[#allocation8 + $0x80] sm:$0xff]
    %v3814 = vld [vmem:[#allocation8 + $0x88] sm:$0xff]
    %v3815 = vld [vmem:[#allocation8 + $0x90] sm:$0xff]
    %v3816 = vld [vmem:[#allocation8 + $0x98] sm:$0xff]
    %v3817 = vld [vmem:[#allocation8 + $0xa0] sm:$0xff]
    %v3818 = vld [vmem:[#allocation8 + $0xa8] sm:$0xff]
    %v3819 = vld [vmem:[#allocation8 + $0xb0] sm:$0xff]
    %v3820 = vld [vmem:[#allocation8 + $0xb8] sm:$0xff]
    %v3821 = vld [vmem:[#allocation8 + $0xc0] sm:$0xff]
    %v3822 = vld [vmem:[#allocation8 + $0xc8] sm:$0xff]
    %v3823 = vld [vmem:[#allocation8 + $0xd0] sm:$0xff]
    %v3824 = vld [vmem:[#allocation8 + $0xd8] sm:$0xff]
    %v3825 = vld [vmem:[#allocation8 + $0xe0] sm:$0xff]
    %v3826 = vld [vmem:[#allocation8 + $0xe8] sm:$0xff]
    %v3827 = vld [vmem:[#allocation8 + $0xf0] sm:$0xff]
    %v3828 = vld [vmem:[#allocation8 + $0xf8] sm:$0xff]
    %v3829 = vld [vmem:[#allocation2 + $0x88] sm:$0xff]
    %v3830 = vsel %vm698, %v3763, 0
    %v3831 = vsel %vm699, %v3764, 0
    %v3832 = vsel %vm700, %v3765, 0
    %v3833 = vsel %vm701, %v3766, 0
    %v3834 = vsel %vm702, %v3767, 0
    %v3835 = vsel %vm703, %v3768, 0
    %v3836 = vsel %vm704, %v3769, 0
    %v3837 = vsel %vm705, %v3770, 0
    %v3838 = vsel %vm706, %v3771, 0
    %v3839 = vsel %vm707, %v3772, 0
    %v3840 = vsel %vm708, %v3773, 0
    %v3841 = vsel %vm709, %v3774, 0
    %v3842 = vsel %vm710, %v3775, 0
    %v3843 = vsel %vm711, %v3776, 0
    %v3844 = vsel %vm712, %v3777, 0
    %v3845 = vsel %vm713, %v3778, 0
    %v3846 = vsel %vm714, %v3829, 0
    %s3847 = scalar_lea.vmem [#allocation8], 256
    %v3848 = vld [vmem:[%s3847] sm:$0xff]
    %v3849 = vld [vmem:[%s3847 + $0x8] sm:$0xff]
    %v3850 = vld [vmem:[%s3847 + $0x10] sm:$0xff]
    %v3851 = vld [vmem:[%s3847 + $0x18] sm:$0xff]
    %v3852 = vld [vmem:[%s3847 + $0x20] sm:$0xff]
    %v3853 = vld [vmem:[%s3847 + $0x28] sm:$0xff]
    %v3854 = vld [vmem:[%s3847 + $0x30] sm:$0xff]
    %v3855 = vld [vmem:[%s3847 + $0x38] sm:$0xff]
    %v3856 = vld [vmem:[%s3847 + $0x40] sm:$0xff]
    %v3857 = vld [vmem:[%s3847 + $0x48] sm:$0xff]
    %v3858 = vld [vmem:[%s3847 + $0x50] sm:$0xff]
    %v3859 = vld [vmem:[%s3847 + $0x58] sm:$0xff]
    %v3860 = vld [vmem:[%s3847 + $0x60] sm:$0xff]
    %v3861 = vld [vmem:[%s3847 + $0x68] sm:$0xff]
    %v3862 = vld [vmem:[%s3847 + $0x70] sm:$0xff]
    %v3863 = vld [vmem:[%s3847 + $0x78] sm:$0xff]
    %v3864 = vld [vmem:[%s3847 + $0x80] sm:$0xff]
    %v3865 = vld [vmem:[%s3847 + $0x88] sm:$0xff]
    %v3866 = vld [vmem:[%s3847 + $0x90] sm:$0xff]
    %v3867 = vld [vmem:[%s3847 + $0x98] sm:$0xff]
    %v3868 = vld [vmem:[%s3847 + $0xa0] sm:$0xff]
    %v3869 = vld [vmem:[%s3847 + $0xa8] sm:$0xff]
    %v3870 = vld [vmem:[%s3847 + $0xb0] sm:$0xff]
    %v3871 = vld [vmem:[%s3847 + $0xb8] sm:$0xff]
    %v3872 = vld [vmem:[%s3847 + $0xc0] sm:$0xff]
    %v3873 = vld [vmem:[%s3847 + $0xc8] sm:$0xff]
    %v3874 = vld [vmem:[%s3847 + $0xd0] sm:$0xff]
    %v3875 = vld [vmem:[%s3847 + $0xd8] sm:$0xff]
    %v3876 = vld [vmem:[%s3847 + $0xe0] sm:$0xff]
    %v3877 = vld [vmem:[%s3847 + $0xe8] sm:$0xff]
    %v3878 = vld [vmem:[%s3847 + $0xf0] sm:$0xff]
    %v3879 = vld [vmem:[%s3847 + $0xf8] sm:$0xff]
    %v3897 = vunpack.c.l.b16 %v3830
    %v3898 = vunpack.c.h.b16 %v3830
    %v3899 = vunpack.c.l.b16 %v3831
    %v3900 = vunpack.c.h.b16 %v3831
    %v3901 = vunpack.c.l.b16 %v3832
    %v3902 = vunpack.c.h.b16 %v3832
    %v3903 = vunpack.c.l.b16 %v3833
    %v3904 = vunpack.c.h.b16 %v3833
    %v3905 = vunpack.c.l.b16 %v3834
    %v3906 = vunpack.c.h.b16 %v3834
    %v3907 = vunpack.c.l.b16 %v3835
    %v3908 = vunpack.c.h.b16 %v3835
    %v3909 = vunpack.c.l.b16 %v3836
    %v3910 = vunpack.c.h.b16 %v3836
    %v3911 = vunpack.c.l.b16 %v3837
    %v3912 = vunpack.c.h.b16 %v3837
    %v3913 = vunpack.c.l.b16 %v3838
    %v3914 = vunpack.c.h.b16 %v3838
    %v3915 = vunpack.c.l.b16 %v3839
    %v3916 = vunpack.c.h.b16 %v3839
    %v3917 = vunpack.c.l.b16 %v3840
    %v3918 = vunpack.c.h.b16 %v3840
    %v3919 = vunpack.c.l.b16 %v3841
    %v3920 = vunpack.c.h.b16 %v3841
    %v3921 = vunpack.c.l.b16 %v3842
    %v3922 = vunpack.c.h.b16 %v3842
    %v3923 = vunpack.c.l.b16 %v3843
    %v3924 = vunpack.c.h.b16 %v3843
    %v3925 = vunpack.c.l.b16 %v3844
    %v3926 = vunpack.c.h.b16 %v3844
    %v3927 = vunpack.c.l.b16 %v3845
    %v3928 = vunpack.c.h.b16 %v3845
    %v3929 = vunpack.c.l.b16 %v3846
    %v3930 = vunpack.c.h.b16 %v3846
    %v3931 = vpack.c.b16 %v3899, %v3897
    %v3932 = vpack.c.b16 %v3900, %v3898
    %v3933 = vpack.c.b16 %v3903, %v3901
    %v3934 = vpack.c.b16 %v3904, %v3902
    %v3935 = vpack.c.b16 %v3907, %v3905
    %v3936 = vpack.c.b16 %v3908, %v3906
    %v3937 = vpack.c.b16 %v3911, %v3909
    %v3938 = vpack.c.b16 %v3912, %v3910
    %v3939 = vpack.c.b16 %v3915, %v3913
    %v3940 = vpack.c.b16 %v3916, %v3914
    %v3941 = vpack.c.b16 %v3919, %v3917
    %v3942 = vpack.c.b16 %v3920, %v3918
    %v3943 = vpack.c.b16 %v3923, %v3921
    %v3944 = vpack.c.b16 %v3924, %v3922
    %v3945 = vpack.c.b16 %v3927, %v3925
    %v3946 = vpack.c.b16 %v3928, %v3926
    %v3947 = vpack.c.b16 %v3929, %v3929
    %v3948 = vpack.c.b16 %v3930, %v3930
    %v3950 = vshrl.u32 %v3931, 16
    %v3952 = vrot.slane %v3950, 3
    %v3953 = vshll.u32 %v3931, 16
    %v3955 = vrot.slane %v3953, 4
    %v3956 = vor.u32 %v3952, %v3955
    %v3958 = vshrl.u32 %v3933, 16
    %v3960 = vrot.slane %v3958, 3
    %v3961 = vshll.u32 %v3933, 16
    %v3963 = vrot.slane %v3961, 4
    %v3964 = vor.u32 %v3960, %v3963
    %v3965 = vsel %vm834, %v3956, %v3964
    %v3967 = vshrl.u32 %v3932, 16
    %v3969 = vrot.slane %v3967, 3
    %v3970 = vshll.u32 %v3932, 16
    %v3972 = vrot.slane %v3970, 4
    %v3973 = vor.u32 %v3969, %v3972
    %v3975 = vshrl.u32 %v3934, 16
    %v3977 = vrot.slane %v3975, 3
    %v3978 = vshll.u32 %v3934, 16
    %v3980 = vrot.slane %v3978, 4
    %v3981 = vor.u32 %v3977, %v3980
    %v3982 = vsel %vm834, %v3973, %v3981
    %v3984 = vshrl.u32 %v3935, 16
    %v3986 = vrot.slane %v3984, 3
    %v3987 = vshll.u32 %v3935, 16
    %v3989 = vrot.slane %v3987, 4
    %v3990 = vor.u32 %v3986, %v3989
    %v3991 = vsel %vm834, %v3964, %v3990
    %v3993 = vshrl.u32 %v3936, 16
    %v3995 = vrot.slane %v3993, 3
    %v3996 = vshll.u32 %v3936, 16
    %v3998 = vrot.slane %v3996, 4
    %v3999 = vor.u32 %v3995, %v3998
    %v4000 = vsel %vm834, %v3981, %v3999
    %v4002 = vshrl.u32 %v3937, 16
    %v4004 = vrot.slane %v4002, 3
    %v4005 = vshll.u32 %v3937, 16
    %v4007 = vrot.slane %v4005, 4
    %v4008 = vor.u32 %v4004, %v4007
    %v4009 = vsel %vm834, %v3990, %v4008
    %v4011 = vshrl.u32 %v3938, 16
    %v4013 = vrot.slane %v4011, 3
    %v4014 = vshll.u32 %v3938, 16
    %v4016 = vrot.slane %v4014, 4
    %v4017 = vor.u32 %v4013, %v4016
    %v4018 = vsel %vm834, %v3999, %v4017
    %v4020 = vshrl.u32 %v3939, 16
    %v4022 = vrot.slane %v4020, 3
    %v4023 = vshll.u32 %v3939, 16
    %v4025 = vrot.slane %v4023, 4
    %v4026 = vor.u32 %v4022, %v4025
    %v4027 = vsel %vm834, %v4008, %v4026
    %v4029 = vshrl.u32 %v3940, 16
    %v4031 = vrot.slane %v4029, 3
    %v4032 = vshll.u32 %v3940, 16
    %v4034 = vrot.slane %v4032, 4
    %v4035 = vor.u32 %v4031, %v4034
    %v4036 = vsel %vm834, %v4017, %v4035
    %v4038 = vshrl.u32 %v3941, 16
    %v4040 = vrot.slane %v4038, 3
    %v4041 = vshll.u32 %v3941, 16
    %v4043 = vrot.slane %v4041, 4
    %v4044 = vor.u32 %v4040, %v4043
    %v4045 = vsel %vm834, %v4026, %v4044
    %v4047 = vshrl.u32 %v3942, 16
    %v4049 = vrot.slane %v4047, 3
    %v4050 = vshll.u32 %v3942, 16
    %v4052 = vrot.slane %v4050, 4
    %v4053 = vor.u32 %v4049, %v4052
    %v4054 = vsel %vm834, %v4035, %v4053
    %v4056 = vshrl.u32 %v3943, 16
    %v4058 = vrot.slane %v4056, 3
    %v4059 = vshll.u32 %v3943, 16
    %v4061 = vrot.slane %v4059, 4
    %v4062 = vor.u32 %v4058, %v4061
    %v4063 = vsel %vm834, %v4044, %v4062
    %v4065 = vshrl.u32 %v3944, 16
    %v4067 = vrot.slane %v4065, 3
    %v4068 = vshll.u32 %v3944, 16
    %v4070 = vrot.slane %v4068, 4
    %v4071 = vor.u32 %v4067, %v4070
    %v4072 = vsel %vm834, %v4053, %v4071
    %v4074 = vshrl.u32 %v3945, 16
    %v4076 = vrot.slane %v4074, 3
    %v4077 = vshll.u32 %v3945, 16
    %v4079 = vrot.slane %v4077, 4
    %v4080 = vor.u32 %v4076, %v4079
    %v4081 = vsel %vm834, %v4062, %v4080
    %v4083 = vshrl.u32 %v3946, 16
    %v4085 = vrot.slane %v4083, 3
    %v4086 = vshll.u32 %v3946, 16
    %v4088 = vrot.slane %v4086, 4
    %v4089 = vor.u32 %v4085, %v4088
    %v4090 = vsel %vm834, %v4071, %v4089
    %v4092 = vshrl.u32 %v3947, 16
    %v4094 = vrot.slane %v4092, 3
    %v4095 = vshll.u32 %v3947, 16
    %v4097 = vrot.slane %v4095, 4
    %v4098 = vor.u32 %v4094, %v4097
    %v4099 = vsel %vm834, %v4080, %v4098
    %v4101 = vshrl.u32 %v3948, 16
    %v4103 = vrot.slane %v4101, 3
    %v4104 = vshll.u32 %v3948, 16
    %v4106 = vrot.slane %v4104, 4
    %v4107 = vor.u32 %v4103, %v4106
    %v4108 = vsel %vm834, %v4089, %v4107
    %v4157 = vunpack.c.l.b16 %v3848
    %v4158 = vunpack.c.h.b16 %v3848
    %v4159 = vunpack.c.l.b16 %v3849
    %v4160 = vunpack.c.h.b16 %v3849
    %v4161 = vunpack.c.l.b16 %v3850
    %v4162 = vunpack.c.h.b16 %v3850
    %v4163 = vunpack.c.l.b16 %v3851
    %v4164 = vunpack.c.h.b16 %v3851
    %v4165 = vunpack.c.l.b16 %v3852
    %v4166 = vunpack.c.h.b16 %v3852
    %v4167 = vunpack.c.l.b16 %v3853
    %v4168 = vunpack.c.h.b16 %v3853
    %v4169 = vunpack.c.l.b16 %v3854
    %v4170 = vunpack.c.h.b16 %v3854
    %v4171 = vunpack.c.l.b16 %v3855
    %v4172 = vunpack.c.h.b16 %v3855
    %v4173 = vunpack.c.l.b16 %v3856
    %v4174 = vunpack.c.h.b16 %v3856
    %v4175 = vunpack.c.l.b16 %v3857
    %v4176 = vunpack.c.h.b16 %v3857
    %v4177 = vunpack.c.l.b16 %v3858
    %v4178 = vunpack.c.h.b16 %v3858
    %v4179 = vunpack.c.l.b16 %v3859
    %v4180 = vunpack.c.h.b16 %v3859
    %v4181 = vunpack.c.l.b16 %v3860
    %v4182 = vunpack.c.h.b16 %v3860
    %v4183 = vunpack.c.l.b16 %v3861
    %v4184 = vunpack.c.h.b16 %v3861
    %v4185 = vunpack.c.l.b16 %v3862
    %v4186 = vunpack.c.h.b16 %v3862
    %v4187 = vunpack.c.l.b16 %v3863
    %v4188 = vunpack.c.h.b16 %v3863
    %v4189 = vunpack.c.l.b16 %v3864
    %v4190 = vunpack.c.h.b16 %v3864
    %v4191 = vunpack.c.l.b16 %v3865
    %v4192 = vunpack.c.h.b16 %v3865
    %v4193 = vunpack.c.l.b16 %v3866
    %v4194 = vunpack.c.h.b16 %v3866
    %v4195 = vunpack.c.l.b16 %v3867
    %v4196 = vunpack.c.h.b16 %v3867
    %v4197 = vunpack.c.l.b16 %v3868
    %v4198 = vunpack.c.h.b16 %v3868
    %v4199 = vunpack.c.l.b16 %v3869
    %v4200 = vunpack.c.h.b16 %v3869
    %v4201 = vunpack.c.l.b16 %v3870
    %v4202 = vunpack.c.h.b16 %v3870
    %v4203 = vunpack.c.l.b16 %v3871
    %v4204 = vunpack.c.h.b16 %v3871
    %v4205 = vunpack.c.l.b16 %v3872
    %v4206 = vunpack.c.h.b16 %v3872
    %v4207 = vunpack.c.l.b16 %v3873
    %v4208 = vunpack.c.h.b16 %v3873
    %v4209 = vunpack.c.l.b16 %v3874
    %v4210 = vunpack.c.h.b16 %v3874
    %v4211 = vunpack.c.l.b16 %v3875
    %v4212 = vunpack.c.h.b16 %v3875
    %v4213 = vunpack.c.l.b16 %v3876
    %v4214 = vunpack.c.h.b16 %v3876
    %v4215 = vunpack.c.l.b16 %v3877
    %v4216 = vunpack.c.h.b16 %v3877
    %v4217 = vunpack.c.l.b16 %v3878
    %v4218 = vunpack.c.h.b16 %v3878
    %v4219 = vunpack.c.l.b16 %v3879
    %v4220 = vunpack.c.h.b16 %v3879
    %v4221 = vpack.c.b16 %v4159, %v4157
    %v4222 = vpack.c.b16 %v4160, %v4158
    %v4223 = vpack.c.b16 %v4163, %v4161
    %v4224 = vpack.c.b16 %v4164, %v4162
    %v4225 = vpack.c.b16 %v4167, %v4165
    %v4226 = vpack.c.b16 %v4168, %v4166
    %v4227 = vpack.c.b16 %v4171, %v4169
    %v4228 = vpack.c.b16 %v4172, %v4170
    %v4229 = vpack.c.b16 %v4175, %v4173
    %v4230 = vpack.c.b16 %v4176, %v4174
    %v4231 = vpack.c.b16 %v4179, %v4177
    %v4232 = vpack.c.b16 %v4180, %v4178
    %v4233 = vpack.c.b16 %v4183, %v4181
    %v4234 = vpack.c.b16 %v4184, %v4182
    %v4235 = vpack.c.b16 %v4187, %v4185
    %v4236 = vpack.c.b16 %v4188, %v4186
    %v4237 = vpack.c.b16 %v4191, %v4189
    %v4238 = vpack.c.b16 %v4192, %v4190
    %v4239 = vpack.c.b16 %v4195, %v4193
    %v4240 = vpack.c.b16 %v4196, %v4194
    %v4241 = vpack.c.b16 %v4199, %v4197
    %v4242 = vpack.c.b16 %v4200, %v4198
    %v4243 = vpack.c.b16 %v4203, %v4201
    %v4244 = vpack.c.b16 %v4204, %v4202
    %v4245 = vpack.c.b16 %v4207, %v4205
    %v4246 = vpack.c.b16 %v4208, %v4206
    %v4247 = vpack.c.b16 %v4211, %v4209
    %v4248 = vpack.c.b16 %v4212, %v4210
    %v4249 = vpack.c.b16 %v4215, %v4213
    %v4250 = vpack.c.b16 %v4216, %v4214
    %v4251 = vpack.c.b16 %v4219, %v4217
    %v4252 = vpack.c.b16 %v4220, %v4218
    %4285 = vmatprep.subr.bf16.mxu0 %v4222
    %4286 = vmatpush1.bf16.msra.mxu0 %v4221
    %4287 = vmatprep.subr.bf16.mxu0 %v4224
    %4288 = vmatpush1.bf16.msra.mxu0 %v4223
    %4289 = vmatprep.subr.bf16.mxu0 %v4226
    %4290 = vmatpush1.bf16.msra.mxu0 %v4225
    %4291 = vmatprep.subr.bf16.mxu0 %v4228
    %4292 = vmatpush1.bf16.msra.mxu0 %v4227
    %4293 = vmatprep.subr.bf16.mxu0 %v4230
    %4294 = vmatpush1.bf16.msra.mxu0 %v4229
    %4295 = vmatprep.subr.bf16.mxu0 %v4232
    %4296 = vmatpush1.bf16.msra.mxu0 %v4231
    %4297 = vmatprep.subr.bf16.mxu0 %v4234
    %4298 = vmatpush1.bf16.msra.mxu0 %v4233
    %4299 = vmatprep.subr.bf16.mxu0 %v4236
    %4300 = vmatpush1.bf16.msra.mxu0 %v4235
    %4301 = vmatprep.subr.bf16.mxu0 %v4238
    %4302 = vmatpush1.bf16.msra.mxu0 %v4237
    %4303 = vmatprep.subr.bf16.mxu0 %v4240
    %4304 = vmatpush1.bf16.msra.mxu0 %v4239
    %4305 = vmatprep.subr.bf16.mxu0 %v4242
    %4306 = vmatpush1.bf16.msra.mxu0 %v4241
    %4307 = vmatprep.subr.bf16.mxu0 %v4244
    %4308 = vmatpush1.bf16.msra.mxu0 %v4243
    %4309 = vmatprep.subr.bf16.mxu0 %v4246
    %4310 = vmatpush1.bf16.msra.mxu0 %v4245
    %4311 = vmatprep.subr.bf16.mxu0 %v4248
    %4312 = vmatpush1.bf16.msra.mxu0 %v4247
    %4313 = vmatprep.subr.bf16.mxu0 %v4250
    %4314 = vmatpush1.bf16.msra.mxu0 %v4249
    %4315 = vmatprep.subr.bf16.mxu0 %v4252
    %4316 = vmatpush1.bf16.msra.mxu0 %v4251
    %4317 = vmatprep.mubr.bf16.mxu0 %v3982
    %4318 = vmatmul.mubr.bf16.gmra.mrb[0].mxu0 %v3965
    %v4319 = vpop.f32.mrb[0].mxu0
    %v4320 = vadd.f32 0.0, %v4319
    %v4321 = vpop.f32.mrb[0].mxu0
    %v4322 = vadd.f32 0.0, %v4321
    %v4323 = vpop.f32.mrb[0].mxu0
    %v4324 = vadd.f32 0.0, %v4323
    %v4325 = vpop.f32.mrb[0].mxu0
    %v4326 = vadd.f32 0.0, %v4325
    %4327 = vmatprep.mubr.bf16.mxu0 %v4000
    %4328 = vmatmul.mubr.bf16.gmra.mrb[0].mxu0 %v3991
    %v4329 = vpop.f32.mrb[0].mxu0
    %v4330 = vadd.f32 0.0, %v4329
    %v4331 = vpop.f32.mrb[0].mxu0
    %v4332 = vadd.f32 0.0, %v4331
    %v4333 = vpop.f32.mrb[0].mxu0
    %v4334 = vadd.f32 0.0, %v4333
    %v4335 = vpop.f32.mrb[0].mxu0
    %v4336 = vadd.f32 0.0, %v4335
    %4337 = vmatprep.mubr.bf16.mxu0 %v4018
    %4338 = vmatmul.mubr.bf16.gmra.mrb[0].mxu0 %v4009
    %v4339 = vpop.f32.mrb[0].mxu0
    %v4340 = vadd.f32 0.0, %v4339
    %v4341 = vpop.f32.mrb[0].mxu0
    %v4342 = vadd.f32 0.0, %v4341
    %v4343 = vpop.f32.mrb[0].mxu0
    %v4344 = vadd.f32 0.0, %v4343
    %v4345 = vpop.f32.mrb[0].mxu0
    %v4346 = vadd.f32 0.0, %v4345
    %4347 = vmatprep.mubr.bf16.mxu0 %v4036
    %4348 = vmatmul.mubr.bf16.gmra.mrb[0].mxu0 %v4027
    %v4349 = vpop.f32.mrb[0].mxu0
    %v4350 = vadd.f32 0.0, %v4349
    %v4351 = vpop.f32.mrb[0].mxu0
    %v4352 = vadd.f32 0.0, %v4351
    %v4353 = vpop.f32.mrb[0].mxu0
    %v4354 = vadd.f32 0.0, %v4353
    %v4355 = vpop.f32.mrb[0].mxu0
    %v4356 = vadd.f32 0.0, %v4355
    %4357 = vmatprep.mubr.bf16.mxu0 %v4054
    %4358 = vmatmul.mubr.bf16.gmra.mrb[0].mxu0 %v4045
    %v4359 = vpop.f32.mrb[0].mxu0
    %v4360 = vadd.f32 0.0, %v4359
    %v4361 = vpop.f32.mrb[0].mxu0
    %v4362 = vadd.f32 0.0, %v4361
    %v4363 = vpop.f32.mrb[0].mxu0
    %v4364 = vadd.f32 0.0, %v4363
    %v4365 = vpop.f32.mrb[0].mxu0
    %v4366 = vadd.f32 0.0, %v4365
    %4367 = vmatprep.mubr.bf16.mxu0 %v4072
    %4368 = vmatmul.mubr.bf16.gmra.mrb[0].mxu0 %v4063
    %v4369 = vpop.f32.mrb[0].mxu0
    %v4370 = vadd.f32 0.0, %v4369
    %v4371 = vpop.f32.mrb[0].mxu0
    %v4372 = vadd.f32 0.0, %v4371
    %v4373 = vpop.f32.mrb[0].mxu0
    %v4374 = vadd.f32 0.0, %v4373
    %v4375 = vpop.f32.mrb[0].mxu0
    %v4376 = vadd.f32 0.0, %v4375
    %4377 = vmatprep.mubr.bf16.mxu0 %v4090
    %4378 = vmatmul.mubr.bf16.gmra.mrb[0].mxu0 %v4081
    %v4379 = vpop.f32.mrb[0].mxu0
    %v4380 = vadd.f32 0.0, %v4379
    %v4381 = vpop.f32.mrb[0].mxu0
    %v4382 = vadd.f32 0.0, %v4381
    %v4383 = vpop.f32.mrb[0].mxu0
    %v4384 = vadd.f32 0.0, %v4383
    %v4385 = vpop.f32.mrb[0].mxu0
    %v4386 = vadd.f32 0.0, %v4385
    %4387 = vmatprep.mubr.bf16.mxu0 %v4108
    %4388 = vmatmul.mubr.bf16.gmra.mrb[0].mxu0 %v4099
    %v4389 = vpop.f32.mrb[0].mxu0
    %v4390 = vadd.f32 0.0, %v4389
    %v4391 = vpop.f32.mrb[0].mxu0
    %v4392 = vadd.f32 0.0, %v4391
    %v4393 = vpop.f32.mrb[0].mxu0
    %v4394 = vadd.f32 0.0, %v4393
    %v4395 = vpop.f32.mrb[0].mxu0
    %v4396 = vadd.f32 0.0, %v4395
    %4397 = vdwg.mxu0
    %v4415 = vunpack.c.l.b16 %v3780
    %v4416 = vunpack.c.h.b16 %v3780
    %v4417 = vunpack.c.l.b16 %v3781
    %v4418 = vunpack.c.h.b16 %v3781
    %v4419 = vunpack.c.l.b16 %v3782
    %v4420 = vunpack.c.h.b16 %v3782
    %v4421 = vunpack.c.l.b16 %v3783
    %v4422 = vunpack.c.h.b16 %v3783
    %v4423 = vunpack.c.l.b16 %v3784
    %v4424 = vunpack.c.h.b16 %v3784
    %v4425 = vunpack.c.l.b16 %v3785
    %v4426 = vunpack.c.h.b16 %v3785
    %v4427 = vunpack.c.l.b16 %v3786
    %v4428 = vunpack.c.h.b16 %v3786
    %v4429 = vunpack.c.l.b16 %v3787
    %v4430 = vunpack.c.h.b16 %v3787
    %v4431 = vunpack.c.l.b16 %v3788
    %v4432 = vunpack.c.h.b16 %v3788
    %v4433 = vunpack.c.l.b16 %v3789
    %v4434 = vunpack.c.h.b16 %v3789
    %v4435 = vunpack.c.l.b16 %v3790
    %v4436 = vunpack.c.h.b16 %v3790
    %v4437 = vunpack.c.l.b16 %v3791
    %v4438 = vunpack.c.h.b16 %v3791
    %v4439 = vunpack.c.l.b16 %v3792
    %v4440 = vunpack.c.h.b16 %v3792
    %v4441 = vunpack.c.l.b16 %v3793
    %v4442 = vunpack.c.h.b16 %v3793
    %v4443 = vunpack.c.l.b16 %v3794
    %v4444 = vunpack.c.h.b16 %v3794
    %v4445 = vunpack.c.l.b16 %v3795
    %v4446 = vunpack.c.h.b16 %v3795
    %v4447 = vunpack.c.l.b16 %v3796
    %v4448 = vunpack.c.h.b16 %v3796
    %v4449 = vpack.c.b16 %v4417, %v4415
    %v4450 = vpack.c.b16 %v4418, %v4416
    %v4451 = vpack.c.b16 %v4421, %v4419
    %v4452 = vpack.c.b16 %v4422, %v4420
    %v4453 = vpack.c.b16 %v4425, %v4423
    %v4454 = vpack.c.b16 %v4426, %v4424
    %v4455 = vpack.c.b16 %v4429, %v4427
    %v4456 = vpack.c.b16 %v4430, %v4428
    %v4457 = vpack.c.b16 %v4433, %v4431
    %v4458 = vpack.c.b16 %v4434, %v4432
    %v4459 = vpack.c.b16 %v4437, %v4435
    %v4460 = vpack.c.b16 %v4438, %v4436
    %v4461 = vpack.c.b16 %v4441, %v4439
    %v4462 = vpack.c.b16 %v4442, %v4440
    %v4463 = vpack.c.b16 %v4445, %v4443
    %v4464 = vpack.c.b16 %v4446, %v4444
    %v4465 = vpack.c.b16 %v4447, %v4447
    %v4466 = vpack.c.b16 %v4448, %v4448
    %v4467 = vrot.slane %v4449, 3
    %v4468 = vrot.slane %v4451, 3
    %v4469 = vsel %vm1353, %v4467, %v4468
    %v4470 = vrot.slane %v4450, 3
    %v4471 = vrot.slane %v4452, 3
    %v4472 = vsel %vm1353, %v4470, %v4471
    %v4473 = vrot.slane %v4453, 3
    %v4474 = vsel %vm1353, %v4468, %v4473
    %v4475 = vrot.slane %v4454, 3
    %v4476 = vsel %vm1353, %v4471, %v4475
    %v4477 = vrot.slane %v4455, 3
    %v4478 = vsel %vm1353, %v4473, %v4477
    %v4479 = vrot.slane %v4456, 3
    %v4480 = vsel %vm1353, %v4475, %v4479
    %v4481 = vrot.slane %v4457, 3
    %v4482 = vsel %vm1353, %v4477, %v4481
    %v4483 = vrot.slane %v4458, 3
    %v4484 = vsel %vm1353, %v4479, %v4483
    %v4485 = vrot.slane %v4459, 3
    %v4486 = vsel %vm1353, %v4481, %v4485
    %v4487 = vrot.slane %v4460, 3
    %v4488 = vsel %vm1353, %v4483, %v4487
    %v4489 = vrot.slane %v4461, 3
    %v4490 = vsel %vm1353, %v4485, %v4489
    %v4491 = vrot.slane %v4462, 3
    %v4492 = vsel %vm1353, %v4487, %v4491
    %v4493 = vrot.slane %v4463, 3
    %v4494 = vsel %vm1353, %v4489, %v4493
    %v4495 = vrot.slane %v4464, 3
    %v4496 = vsel %vm1353, %v4491, %v4495
    %v4497 = vrot.slane %v4465, 3
    %v4498 = vsel %vm1353, %v4493, %v4497
    %v4499 = vrot.slane %v4466, 3
    %v4500 = vsel %vm1353, %v4495, %v4499
    %v4549 = vunpack.c.l.b16 %v3797
    %v4550 = vunpack.c.h.b16 %v3797
    %v4551 = vunpack.c.l.b16 %v3798
    %v4552 = vunpack.c.h.b16 %v3798
    %v4553 = vunpack.c.l.b16 %v3799
    %v4554 = vunpack.c.h.b16 %v3799
    %v4555 = vunpack.c.l.b16 %v3800
    %v4556 = vunpack.c.h.b16 %v3800
    %v4557 = vunpack.c.l.b16 %v3801
    %v4558 = vunpack.c.h.b16 %v3801
    %v4559 = vunpack.c.l.b16 %v3802
    %v4560 = vunpack.c.h.b16 %v3802
    %v4561 = vunpack.c.l.b16 %v3803
    %v4562 = vunpack.c.h.b16 %v3803
    %v4563 = vunpack.c.l.b16 %v3804
    %v4564 = vunpack.c.h.b16 %v3804
    %v4565 = vunpack.c.l.b16 %v3805
    %v4566 = vunpack.c.h.b16 %v3805
    %v4567 = vunpack.c.l.b16 %v3806
    %v4568 = vunpack.c.h.b16 %v3806
    %v4569 = vunpack.c.l.b16 %v3807
    %v4570 = vunpack.c.h.b16 %v3807
    %v4571 = vunpack.c.l.b16 %v3808
    %v4572 = vunpack.c.h.b16 %v3808
    %v4573 = vunpack.c.l.b16 %v3809
    %v4574 = vunpack.c.h.b16 %v3809
    %v4575 = vunpack.c.l.b16 %v3810
    %v4576 = vunpack.c.h.b16 %v3810
    %v4577 = vunpack.c.l.b16 %v3811
    %v4578 = vunpack.c.h.b16 %v3811
    %v4579 = vunpack.c.l.b16 %v3812
    %v4580 = vunpack.c.h.b16 %v3812
    %v4581 = vunpack.c.l.b16 %v3813
    %v4582 = vunpack.c.h.b16 %v3813
    %v4583 = vunpack.c.l.b16 %v3814
    %v4584 = vunpack.c.h.b16 %v3814
    %v4585 = vunpack.c.l.b16 %v3815
    %v4586 = vunpack.c.h.b16 %v3815
    %v4587 = vunpack.c.l.b16 %v3816
    %v4588 = vunpack.c.h.b16 %v3816
    %v4589 = vunpack.c.l.b16 %v3817
    %v4590 = vunpack.c.h.b16 %v3817
    %v4591 = vunpack.c.l.b16 %v3818
    %v4592 = vunpack.c.h.b16 %v3818
    %v4593 = vunpack.c.l.b16 %v3819
    %v4594 = vunpack.c.h.b16 %v3819
    %v4595 = vunpack.c.l.b16 %v3820
    %v4596 = vunpack.c.h.b16 %v3820
    %v4597 = vunpack.c.l.b16 %v3821
    %v4598 = vunpack.c.h.b16 %v3821
    %v4599 = vunpack.c.l.b16 %v3822
    %v4600 = vunpack.c.h.b16 %v3822
    %v4601 = vunpack.c.l.b16 %v3823
    %v4602 = vunpack.c.h.b16 %v3823
    %v4603 = vunpack.c.l.b16 %v3824
    %v4604 = vunpack.c.h.b16 %v3824
    %v4605 = vunpack.c.l.b16 %v3825
    %v4606 = vunpack.c.h.b16 %v3825
    %v4607 = vunpack.c.l.b16 %v3826
    %v4608 = vunpack.c.h.b16 %v3826
    %v4609 = vunpack.c.l.b16 %v3827
    %v4610 = vunpack.c.h.b16 %v3827
    %v4611 = vunpack.c.l.b16 %v3828
    %v4612 = vunpack.c.h.b16 %v3828
    %v4613 = vpack.c.b16 %v4551, %v4549
    %v4614 = vpack.c.b16 %v4552, %v4550
    %v4615 = vpack.c.b16 %v4555, %v4553
    %v4616 = vpack.c.b16 %v4556, %v4554
    %v4617 = vpack.c.b16 %v4559, %v4557
    %v4618 = vpack.c.b16 %v4560, %v4558
    %v4619 = vpack.c.b16 %v4563, %v4561
    %v4620 = vpack.c.b16 %v4564, %v4562
    %v4621 = vpack.c.b16 %v4567, %v4565
    %v4622 = vpack.c.b16 %v4568, %v4566
    %v4623 = vpack.c.b16 %v4571, %v4569
    %v4624 = vpack.c.b16 %v4572, %v4570
    %v4625 = vpack.c.b16 %v4575, %v4573
    %v4626 = vpack.c.b16 %v4576, %v4574
    %v4627 = vpack.c.b16 %v4579, %v4577
    %v4628 = vpack.c.b16 %v4580, %v4578
    %v4629 = vpack.c.b16 %v4583, %v4581
    %v4630 = vpack.c.b16 %v4584, %v4582
    %v4631 = vpack.c.b16 %v4587, %v4585
    %v4632 = vpack.c.b16 %v4588, %v4586
    %v4633 = vpack.c.b16 %v4591, %v4589
    %v4634 = vpack.c.b16 %v4592, %v4590
    %v4635 = vpack.c.b16 %v4595, %v4593
    %v4636 = vpack.c.b16 %v4596, %v4594
    %v4637 = vpack.c.b16 %v4599, %v4597
    %v4638 = vpack.c.b16 %v4600, %v4598
    %v4639 = vpack.c.b16 %v4603, %v4601
    %v4640 = vpack.c.b16 %v4604, %v4602
    %v4641 = vpack.c.b16 %v4607, %v4605
    %v4642 = vpack.c.b16 %v4608, %v4606
    %v4643 = vpack.c.b16 %v4611, %v4609
    %v4644 = vpack.c.b16 %v4612, %v4610
    %4677 = vmatprep.subr.bf16.mxu0 %v4614
    %4678 = vmatpush1.bf16.msra.mxu0 %v4613
    %4679 = vmatprep.subr.bf16.mxu0 %v4616
    %4680 = vmatpush1.bf16.msra.mxu0 %v4615
    %4681 = vmatprep.subr.bf16.mxu0 %v4618
    %4682 = vmatpush1.bf16.msra.mxu0 %v4617
    %4683 = vmatprep.subr.bf16.mxu0 %v4620
    %4684 = vmatpush1.bf16.msra.mxu0 %v4619
    %4685 = vmatprep.subr.bf16.mxu0 %v4622
    %4686 = vmatpush1.bf16.msra.mxu0 %v4621
    %4687 = vmatprep.subr.bf16.mxu0 %v4624
    %4688 = vmatpush1.bf16.msra.mxu0 %v4623
    %4689 = vmatprep.subr.bf16.mxu0 %v4626
    %4690 = vmatpush1.bf16.msra.mxu0 %v4625
    %4691 = vmatprep.subr.bf16.mxu0 %v4628
    %4692 = vmatpush1.bf16.msra.mxu0 %v4627
    %4693 = vmatprep.subr.bf16.mxu0 %v4630
    %4694 = vmatpush1.bf16.msra.mxu0 %v4629
    %4695 = vmatprep.subr.bf16.mxu0 %v4632
    %4696 = vmatpush1.bf16.msra.mxu0 %v4631
    %4697 = vmatprep.subr.bf16.mxu0 %v4634
    %4698 = vmatpush1.bf16.msra.mxu0 %v4633
    %4699 = vmatprep.subr.bf16.mxu0 %v4636
    %4700 = vmatpush1.bf16.msra.mxu0 %v4635
    %4701 = vmatprep.subr.bf16.mxu0 %v4638
    %4702 = vmatpush1.bf16.msra.mxu0 %v4637
    %4703 = vmatprep.subr.bf16.mxu0 %v4640
    %4704 = vmatpush1.bf16.msra.mxu0 %v4639
    %4705 = vmatprep.subr.bf16.mxu0 %v4642
    %4706 = vmatpush1.bf16.msra.mxu0 %v4641
    %4707 = vmatprep.subr.bf16.mxu0 %v4644
    %4708 = vmatpush1.bf16.msra.mxu0 %v4643
    %4709 = vmatprep.mubr.bf16.mxu0 %v4472
    %4710 = vmatmul.mubr.bf16.gmra.mrb[0].mxu0 %v4469
    %v4711 = vpop.f32.mrb[0].mxu0
    %v4712 = vadd.f32 %v4320, %v4711
    %v4713 = vpop.f32.mrb[0].mxu0
    %v4714 = vadd.f32 %v4322, %v4713
    %v4715 = vpop.f32.mrb[0].mxu0
    %v4716 = vadd.f32 %v4324, %v4715
    %v4717 = vpop.f32.mrb[0].mxu0
    %v4718 = vadd.f32 %v4326, %v4717
    %4719 = vmatprep.mubr.bf16.mxu0 %v4476
    %4720 = vmatmul.mubr.bf16.gmra.mrb[0].mxu0 %v4474
    %v4721 = vpop.f32.mrb[0].mxu0
    %v4722 = vadd.f32 %v4330, %v4721
    %v4723 = vpop.f32.mrb[0].mxu0
    %v4724 = vadd.f32 %v4332, %v4723
    %v4725 = vpop.f32.mrb[0].mxu0
    %v4726 = vadd.f32 %v4334, %v4725
    %v4727 = vpop.f32.mrb[0].mxu0
    %v4728 = vadd.f32 %v4336, %v4727
    %4729 = vmatprep.mubr.bf16.mxu0 %v4480
    %4730 = vmatmul.mubr.bf16.gmra.mrb[0].mxu0 %v4478
    %v4731 = vpop.f32.mrb[0].mxu0
    %v4732 = vadd.f32 %v4340, %v4731
    %v4733 = vpop.f32.mrb[0].mxu0
    %v4734 = vadd.f32 %v4342, %v4733
    %v4735 = vpop.f32.mrb[0].mxu0
    %v4736 = vadd.f32 %v4344, %v4735
    %v4737 = vpop.f32.mrb[0].mxu0
    %v4738 = vadd.f32 %v4346, %v4737
    %4739 = vmatprep.mubr.bf16.mxu0 %v4484
    %4740 = vmatmul.mubr.bf16.gmra.mrb[0].mxu0 %v4482
    %v4741 = vpop.f32.mrb[0].mxu0
    %v4742 = vadd.f32 %v4350, %v4741
    %v4743 = vpop.f32.mrb[0].mxu0
    %v4744 = vadd.f32 %v4352, %v4743
    %v4745 = vpop.f32.mrb[0].mxu0
    %v4746 = vadd.f32 %v4354, %v4745
    %v4747 = vpop.f32.mrb[0].mxu0
    %v4748 = vadd.f32 %v4356, %v4747
    %4749 = vmatprep.mubr.bf16.mxu0 %v4488
    %4750 = vmatmul.mubr.bf16.gmra.mrb[0].mxu0 %v4486
    %v4751 = vpop.f32.mrb[0].mxu0
    %v4752 = vadd.f32 %v4360, %v4751
    %v4753 = vpop.f32.mrb[0].mxu0
    %v4754 = vadd.f32 %v4362, %v4753
    %v4755 = vpop.f32.mrb[0].mxu0
    %v4756 = vadd.f32 %v4364, %v4755
    %v4757 = vpop.f32.mrb[0].mxu0
    %v4758 = vadd.f32 %v4366, %v4757
    %4759 = vmatprep.mubr.bf16.mxu0 %v4492
    %4760 = vmatmul.mubr.bf16.gmra.mrb[0].mxu0 %v4490
    %v4761 = vpop.f32.mrb[0].mxu0
    %v4762 = vadd.f32 %v4370, %v4761
    %v4763 = vpop.f32.mrb[0].mxu0
    %v4764 = vadd.f32 %v4372, %v4763
    %v4765 = vpop.f32.mrb[0].mxu0
    %v4766 = vadd.f32 %v4374, %v4765
    %v4767 = vpop.f32.mrb[0].mxu0
    %v4768 = vadd.f32 %v4376, %v4767
    %4769 = vmatprep.mubr.bf16.mxu0 %v4496
    %4770 = vmatmul.mubr.bf16.gmra.mrb[0].mxu0 %v4494
    %v4771 = vpop.f32.mrb[0].mxu0
    %v4772 = vadd.f32 %v4380, %v4771
    %v4773 = vpop.f32.mrb[0].mxu0
    %v4774 = vadd.f32 %v4382, %v4773
    %v4775 = vpop.f32.mrb[0].mxu0
    %v4776 = vadd.f32 %v4384, %v4775
    %v4777 = vpop.f32.mrb[0].mxu0
    %v4778 = vadd.f32 %v4386, %v4777
    %4779 = vmatprep.mubr.bf16.mxu0 %v4500
    %4780 = vmatmul.mubr.bf16.gmra.mrb[0].mxu0 %v4498
    %v4781 = vpop.f32.mrb[0].mxu0
    %v4782 = vadd.f32 %v4390, %v4781
    %v4783 = vpop.f32.mrb[0].mxu0
    %v4784 = vadd.f32 %v4392, %v4783
    %v4785 = vpop.f32.mrb[0].mxu0
    %v4786 = vadd.f32 %v4394, %v4785
    %v4787 = vpop.f32.mrb[0].mxu0
    %v4788 = vadd.f32 %v4396, %v4787
    %4789 = vdwg.mxu0
    %s4790 = scalar_lea.vmem [#allocation8], 512
    %v4791 = vld [vmem:[%s4790] sm:$0xff]
    %v4792 = vld [vmem:[%s4790 + $0x8] sm:$0xff]
    %v4793 = vld [vmem:[%s4790 + $0x10] sm:$0xff]
    %v4794 = vld [vmem:[%s4790 + $0x18] sm:$0xff]
    %v4795 = vld [vmem:[%s4790 + $0x20] sm:$0xff]
    %v4796 = vld [vmem:[%s4790 + $0x28] sm:$0xff]
    %v4797 = vld [vmem:[%s4790 + $0x30] sm:$0xff]
    %v4798 = vld [vmem:[%s4790 + $0x38] sm:$0xff]
    %v4799 = vld [vmem:[%s4790 + $0x40] sm:$0xff]
    %v4800 = vld [vmem:[%s4790 + $0x48] sm:$0xff]
    %v4801 = vld [vmem:[%s4790 + $0x50] sm:$0xff]
    %v4802 = vld [vmem:[%s4790 + $0x58] sm:$0xff]
    %v4803 = vld [vmem:[%s4790 + $0x60] sm:$0xff]
    %v4804 = vld [vmem:[%s4790 + $0x68] sm:$0xff]
    %v4805 = vld [vmem:[%s4790 + $0x70] sm:$0xff]
    %v4806 = vld [vmem:[%s4790 + $0x78] sm:$0xff]
    %v4807 = vld [vmem:[%s4790 + $0x80] sm:$0xff]
    %v4808 = vld [vmem:[%s4790 + $0x88] sm:$0xff]
    %v4809 = vld [vmem:[%s4790 + $0x90] sm:$0xff]
    %v4810 = vld [vmem:[%s4790 + $0x98] sm:$0xff]
    %v4811 = vld [vmem:[%s4790 + $0xa0] sm:$0xff]
    %v4812 = vld [vmem:[%s4790 + $0xa8] sm:$0xff]
    %v4813 = vld [vmem:[%s4790 + $0xb0] sm:$0xff]
    %v4814 = vld [vmem:[%s4790 + $0xb8] sm:$0xff]
    %v4815 = vld [vmem:[%s4790 + $0xc0] sm:$0xff]
    %v4816 = vld [vmem:[%s4790 + $0xc8] sm:$0xff]
    %v4817 = vld [vmem:[%s4790 + $0xd0] sm:$0xff]
    %v4818 = vld [vmem:[%s4790 + $0xd8] sm:$0xff]
    %v4819 = vld [vmem:[%s4790 + $0xe0] sm:$0xff]
    %v4820 = vld [vmem:[%s4790 + $0xe8] sm:$0xff]
    %v4821 = vld [vmem:[%s4790 + $0xf0] sm:$0xff]
    %v4822 = vld [vmem:[%s4790 + $0xf8] sm:$0xff]
    %v4839 = vunpack.c.l.b16 %v3764
    %v4840 = vunpack.c.h.b16 %v3764
    %v4841 = vunpack.c.l.b16 %v3765
    %v4842 = vunpack.c.h.b16 %v3765
    %v4843 = vunpack.c.l.b16 %v3766
    %v4844 = vunpack.c.h.b16 %v3766
    %v4845 = vunpack.c.l.b16 %v3767
    %v4846 = vunpack.c.h.b16 %v3767
    %v4847 = vunpack.c.l.b16 %v3768
    %v4848 = vunpack.c.h.b16 %v3768
    %v4849 = vunpack.c.l.b16 %v3769
    %v4850 = vunpack.c.h.b16 %v3769
    %v4851 = vunpack.c.l.b16 %v3770
    %v4852 = vunpack.c.h.b16 %v3770
    %v4853 = vunpack.c.l.b16 %v3771
    %v4854 = vunpack.c.h.b16 %v3771
    %v4855 = vunpack.c.l.b16 %v3772
    %v4856 = vunpack.c.h.b16 %v3772
    %v4857 = vunpack.c.l.b16 %v3773
    %v4858 = vunpack.c.h.b16 %v3773
    %v4859 = vunpack.c.l.b16 %v3774
    %v4860 = vunpack.c.h.b16 %v3774
    %v4861 = vunpack.c.l.b16 %v3775
    %v4862 = vunpack.c.h.b16 %v3775
    %v4863 = vunpack.c.l.b16 %v3776
    %v4864 = vunpack.c.h.b16 %v3776
    %v4865 = vunpack.c.l.b16 %v3777
    %v4866 = vunpack.c.h.b16 %v3777
    %v4867 = vunpack.c.l.b16 %v3778
    %v4868 = vunpack.c.h.b16 %v3778
    %v4869 = vunpack.c.l.b16 %v3829
    %v4870 = vunpack.c.h.b16 %v3829
    %v4871 = vpack.c.b16 %v4841, %v4839
    %v4872 = vpack.c.b16 %v4842, %v4840
    %v4873 = vpack.c.b16 %v4845, %v4843
    %v4874 = vpack.c.b16 %v4846, %v4844
    %v4875 = vpack.c.b16 %v4849, %v4847
    %v4876 = vpack.c.b16 %v4850, %v4848
    %v4877 = vpack.c.b16 %v4853, %v4851
    %v4878 = vpack.c.b16 %v4854, %v4852
    %v4879 = vpack.c.b16 %v4857, %v4855
    %v4880 = vpack.c.b16 %v4858, %v4856
    %v4881 = vpack.c.b16 %v4861, %v4859
    %v4882 = vpack.c.b16 %v4862, %v4860
    %v4883 = vpack.c.b16 %v4865, %v4863
    %v4884 = vpack.c.b16 %v4866, %v4864
    %v4885 = vpack.c.b16 %v4869, %v4867
    %v4886 = vpack.c.b16 %v4870, %v4868
    %v4935 = vunpack.c.l.b16 %v4791
    %v4936 = vunpack.c.h.b16 %v4791
    %v4937 = vunpack.c.l.b16 %v4792
    %v4938 = vunpack.c.h.b16 %v4792
    %v4939 = vunpack.c.l.b16 %v4793
    %v4940 = vunpack.c.h.b16 %v4793
    %v4941 = vunpack.c.l.b16 %v4794
    %v4942 = vunpack.c.h.b16 %v4794
    %v4943 = vunpack.c.l.b16 %v4795
    %v4944 = vunpack.c.h.b16 %v4795
    %v4945 = vunpack.c.l.b16 %v4796
    %v4946 = vunpack.c.h.b16 %v4796
    %v4947 = vunpack.c.l.b16 %v4797
    %v4948 = vunpack.c.h.b16 %v4797
    %v4949 = vunpack.c.l.b16 %v4798
    %v4950 = vunpack.c.h.b16 %v4798
    %v4951 = vunpack.c.l.b16 %v4799
    %v4952 = vunpack.c.h.b16 %v4799
    %v4953 = vunpack.c.l.b16 %v4800
    %v4954 = vunpack.c.h.b16 %v4800
    %v4955 = vunpack.c.l.b16 %v4801
    %v4956 = vunpack.c.h.b16 %v4801
    %v4957 = vunpack.c.l.b16 %v4802
    %v4958 = vunpack.c.h.b16 %v4802
    %v4959 = vunpack.c.l.b16 %v4803
    %v4960 = vunpack.c.h.b16 %v4803
    %v4961 = vunpack.c.l.b16 %v4804
    %v4962 = vunpack.c.h.b16 %v4804
    %v4963 = vunpack.c.l.b16 %v4805
    %v4964 = vunpack.c.h.b16 %v4805
    %v4965 = vunpack.c.l.b16 %v4806
    %v4966 = vunpack.c.h.b16 %v4806
    %v4967 = vunpack.c.l.b16 %v4807
    %v4968 = vunpack.c.h.b16 %v4807
    %v4969 = vunpack.c.l.b16 %v4808
    %v4970 = vunpack.c.h.b16 %v4808
    %v4971 = vunpack.c.l.b16 %v4809
    %v4972 = vunpack.c.h.b16 %v4809
    %v4973 = vunpack.c.l.b16 %v4810
    %v4974 = vunpack.c.h.b16 %v4810
    %v4975 = vunpack.c.l.b16 %v4811
    %v4976 = vunpack.c.h.b16 %v4811
    %v4977 = vunpack.c.l.b16 %v4812
    %v4978 = vunpack.c.h.b16 %v4812
    %v4979 = vunpack.c.l.b16 %v4813
    %v4980 = vunpack.c.h.b16 %v4813
    %v4981 = vunpack.c.l.b16 %v4814
    %v4982 = vunpack.c.h.b16 %v4814
    %v4983 = vunpack.c.l.b16 %v4815
    %v4984 = vunpack.c.h.b16 %v4815
    %v4985 = vunpack.c.l.b16 %v4816
    %v4986 = vunpack.c.h.b16 %v4816
    %v4987 = vunpack.c.l.b16 %v4817
    %v4988 = vunpack.c.h.b16 %v4817
    %v4989 = vunpack.c.l.b16 %v4818
    %v4990 = vunpack.c.h.b16 %v4818
    %v4991 = vunpack.c.l.b16 %v4819
    %v4992 = vunpack.c.h.b16 %v4819
    %v4993 = vunpack.c.l.b16 %v4820
    %v4994 = vunpack.c.h.b16 %v4820
    %v4995 = vunpack.c.l.b16 %v4821
    %v4996 = vunpack.c.h.b16 %v4821
    %v4997 = vunpack.c.l.b16 %v4822
    %v4998 = vunpack.c.h.b16 %v4822
    %v4999 = vpack.c.b16 %v4937, %v4935
    %v5000 = vpack.c.b16 %v4938, %v4936
    %v5001 = vpack.c.b16 %v4941, %v4939
    %v5002 = vpack.c.b16 %v4942, %v4940
    %v5003 = vpack.c.b16 %v4945, %v4943
    %v5004 = vpack.c.b16 %v4946, %v4944
    %v5005 = vpack.c.b16 %v4949, %v4947
    %v5006 = vpack.c.b16 %v4950, %v4948
    %v5007 = vpack.c.b16 %v4953, %v4951
    %v5008 = vpack.c.b16 %v4954, %v4952
    %v5009 = vpack.c.b16 %v4957, %v4955
    %v5010 = vpack.c.b16 %v4958, %v4956
    %v5011 = vpack.c.b16 %v4961, %v4959
    %v5012 = vpack.c.b16 %v4962, %v4960
    %v5013 = vpack.c.b16 %v4965, %v4963
    %v5014 = vpack.c.b16 %v4966, %v4964
    %v5015 = vpack.c.b16 %v4969, %v4967
    %v5016 = vpack.c.b16 %v4970, %v4968
    %v5017 = vpack.c.b16 %v4973, %v4971
    %v5018 = vpack.c.b16 %v4974, %v4972
    %v5019 = vpack.c.b16 %v4977, %v4975
    %v5020 = vpack.c.b16 %v4978, %v4976
    %v5021 = vpack.c.b16 %v4981, %v4979
    %v5022 = vpack.c.b16 %v4982, %v4980
    %v5023 = vpack.c.b16 %v4985, %v4983
    %v5024 = vpack.c.b16 %v4986, %v4984
    %v5025 = vpack.c.b16 %v4989, %v4987
    %v5026 = vpack.c.b16 %v4990, %v4988
    %v5027 = vpack.c.b16 %v4993, %v4991
    %v5028 = vpack.c.b16 %v4994, %v4992
    %v5029 = vpack.c.b16 %v4997, %v4995
    %v5030 = vpack.c.b16 %v4998, %v4996
    %5063 = vmatprep.subr.bf16.mxu0 %v5000
    %5064 = vmatpush1.bf16.msra.mxu0 %v4999
    %5065 = vmatprep.subr.bf16.mxu0 %v5002
    %5066 = vmatpush1.bf16.msra.mxu0 %v5001
    %5067 = vmatprep.subr.bf16.mxu0 %v5004
    %5068 = vmatpush1.bf16.msra.mxu0 %v5003
    %5069 = vmatprep.subr.bf16.mxu0 %v5006
    %5070 = vmatpush1.bf16.msra.mxu0 %v5005
    %5071 = vmatprep.subr.bf16.mxu0 %v5008
    %5072 = vmatpush1.bf16.msra.mxu0 %v5007
    %5073 = vmatprep.subr.bf16.mxu0 %v5010
    %5074 = vmatpush1.bf16.msra.mxu0 %v5009
    %5075 = vmatprep.subr.bf16.mxu0 %v5012
    %5076 = vmatpush1.bf16.msra.mxu0 %v5011
    %5077 = vmatprep.subr.bf16.mxu0 %v5014
    %5078 = vmatpush1.bf16.msra.mxu0 %v5013
    %5079 = vmatprep.subr.bf16.mxu0 %v5016
    %5080 = vmatpush1.bf16.msra.mxu0 %v5015
    %5081 = vmatprep.subr.bf16.mxu0 %v5018
    %5082 = vmatpush1.bf16.msra.mxu0 %v5017
    %5083 = vmatprep.subr.bf16.mxu0 %v5020
    %5084 = vmatpush1.bf16.msra.mxu0 %v5019
    %5085 = vmatprep.subr.bf16.mxu0 %v5022
    %5086 = vmatpush1.bf16.msra.mxu0 %v5021
    %5087 = vmatprep.subr.bf16.mxu0 %v5024
    %5088 = vmatpush1.bf16.msra.mxu0 %v5023
    %5089 = vmatprep.subr.bf16.mxu0 %v5026
    %5090 = vmatpush1.bf16.msra.mxu0 %v5025
    %5091 = vmatprep.subr.bf16.mxu0 %v5028
    %5092 = vmatpush1.bf16.msra.mxu0 %v5027
    %5093 = vmatprep.subr.bf16.mxu0 %v5030
    %5094 = vmatpush1.bf16.msra.mxu0 %v5029
    %5095 = vmatprep.mubr.bf16.mxu0 %v4872
    %5096 = vmatmul.mubr.bf16.gmra.mrb[0].mxu0 %v4871
    %v5097 = vpop.f32.mrb[0].mxu0
    %v5098 = vadd.f32 0.0, %v5097
    %v5099 = vpop.f32.mrb[0].mxu0
    %v5100 = vadd.f32 0.0, %v5099
    %v5101 = vpop.f32.mrb[0].mxu0
    %v5102 = vadd.f32 0.0, %v5101
    %v5103 = vpop.f32.mrb[0].mxu0
    %v5104 = vadd.f32 0.0, %v5103
    %5105 = vmatprep.mubr.bf16.mxu0 %v4874
    %5106 = vmatmul.mubr.bf16.gmra.mrb[0].mxu0 %v4873
    %v5107 = vpop.f32.mrb[0].mxu0
    %v5108 = vadd.f32 0.0, %v5107
    %v5109 = vpop.f32.mrb[0].mxu0
    %v5110 = vadd.f32 0.0, %v5109
    %v5111 = vpop.f32.mrb[0].mxu0
    %v5112 = vadd.f32 0.0, %v5111
    %v5113 = vpop.f32.mrb[0].mxu0
    %v5114 = vadd.f32 0.0, %v5113
    %5115 = vmatprep.mubr.bf16.mxu0 %v4876
    %5116 = vmatmul.mubr.bf16.gmra.mrb[0].mxu0 %v4875
    %v5117 = vpop.f32.mrb[0].mxu0
    %v5118 = vadd.f32 0.0, %v5117
    %v5119 = vpop.f32.mrb[0].mxu0
    %v5120 = vadd.f32 0.0, %v5119
    %v5121 = vpop.f32.mrb[0].mxu0
    %v5122 = vadd.f32 0.0, %v5121
    %v5123 = vpop.f32.mrb[0].mxu0
    %v5124 = vadd.f32 0.0, %v5123
    %5125 = vmatprep.mubr.bf16.mxu0 %v4878
    %5126 = vmatmul.mubr.bf16.gmra.mrb[0].mxu0 %v4877
    %v5127 = vpop.f32.mrb[0].mxu0
    %v5128 = vadd.f32 0.0, %v5127
    %v5129 = vpop.f32.mrb[0].mxu0
    %v5130 = vadd.f32 0.0, %v5129
    %v5131 = vpop.f32.mrb[0].mxu0
    %v5132 = vadd.f32 0.0, %v5131
    %v5133 = vpop.f32.mrb[0].mxu0
    %v5134 = vadd.f32 0.0, %v5133
    %5135 = vmatprep.mubr.bf16.mxu0 %v4880
    %5136 = vmatmul.mubr.bf16.gmra.mrb[0].mxu0 %v4879
    %v5137 = vpop.f32.mrb[0].mxu0
    %v5138 = vadd.f32 0.0, %v5137
    %v5139 = vpop.f32.mrb[0].mxu0
    %v5140 = vadd.f32 0.0, %v5139
    %v5141 = vpop.f32.mrb[0].mxu0
    %v5142 = vadd.f32 0.0, %v5141
    %v5143 = vpop.f32.mrb[0].mxu0
    %v5144 = vadd.f32 0.0, %v5143
    %5145 = vmatprep.mubr.bf16.mxu0 %v4882
    %5146 = vmatmul.mubr.bf16.gmra.mrb[0].mxu0 %v4881
    %v5147 = vpop.f32.mrb[0].mxu0
    %v5148 = vadd.f32 0.0, %v5147
    %v5149 = vpop.f32.mrb[0].mxu0
    %v5150 = vadd.f32 0.0, %v5149
    %v5151 = vpop.f32.mrb[0].mxu0
    %v5152 = vadd.f32 0.0, %v5151
    %v5153 = vpop.f32.mrb[0].mxu0
    %v5154 = vadd.f32 0.0, %v5153
    %5155 = vmatprep.mubr.bf16.mxu0 %v4884
    %5156 = vmatmul.mubr.bf16.gmra.mrb[0].mxu0 %v4883
    %v5157 = vpop.f32.mrb[0].mxu0
    %v5158 = vadd.f32 0.0, %v5157
    %v5159 = vpop.f32.mrb[0].mxu0
    %v5160 = vadd.f32 0.0, %v5159
    %v5161 = vpop.f32.mrb[0].mxu0
    %v5162 = vadd.f32 0.0, %v5161
    %v5163 = vpop.f32.mrb[0].mxu0
    %v5164 = vadd.f32 0.0, %v5163
    %5165 = vmatprep.mubr.bf16.mxu0 %v4886
    %5166 = vmatmul.mubr.bf16.gmra.mrb[0].mxu0 %v4885
    %v5167 = vpop.f32.mrb[0].mxu0
    %v5168 = vadd.f32 0.0, %v5167
    %v5169 = vpop.f32.mrb[0].mxu0
    %v5170 = vadd.f32 0.0, %v5169
    %v5171 = vpop.f32.mrb[0].mxu0
    %v5172 = vadd.f32 0.0, %v5171
    %v5173 = vpop.f32.mrb[0].mxu0
    %v5174 = vadd.f32 0.0, %v5173
    %5175 = vdwg.mxu0
    %v5176 = vadd.f32 %v4712, %v5098
    %v5177 = vadd.f32 %v4714, %v5100
    %v5178 = vadd.f32 %v4716, %v5102
    %v5179 = vadd.f32 %v4718, %v5104
    %v5180 = vadd.f32 %v4722, %v5108
    %v5181 = vadd.f32 %v4724, %v5110
    %v5182 = vadd.f32 %v4726, %v5112
    %v5183 = vadd.f32 %v4728, %v5114
    %v5184 = vadd.f32 %v4732, %v5118
    %v5185 = vadd.f32 %v4734, %v5120
    %v5186 = vadd.f32 %v4736, %v5122
    %v5187 = vadd.f32 %v4738, %v5124
    %v5188 = vadd.f32 %v4742, %v5128
    %v5189 = vadd.f32 %v4744, %v5130
    %v5190 = vadd.f32 %v4746, %v5132
    %v5191 = vadd.f32 %v4748, %v5134
    %v5192 = vadd.f32 %v4752, %v5138
    %v5193 = vadd.f32 %v4754, %v5140
    %v5194 = vadd.f32 %v4756, %v5142
    %v5195 = vadd.f32 %v4758, %v5144
    %v5196 = vadd.f32 %v4762, %v5148
    %v5197 = vadd.f32 %v4764, %v5150
    %v5198 = vadd.f32 %v4766, %v5152
    %v5199 = vadd.f32 %v4768, %v5154
    %v5200 = vadd.f32 %v4772, %v5158
    %v5201 = vadd.f32 %v4774, %v5160
    %v5202 = vadd.f32 %v4776, %v5162
    %v5203 = vadd.f32 %v4778, %v5164
    %v5204 = vadd.f32 %v4782, %v5168
    %v5205 = vadd.f32 %v4784, %v5170
    %v5206 = vadd.f32 %v4786, %v5172
    %v5207 = vadd.f32 %v4788, %v5174
    %v5208 = vld [vmem:[#allocation2 + $0x10] sm:$0xff]
    %v5209 = vld [vmem:[#allocation2 + $0x18] sm:$0xff]
    %v5210 = vld [vmem:[#allocation2 + $0x20] sm:$0xff]
    %v5211 = vld [vmem:[#allocation2 + $0x28] sm:$0xff]
    %v5212 = vld [vmem:[#allocation2 + $0x30] sm:$0xff]
    %v5213 = vld [vmem:[#allocation2 + $0x38] sm:$0xff]
    %v5214 = vld [vmem:[#allocation2 + $0x40] sm:$0xff]
    %v5215 = vld [vmem:[#allocation2 + $0x48] sm:$0xff]
    %v5216 = vld [vmem:[#allocation2 + $0x50] sm:$0xff]
    %v5217 = vld [vmem:[#allocation2 + $0x58] sm:$0xff]
    %v5218 = vld [vmem:[#allocation2 + $0x60] sm:$0xff]
    %v5219 = vld [vmem:[#allocation2 + $0x68] sm:$0xff]
    %v5220 = vld [vmem:[#allocation2 + $0x70] sm:$0xff]
    %v5221 = vld [vmem:[#allocation2 + $0x78] sm:$0xff]
    %v5222 = vld [vmem:[#allocation2 + $0x80] sm:$0xff]
    %v5223 = vld [vmem:[#allocation2 + $0x88] sm:$0xff]
    %v5224 = vld [vmem:[#allocation2 + $0x90] sm:$0x11]
    %v5225 = vsel %vm2338, %v5208, 0
    %v5226 = vsel %vm2339, %v5209, 0
    %v5227 = vsel %vm2340, %v5210, 0
    %v5228 = vsel %vm2341, %v5211, 0
    %v5229 = vsel %vm2342, %v5212, 0
    %v5230 = vsel %vm2343, %v5213, 0
    %v5231 = vsel %vm2344, %v5214, 0
    %v5232 = vsel %vm2345, %v5215, 0
    %v5233 = vsel %vm2346, %v5216, 0
    %v5234 = vsel %vm2347, %v5217, 0
    %v5235 = vsel %vm2348, %v5218, 0
    %v5236 = vsel %vm2349, %v5219, 0
    %v5237 = vsel %vm2350, %v5220, 0
    %v5238 = vsel %vm2351, %v5221, 0
    %v5239 = vsel %vm2352, %v5222, 0
    %v5240 = vsel %vm2353, %v5223, 0
    %v5241 = vsel %vm2354, %v5224, 0
    %s5242 = scalar_lea.vmem [#allocation8], 768
    %v5243 = vld [vmem:[%s5242] sm:$0xff]
    %v5244 = vld [vmem:[%s5242 + $0x8] sm:$0xff]
    %v5245 = vld [vmem:[%s5242 + $0x10] sm:$0xff]
    %v5246 = vld [vmem:[%s5242 + $0x18] sm:$0xff]
    %v5247 = vld [vmem:[%s5242 + $0x20] sm:$0xff]
    %v5248 = vld [vmem:[%s5242 + $0x28] sm:$0xff]
    %v5249 = vld [vmem:[%s5242 + $0x30] sm:$0xff]
    %v5250 = vld [vmem:[%s5242 + $0x38] sm:$0xff]
    %v5251 = vld [vmem:[%s5242 + $0x40] sm:$0xff]
    %v5252 = vld [vmem:[%s5242 + $0x48] sm:$0xff]
    %v5253 = vld [vmem:[%s5242 + $0x50] sm:$0xff]
    %v5254 = vld [vmem:[%s5242 + $0x58] sm:$0xff]
    %v5255 = vld [vmem:[%s5242 + $0x60] sm:$0xff]
    %v5256 = vld [vmem:[%s5242 + $0x68] sm:$0xff]
    %v5257 = vld [vmem:[%s5242 + $0x70] sm:$0xff]
    %v5258 = vld [vmem:[%s5242 + $0x78] sm:$0xff]
    %v5259 = vld [vmem:[%s5242 + $0x80] sm:$0xff]
    %v5260 = vld [vmem:[%s5242 + $0x88] sm:$0xff]
    %v5261 = vld [vmem:[%s5242 + $0x90] sm:$0xff]
    %v5262 = vld [vmem:[%s5242 + $0x98] sm:$0xff]
    %v5263 = vld [vmem:[%s5242 + $0xa0] sm:$0xff]
    %v5264 = vld [vmem:[%s5242 + $0xa8] sm:$0xff]
    %v5265 = vld [vmem:[%s5242 + $0xb0] sm:$0xff]
    %v5266 = vld [vmem:[%s5242 + $0xb8] sm:$0xff]
    %v5267 = vld [vmem:[%s5242 + $0xc0] sm:$0xff]
    %v5268 = vld [vmem:[%s5242 + $0xc8] sm:$0xff]
    %v5269 = vld [vmem:[%s5242 + $0xd0] sm:$0xff]
    %v5270 = vld [vmem:[%s5242 + $0xd8] sm:$0xff]
    %v5271 = vld [vmem:[%s5242 + $0xe0] sm:$0xff]
    %v5272 = vld [vmem:[%s5242 + $0xe8] sm:$0xff]
    %v5273 = vld [vmem:[%s5242 + $0xf0] sm:$0xff]
    %v5274 = vld [vmem:[%s5242 + $0xf8] sm:$0xff]
    %v5292 = vunpack.c.l.b16 %v5225
    %v5293 = vunpack.c.h.b16 %v5225
    %v5294 = vunpack.c.l.b16 %v5226
    %v5295 = vunpack.c.h.b16 %v5226
    %v5296 = vunpack.c.l.b16 %v5227
    %v5297 = vunpack.c.h.b16 %v5227
    %v5298 = vunpack.c.l.b16 %v5228
    %v5299 = vunpack.c.h.b16 %v5228
    %v5300 = vunpack.c.l.b16 %v5229
    %v5301 = vunpack.c.h.b16 %v5229
    %v5302 = vunpack.c.l.b16 %v5230
    %v5303 = vunpack.c.h.b16 %v5230
    %v5304 = vunpack.c.l.b16 %v5231
    %v5305 = vunpack.c.h.b16 %v5231
    %v5306 = vunpack.c.l.b16 %v5232
    %v5307 = vunpack.c.h.b16 %v5232
    %v5308 = vunpack.c.l.b16 %v5233
    %v5309 = vunpack.c.h.b16 %v5233
    %v5310 = vunpack.c.l.b16 %v5234
    %v5311 = vunpack.c.h.b16 %v5234
    %v5312 = vunpack.c.l.b16 %v5235
    %v5313 = vunpack.c.h.b16 %v5235
    %v5314 = vunpack.c.l.b16 %v5236
    %v5315 = vunpack.c.h.b16 %v5236
    %v5316 = vunpack.c.l.b16 %v5237
    %v5317 = vunpack.c.h.b16 %v5237
    %v5318 = vunpack.c.l.b16 %v5238
    %v5319 = vunpack.c.h.b16 %v5238
    %v5320 = vunpack.c.l.b16 %v5239
    %v5321 = vunpack.c.h.b16 %v5239
    %v5322 = vunpack.c.l.b16 %v5240
    %v5323 = vunpack.c.h.b16 %v5240
    %v5324 = vunpack.c.l.b16 %v5241
    %v5325 = vunpack.c.h.b16 %v5241
    %v5326 = vpack.c.b16 %v5294, %v5292
    %v5327 = vpack.c.b16 %v5295, %v5293
    %v5328 = vpack.c.b16 %v5298, %v5296
    %v5329 = vpack.c.b16 %v5299, %v5297
    %v5330 = vpack.c.b16 %v5302, %v5300
    %v5331 = vpack.c.b16 %v5303, %v5301
    %v5332 = vpack.c.b16 %v5306, %v5304
    %v5333 = vpack.c.b16 %v5307, %v5305
    %v5334 = vpack.c.b16 %v5310, %v5308
    %v5335 = vpack.c.b16 %v5311, %v5309
    %v5336 = vpack.c.b16 %v5314, %v5312
    %v5337 = vpack.c.b16 %v5315, %v5313
    %v5338 = vpack.c.b16 %v5318, %v5316
    %v5339 = vpack.c.b16 %v5319, %v5317
    %v5340 = vpack.c.b16 %v5322, %v5320
    %v5341 = vpack.c.b16 %v5323, %v5321
    %v5342 = vpack.c.b16 %v5324, %v5324
    %v5343 = vpack.c.b16 %v5325, %v5325
    %v5345 = vshrl.u32 %v5326, 16
    %v5347 = vshll.u32 %v5326, 16
    %v5349 = vrot.slane %v5347, 1
    %v5350 = vor.u32 %v5345, %v5349
    %v5352 = vshll.u32 %v5328, 16
    %v5354 = vrot.slane %v5352, 1
    %v5355 = vsel %vm2474, %v5350, %v5354
    %v5357 = vshrl.u32 %v5327, 16
    %v5359 = vshll.u32 %v5327, 16
    %v5361 = vrot.slane %v5359, 1
    %v5362 = vor.u32 %v5357, %v5361
    %v5364 = vshll.u32 %v5329, 16
    %v5366 = vrot.slane %v5364, 1
    %v5367 = vsel %vm2474, %v5362, %v5366
    %v5368 = vshrl.u32 %v5328, 16
    %v5370 = vor.u32 %v5368, %v5354
    %v5372 = vshll.u32 %v5330, 16
    %v5374 = vrot.slane %v5372, 1
    %v5375 = vsel %vm2474, %v5370, %v5374
    %v5376 = vshrl.u32 %v5329, 16
    %v5378 = vor.u32 %v5376, %v5366
    %v5380 = vshll.u32 %v5331, 16
    %v5382 = vrot.slane %v5380, 1
    %v5383 = vsel %vm2474, %v5378, %v5382
    %v5384 = vshrl.u32 %v5330, 16
    %v5386 = vor.u32 %v5384, %v5374
    %v5388 = vshll.u32 %v5332, 16
    %v5390 = vrot.slane %v5388, 1
    %v5391 = vsel %vm2474, %v5386, %v5390
    %v5392 = vshrl.u32 %v5331, 16
    %v5394 = vor.u32 %v5392, %v5382
    %v5396 = vshll.u32 %v5333, 16
    %v5398 = vrot.slane %v5396, 1
    %v5399 = vsel %vm2474, %v5394, %v5398
    %v5400 = vshrl.u32 %v5332, 16
    %v5402 = vor.u32 %v5400, %v5390
    %v5404 = vshll.u32 %v5334, 16
    %v5406 = vrot.slane %v5404, 1
    %v5407 = vsel %vm2474, %v5402, %v5406
    %v5408 = vshrl.u32 %v5333, 16
    %v5410 = vor.u32 %v5408, %v5398
    %v5412 = vshll.u32 %v5335, 16
    %v5414 = vrot.slane %v5412, 1
    %v5415 = vsel %vm2474, %v5410, %v5414
    %v5416 = vshrl.u32 %v5334, 16
    %v5418 = vor.u32 %v5416, %v5406
    %v5420 = vshll.u32 %v5336, 16
    %v5422 = vrot.slane %v5420, 1
    %v5423 = vsel %vm2474, %v5418, %v5422
    %v5424 = vshrl.u32 %v5335, 16
    %v5426 = vor.u32 %v5424, %v5414
    %v5428 = vshll.u32 %v5337, 16
    %v5430 = vrot.slane %v5428, 1
    %v5431 = vsel %vm2474, %v5426, %v5430
    %v5432 = vshrl.u32 %v5336, 16
    %v5434 = vor.u32 %v5432, %v5422
    %v5436 = vshll.u32 %v5338, 16
    %v5438 = vrot.slane %v5436, 1
    %v5439 = vsel %vm2474, %v5434, %v5438
    %v5440 = vshrl.u32 %v5337, 16
    %v5442 = vor.u32 %v5440, %v5430
    %v5444 = vshll.u32 %v5339, 16
    %v5446 = vrot.slane %v5444, 1
    %v5447 = vsel %vm2474, %v5442, %v5446
    %v5448 = vshrl.u32 %v5338, 16
    %v5450 = vor.u32 %v5448, %v5438
    %v5452 = vshll.u32 %v5340, 16
    %v5454 = vrot.slane %v5452, 1
    %v5455 = vsel %vm2474, %v5450, %v5454
    %v5456 = vshrl.u32 %v5339, 16
    %v5458 = vor.u32 %v5456, %v5446
    %v5460 = vshll.u32 %v5341, 16
    %v5462 = vrot.slane %v5460, 1
    %v5463 = vsel %vm2474, %v5458, %v5462
    %v5464 = vshrl.u32 %v5340, 16
    %v5466 = vor.u32 %v5464, %v5454
    %v5468 = vshll.u32 %v5342, 16
    %v5470 = vrot.slane %v5468, 1
    %v5471 = vsel %vm2474, %v5466, %v5470
    %v5472 = vshrl.u32 %v5341, 16
    %v5474 = vor.u32 %v5472, %v5462
    %v5476 = vshll.u32 %v5343, 16
    %v5478 = vrot.slane %v5476, 1
    %v5479 = vsel %vm2474, %v5474, %v5478
    %v5528 = vunpack.c.l.b16 %v5243
    %v5529 = vunpack.c.h.b16 %v5243
    %v5530 = vunpack.c.l.b16 %v5244
    %v5531 = vunpack.c.h.b16 %v5244
    %v5532 = vunpack.c.l.b16 %v5245
    %v5533 = vunpack.c.h.b16 %v5245
    %v5534 = vunpack.c.l.b16 %v5246
    %v5535 = vunpack.c.h.b16 %v5246
    %v5536 = vunpack.c.l.b16 %v5247
    %v5537 = vunpack.c.h.b16 %v5247
    %v5538 = vunpack.c.l.b16 %v5248
    %v5539 = vunpack.c.h.b16 %v5248
    %v5540 = vunpack.c.l.b16 %v5249
    %v5541 = vunpack.c.h.b16 %v5249
    %v5542 = vunpack.c.l.b16 %v5250
    %v5543 = vunpack.c.h.b16 %v5250
    %v5544 = vunpack.c.l.b16 %v5251
    %v5545 = vunpack.c.h.b16 %v5251
    %v5546 = vunpack.c.l.b16 %v5252
    %v5547 = vunpack.c.h.b16 %v5252
    %v5548 = vunpack.c.l.b16 %v5253
    %v5549 = vunpack.c.h.b16 %v5253
    %v5550 = vunpack.c.l.b16 %v5254
    %v5551 = vunpack.c.h.b16 %v5254
    %v5552 = vunpack.c.l.b16 %v5255
    %v5553 = vunpack.c.h.b16 %v5255
    %v5554 = vunpack.c.l.b16 %v5256
    %v5555 = vunpack.c.h.b16 %v5256
    %v5556 = vunpack.c.l.b16 %v5257
    %v5557 = vunpack.c.h.b16 %v5257
    %v5558 = vunpack.c.l.b16 %v5258
    %v5559 = vunpack.c.h.b16 %v5258
    %v5560 = vunpack.c.l.b16 %v5259
    %v5561 = vunpack.c.h.b16 %v5259
    %v5562 = vunpack.c.l.b16 %v5260
    %v5563 = vunpack.c.h.b16 %v5260
    %v5564 = vunpack.c.l.b16 %v5261
    %v5565 = vunpack.c.h.b16 %v5261
    %v5566 = vunpack.c.l.b16 %v5262
    %v5567 = vunpack.c.h.b16 %v5262
    %v5568 = vunpack.c.l.b16 %v5263
    %v5569 = vunpack.c.h.b16 %v5263
    %v5570 = vunpack.c.l.b16 %v5264
    %v5571 = vunpack.c.h.b16 %v5264
    %v5572 = vunpack.c.l.b16 %v5265
    %v5573 = vunpack.c.h.b16 %v5265
    %v5574 = vunpack.c.l.b16 %v5266
    %v5575 = vunpack.c.h.b16 %v5266
    %v5576 = vunpack.c.l.b16 %v5267
    %v5577 = vunpack.c.h.b16 %v5267
    %v5578 = vunpack.c.l.b16 %v5268
    %v5579 = vunpack.c.h.b16 %v5268
    %v5580 = vunpack.c.l.b16 %v5269
    %v5581 = vunpack.c.h.b16 %v5269
    %v5582 = vunpack.c.l.b16 %v5270
    %v5583 = vunpack.c.h.b16 %v5270
    %v5584 = vunpack.c.l.b16 %v5271
    %v5585 = vunpack.c.h.b16 %v5271
    %v5586 = vunpack.c.l.b16 %v5272
    %v5587 = vunpack.c.h.b16 %v5272
    %v5588 = vunpack.c.l.b16 %v5273
    %v5589 = vunpack.c.h.b16 %v5273
    %v5590 = vunpack.c.l.b16 %v5274
    %v5591 = vunpack.c.h.b16 %v5274
    %v5592 = vpack.c.b16 %v5530, %v5528
    %v5593 = vpack.c.b16 %v5531, %v5529
    %v5594 = vpack.c.b16 %v5534, %v5532
    %v5595 = vpack.c.b16 %v5535, %v5533
    %v5596 = vpack.c.b16 %v5538, %v5536
    %v5597 = vpack.c.b16 %v5539, %v5537
    %v5598 = vpack.c.b16 %v5542, %v5540
    %v5599 = vpack.c.b16 %v5543, %v5541
    %v5600 = vpack.c.b16 %v5546, %v5544
    %v5601 = vpack.c.b16 %v5547, %v5545
    %v5602 = vpack.c.b16 %v5550, %v5548
    %v5603 = vpack.c.b16 %v5551, %v5549
    %v5604 = vpack.c.b16 %v5554, %v5552
    %v5605 = vpack.c.b16 %v5555, %v5553
    %v5606 = vpack.c.b16 %v5558, %v5556
    %v5607 = vpack.c.b16 %v5559, %v5557
    %v5608 = vpack.c.b16 %v5562, %v5560
    %v5609 = vpack.c.b16 %v5563, %v5561
    %v5610 = vpack.c.b16 %v5566, %v5564
    %v5611 = vpack.c.b16 %v5567, %v5565
    %v5612 = vpack.c.b16 %v5570, %v5568
    %v5613 = vpack.c.b16 %v5571, %v5569
    %v5614 = vpack.c.b16 %v5574, %v5572
    %v5615 = vpack.c.b16 %v5575, %v5573
    %v5616 = vpack.c.b16 %v5578, %v5576
    %v5617 = vpack.c.b16 %v5579, %v5577
    %v5618 = vpack.c.b16 %v5582, %v5580
    %v5619 = vpack.c.b16 %v5583, %v5581
    %v5620 = vpack.c.b16 %v5586, %v5584
    %v5621 = vpack.c.b16 %v5587, %v5585
    %v5622 = vpack.c.b16 %v5590, %v5588
    %v5623 = vpack.c.b16 %v5591, %v5589
    %5656 = vmatprep.subr.bf16.mxu0 %v5593
    %5657 = vmatpush1.bf16.msra.mxu0 %v5592
    %5658 = vmatprep.subr.bf16.mxu0 %v5595
    %5659 = vmatpush1.bf16.msra.mxu0 %v5594
    %5660 = vmatprep.subr.bf16.mxu0 %v5597
    %5661 = vmatpush1.bf16.msra.mxu0 %v5596
    %5662 = vmatprep.subr.bf16.mxu0 %v5599
    %5663 = vmatpush1.bf16.msra.mxu0 %v5598
    %5664 = vmatprep.subr.bf16.mxu0 %v5601
    %5665 = vmatpush1.bf16.msra.mxu0 %v5600
    %5666 = vmatprep.subr.bf16.mxu0 %v5603
    %5667 = vmatpush1.bf16.msra.mxu0 %v5602
    %5668 = vmatprep.subr.bf16.mxu0 %v5605
    %5669 = vmatpush1.bf16.msra.mxu0 %v5604
    %5670 = vmatprep.subr.bf16.mxu0 %v5607
    %5671 = vmatpush1.bf16.msra.mxu0 %v5606
    %5672 = vmatprep.subr.bf16.mxu0 %v5609
    %5673 = vmatpush1.bf16.msra.mxu0 %v5608
    %5674 = vmatprep.subr.bf16.mxu0 %v5611
    %5675 = vmatpush1.bf16.msra.mxu0 %v5610
    %5676 = vmatprep.subr.bf16.mxu0 %v5613
    %5677 = vmatpush1.bf16.msra.mxu0 %v5612
    %5678 = vmatprep.subr.bf16.mxu0 %v5615
    %5679 = vmatpush1.bf16.msra.mxu0 %v5614
    %5680 = vmatprep.subr.bf16.mxu0 %v5617
    %5681 = vmatpush1.bf16.msra.mxu0 %v5616
    %5682 = vmatprep.subr.bf16.mxu0 %v5619
    %5683 = vmatpush1.bf16.msra.mxu0 %v5618
    %5684 = vmatprep.subr.bf16.mxu0 %v5621
    %5685 = vmatpush1.bf16.msra.mxu0 %v5620
    %5686 = vmatprep.subr.bf16.mxu0 %v5623
    %5687 = vmatpush1.bf16.msra.mxu0 %v5622
    %5688 = vmatprep.mubr.bf16.mxu0 %v5367
    %5689 = vmatmul.mubr.bf16.gmra.mrb[0].mxu0 %v5355
    %v5690 = vpop.f32.mrb[0].mxu0
    %v5691 = vadd.f32 0.0, %v5690
    %v5692 = vpop.f32.mrb[0].mxu0
    %v5693 = vadd.f32 0.0, %v5692
    %v5694 = vpop.f32.mrb[0].mxu0
    %v5695 = vadd.f32 0.0, %v5694
    %v5696 = vpop.f32.mrb[0].mxu0
    %v5697 = vadd.f32 0.0, %v5696
    %5698 = vmatprep.mubr.bf16.mxu0 %v5383
    %5699 = vmatmul.mubr.bf16.gmra.mrb[0].mxu0 %v5375
    %v5700 = vpop.f32.mrb[0].mxu0
    %v5701 = vadd.f32 0.0, %v5700
    %v5702 = vpop.f32.mrb[0].mxu0
    %v5703 = vadd.f32 0.0, %v5702
    %v5704 = vpop.f32.mrb[0].mxu0
    %v5705 = vadd.f32 0.0, %v5704
    %v5706 = vpop.f32.mrb[0].mxu0
    %v5707 = vadd.f32 0.0, %v5706
    %5708 = vmatprep.mubr.bf16.mxu0 %v5399
    %5709 = vmatmul.mubr.bf16.gmra.mrb[0].mxu0 %v5391
    %v5710 = vpop.f32.mrb[0].mxu0
    %v5711 = vadd.f32 0.0, %v5710
    %v5712 = vpop.f32.mrb[0].mxu0
    %v5713 = vadd.f32 0.0, %v5712
    %v5714 = vpop.f32.mrb[0].mxu0
    %v5715 = vadd.f32 0.0, %v5714
    %v5716 = vpop.f32.mrb[0].mxu0
    %v5717 = vadd.f32 0.0, %v5716
    %5718 = vmatprep.mubr.bf16.mxu0 %v5415
    %5719 = vmatmul.mubr.bf16.gmra.mrb[0].mxu0 %v5407
    %v5720 = vpop.f32.mrb[0].mxu0
    %v5721 = vadd.f32 0.0, %v5720
    %v5722 = vpop.f32.mrb[0].mxu0
    %v5723 = vadd.f32 0.0, %v5722
    %v5724 = vpop.f32.mrb[0].mxu0
    %v5725 = vadd.f32 0.0, %v5724
    %v5726 = vpop.f32.mrb[0].mxu0
    %v5727 = vadd.f32 0.0, %v5726
    %5728 = vmatprep.mubr.bf16.mxu0 %v5431
    %5729 = vmatmul.mubr.bf16.gmra.mrb[0].mxu0 %v5423
    %v5730 = vpop.f32.mrb[0].mxu0
    %v5731 = vadd.f32 0.0, %v5730
    %v5732 = vpop.f32.mrb[0].mxu0
    %v5733 = vadd.f32 0.0, %v5732
    %v5734 = vpop.f32.mrb[0].mxu0
    %v5735 = vadd.f32 0.0, %v5734
    %v5736 = vpop.f32.mrb[0].mxu0
    %v5737 = vadd.f32 0.0, %v5736
    %5738 = vmatprep.mubr.bf16.mxu0 %v5447
    %5739 = vmatmul.mubr.bf16.gmra.mrb[0].mxu0 %v5439
    %v5740 = vpop.f32.mrb[0].mxu0
    %v5741 = vadd.f32 0.0, %v5740
    %v5742 = vpop.f32.mrb[0].mxu0
    %v5743 = vadd.f32 0.0, %v5742
    %v5744 = vpop.f32.mrb[0].mxu0
    %v5745 = vadd.f32 0.0, %v5744
    %v5746 = vpop.f32.mrb[0].mxu0
    %v5747 = vadd.f32 0.0, %v5746
    %5748 = vmatprep.mubr.bf16.mxu0 %v5463
    %5749 = vmatmul.mubr.bf16.gmra.mrb[0].mxu0 %v5455
    %v5750 = vpop.f32.mrb[0].mxu0
    %v5751 = vadd.f32 0.0, %v5750
    %v5752 = vpop.f32.mrb[0].mxu0
    %v5753 = vadd.f32 0.0, %v5752
    %v5754 = vpop.f32.mrb[0].mxu0
    %v5755 = vadd.f32 0.0, %v5754
    %v5756 = vpop.f32.mrb[0].mxu0
    %v5757 = vadd.f32 0.0, %v5756
    %5758 = vmatprep.mubr.bf16.mxu0 %v5479
    %5759 = vmatmul.mubr.bf16.gmra.mrb[0].mxu0 %v5471
    %v5760 = vpop.f32.mrb[0].mxu0
    %v5761 = vadd.f32 0.0, %v5760
    %v5762 = vpop.f32.mrb[0].mxu0
    %v5763 = vadd.f32 0.0, %v5762
    %v5764 = vpop.f32.mrb[0].mxu0
    %v5765 = vadd.f32 0.0, %v5764
    %v5766 = vpop.f32.mrb[0].mxu0
    %v5767 = vadd.f32 0.0, %v5766
    %5768 = vdwg.mxu0
    %v5769 = vadd.f32 %v5176, %v5691
    %v5770 = vadd.f32 %v5177, %v5693
    %v5771 = vadd.f32 %v5178, %v5695
    %v5772 = vadd.f32 %v5179, %v5697
    %v5773 = vadd.f32 %v5180, %v5701
    %v5774 = vadd.f32 %v5181, %v5703
    %v5775 = vadd.f32 %v5182, %v5705
    %v5776 = vadd.f32 %v5183, %v5707
    %v5777 = vadd.f32 %v5184, %v5711
    %v5778 = vadd.f32 %v5185, %v5713
    %v5779 = vadd.f32 %v5186, %v5715
    %v5780 = vadd.f32 %v5187, %v5717
    %v5781 = vadd.f32 %v5188, %v5721
    %v5782 = vadd.f32 %v5189, %v5723
    %v5783 = vadd.f32 %v5190, %v5725
    %v5784 = vadd.f32 %v5191, %v5727
    %v5785 = vadd.f32 %v5192, %v5731
    %v5786 = vadd.f32 %v5193, %v5733
    %v5787 = vadd.f32 %v5194, %v5735
    %v5788 = vadd.f32 %v5195, %v5737
    %v5789 = vadd.f32 %v5196, %v5741
    %v5790 = vadd.f32 %v5197, %v5743
    %v5791 = vadd.f32 %v5198, %v5745
    %v5792 = vadd.f32 %v5199, %v5747
    %v5793 = vadd.f32 %v5200, %v5751
    %v5794 = vadd.f32 %v5201, %v5753
    %v5795 = vadd.f32 %v5202, %v5755
    %v5796 = vadd.f32 %v5203, %v5757
    %v5797 = vadd.f32 %v5204, %v5761
    %v5798 = vadd.f32 %v5205, %v5763
    %v5799 = vadd.f32 %v5206, %v5765
    %v5800 = vadd.f32 %v5207, %v5767
    %v5801 = vld [vmem:[#allocation2 + $0x10] sm:$0xee]
    %v5802 = vsel %vm3063, %v5801, 0
    %v5803 = vsel %vm3064, %v5209, 0
    %v5804 = vsel %vm3065, %v5210, 0
    %v5805 = vsel %vm3066, %v5211, 0
    %v5806 = vsel %vm3067, %v5212, 0
    %v5807 = vsel %vm3068, %v5213, 0
    %v5808 = vsel %vm3069, %v5214, 0
    %v5809 = vsel %vm3070, %v5215, 0
    %v5810 = vsel %vm3071, %v5216, 0
    %v5811 = vsel %vm3072, %v5217, 0
    %v5812 = vsel %vm3073, %v5218, 0
    %v5813 = vsel %vm3074, %v5219, 0
    %v5814 = vsel %vm3075, %v5220, 0
    %v5815 = vsel %vm3076, %v5221, 0
    %v5816 = vsel %vm3077, %v5222, 0
    %v5817 = vsel %vm3078, %v5223, 0
    %v5818 = vsel %vm3079, %v5224, 0
    %s5819 = scalar_lea.vmem [#allocation8], 1024
    %v5820 = vld [vmem:[%s5819] sm:$0xff]
    %v5821 = vld [vmem:[%s5819 + $0x8] sm:$0xff]
    %v5822 = vld [vmem:[%s5819 + $0x10] sm:$0xff]
    %v5823 = vld [vmem:[%s5819 + $0x18] sm:$0xff]
    %v5824 = vld [vmem:[%s5819 + $0x20] sm:$0xff]
    %v5825 = vld [vmem:[%s5819 + $0x28] sm:$0xff]
    %v5826 = vld [vmem:[%s5819 + $0x30] sm:$0xff]
    %v5827 = vld [vmem:[%s5819 + $0x38] sm:$0xff]
    %v5828 = vld [vmem:[%s5819 + $0x40] sm:$0xff]
    %v5829 = vld [vmem:[%s5819 + $0x48] sm:$0xff]
    %v5830 = vld [vmem:[%s5819 + $0x50] sm:$0xff]
    %v5831 = vld [vmem:[%s5819 + $0x58] sm:$0xff]
    %v5832 = vld [vmem:[%s5819 + $0x60] sm:$0xff]
    %v5833 = vld [vmem:[%s5819 + $0x68] sm:$0xff]
    %v5834 = vld [vmem:[%s5819 + $0x70] sm:$0xff]
    %v5835 = vld [vmem:[%s5819 + $0x78] sm:$0xff]
    %v5836 = vld [vmem:[%s5819 + $0x80] sm:$0xff]
    %v5837 = vld [vmem:[%s5819 + $0x88] sm:$0xff]
    %v5838 = vld [vmem:[%s5819 + $0x90] sm:$0xff]
    %v5839 = vld [vmem:[%s5819 + $0x98] sm:$0xff]
    %v5840 = vld [vmem:[%s5819 + $0xa0] sm:$0xff]
    %v5841 = vld [vmem:[%s5819 + $0xa8] sm:$0xff]
    %v5842 = vld [vmem:[%s5819 + $0xb0] sm:$0xff]
    %v5843 = vld [vmem:[%s5819 + $0xb8] sm:$0xff]
    %v5844 = vld [vmem:[%s5819 + $0xc0] sm:$0xff]
    %v5845 = vld [vmem:[%s5819 + $0xc8] sm:$0xff]
    %v5846 = vld [vmem:[%s5819 + $0xd0] sm:$0xff]
    %v5847 = vld [vmem:[%s5819 + $0xd8] sm:$0xff]
    %v5848 = vld [vmem:[%s5819 + $0xe0] sm:$0xff]
    %v5849 = vld [vmem:[%s5819 + $0xe8] sm:$0xff]
    %v5850 = vld [vmem:[%s5819 + $0xf0] sm:$0xff]
    %v5851 = vld [vmem:[%s5819 + $0xf8] sm:$0xff]
    %v5869 = vunpack.c.l.b16 %v5802
    %v5870 = vunpack.c.h.b16 %v5802
    %v5871 = vunpack.c.l.b16 %v5803
    %v5872 = vunpack.c.h.b16 %v5803
    %v5873 = vunpack.c.l.b16 %v5804
    %v5874 = vunpack.c.h.b16 %v5804
    %v5875 = vunpack.c.l.b16 %v5805
    %v5876 = vunpack.c.h.b16 %v5805
    %v5877 = vunpack.c.l.b16 %v5806
    %v5878 = vunpack.c.h.b16 %v5806
    %v5879 = vunpack.c.l.b16 %v5807
    %v5880 = vunpack.c.h.b16 %v5807
    %v5881 = vunpack.c.l.b16 %v5808
    %v5882 = vunpack.c.h.b16 %v5808
    %v5883 = vunpack.c.l.b16 %v5809
    %v5884 = vunpack.c.h.b16 %v5809
    %v5885 = vunpack.c.l.b16 %v5810
    %v5886 = vunpack.c.h.b16 %v5810
    %v5887 = vunpack.c.l.b16 %v5811
    %v5888 = vunpack.c.h.b16 %v5811
    %v5889 = vunpack.c.l.b16 %v5812
    %v5890 = vunpack.c.h.b16 %v5812
    %v5891 = vunpack.c.l.b16 %v5813
    %v5892 = vunpack.c.h.b16 %v5813
    %v5893 = vunpack.c.l.b16 %v5814
    %v5894 = vunpack.c.h.b16 %v5814
    %v5895 = vunpack.c.l.b16 %v5815
    %v5896 = vunpack.c.h.b16 %v5815
    %v5897 = vunpack.c.l.b16 %v5816
    %v5898 = vunpack.c.h.b16 %v5816
    %v5899 = vunpack.c.l.b16 %v5817
    %v5900 = vunpack.c.h.b16 %v5817
    %v5901 = vunpack.c.l.b16 %v5818
    %v5902 = vunpack.c.h.b16 %v5818
    %v5903 = vpack.c.b16 %v5871, %v5869
    %v5904 = vpack.c.b16 %v5872, %v5870
    %v5905 = vpack.c.b16 %v5875, %v5873
    %v5906 = vpack.c.b16 %v5876, %v5874
    %v5907 = vpack.c.b16 %v5879, %v5877
    %v5908 = vpack.c.b16 %v5880, %v5878
    %v5909 = vpack.c.b16 %v5883, %v5881
    %v5910 = vpack.c.b16 %v5884, %v5882
    %v5911 = vpack.c.b16 %v5887, %v5885
    %v5912 = vpack.c.b16 %v5888, %v5886
    %v5913 = vpack.c.b16 %v5891, %v5889
    %v5914 = vpack.c.b16 %v5892, %v5890
    %v5915 = vpack.c.b16 %v5895, %v5893
    %v5916 = vpack.c.b16 %v5896, %v5894
    %v5917 = vpack.c.b16 %v5899, %v5897
    %v5918 = vpack.c.b16 %v5900, %v5898
    %v5919 = vpack.c.b16 %v5901, %v5901
    %v5920 = vpack.c.b16 %v5902, %v5902
    %v5921 = vrot.slane %v5903, 1
    %v5922 = vrot.slane %v5905, 1
    %v5923 = vsel %vm3199, %v5921, %v5922
    %v5924 = vrot.slane %v5904, 1
    %v5925 = vrot.slane %v5906, 1
    %v5926 = vsel %vm3199, %v5924, %v5925
    %v5927 = vrot.slane %v5907, 1
    %v5928 = vsel %vm3199, %v5922, %v5927
    %v5929 = vrot.slane %v5908, 1
    %v5930 = vsel %vm3199, %v5925, %v5929
    %v5931 = vrot.slane %v5909, 1
    %v5932 = vsel %vm3199, %v5927, %v5931
    %v5933 = vrot.slane %v5910, 1
    %v5934 = vsel %vm3199, %v5929, %v5933
    %v5935 = vrot.slane %v5911, 1
    %v5936 = vsel %vm3199, %v5931, %v5935
    %v5937 = vrot.slane %v5912, 1
    %v5938 = vsel %vm3199, %v5933, %v5937
    %v5939 = vrot.slane %v5913, 1
    %v5940 = vsel %vm3199, %v5935, %v5939
    %v5941 = vrot.slane %v5914, 1
    %v5942 = vsel %vm3199, %v5937, %v5941
    %v5943 = vrot.slane %v5915, 1
    %v5944 = vsel %vm3199, %v5939, %v5943
    %v5945 = vrot.slane %v5916, 1
    %v5946 = vsel %vm3199, %v5941, %v5945
    %v5947 = vrot.slane %v5917, 1
    %v5948 = vsel %vm3199, %v5943, %v5947
    %v5949 = vrot.slane %v5918, 1
    %v5950 = vsel %vm3199, %v5945, %v5949
    %v5951 = vrot.slane %v5919, 1
    %v5952 = vsel %vm3199, %v5947, %v5951
    %v5953 = vrot.slane %v5920, 1
    %v5954 = vsel %vm3199, %v5949, %v5953
    %v6003 = vunpack.c.l.b16 %v5820
    %v6004 = vunpack.c.h.b16 %v5820
    %v6005 = vunpack.c.l.b16 %v5821
    %v6006 = vunpack.c.h.b16 %v5821
    %v6007 = vunpack.c.l.b16 %v5822
    %v6008 = vunpack.c.h.b16 %v5822
    %v6009 = vunpack.c.l.b16 %v5823
    %v6010 = vunpack.c.h.b16 %v5823
    %v6011 = vunpack.c.l.b16 %v5824
    %v6012 = vunpack.c.h.b16 %v5824
    %v6013 = vunpack.c.l.b16 %v5825
    %v6014 = vunpack.c.h.b16 %v5825
    %v6015 = vunpack.c.l.b16 %v5826
    %v6016 = vunpack.c.h.b16 %v5826
    %v6017 = vunpack.c.l.b16 %v5827
    %v6018 = vunpack.c.h.b16 %v5827
    %v6019 = vunpack.c.l.b16 %v5828
    %v6020 = vunpack.c.h.b16 %v5828
    %v6021 = vunpack.c.l.b16 %v5829
    %v6022 = vunpack.c.h.b16 %v5829
    %v6023 = vunpack.c.l.b16 %v5830
    %v6024 = vunpack.c.h.b16 %v5830
    %v6025 = vunpack.c.l.b16 %v5831
    %v6026 = vunpack.c.h.b16 %v5831
    %v6027 = vunpack.c.l.b16 %v5832
    %v6028 = vunpack.c.h.b16 %v5832
    %v6029 = vunpack.c.l.b16 %v5833
    %v6030 = vunpack.c.h.b16 %v5833
    %v6031 = vunpack.c.l.b16 %v5834
    %v6032 = vunpack.c.h.b16 %v5834
    %v6033 = vunpack.c.l.b16 %v5835
    %v6034 = vunpack.c.h.b16 %v5835
    %v6035 = vunpack.c.l.b16 %v5836
    %v6036 = vunpack.c.h.b16 %v5836
    %v6037 = vunpack.c.l.b16 %v5837
    %v6038 = vunpack.c.h.b16 %v5837
    %v6039 = vunpack.c.l.b16 %v5838
    %v6040 = vunpack.c.h.b16 %v5838
    %v6041 = vunpack.c.l.b16 %v5839
    %v6042 = vunpack.c.h.b16 %v5839
    %v6043 = vunpack.c.l.b16 %v5840
    %v6044 = vunpack.c.h.b16 %v5840
    %v6045 = vunpack.c.l.b16 %v5841
    %v6046 = vunpack.c.h.b16 %v5841
    %v6047 = vunpack.c.l.b16 %v5842
    %v6048 = vunpack.c.h.b16 %v5842
    %v6049 = vunpack.c.l.b16 %v5843
    %v6050 = vunpack.c.h.b16 %v5843
    %v6051 = vunpack.c.l.b16 %v5844
    %v6052 = vunpack.c.h.b16 %v5844
    %v6053 = vunpack.c.l.b16 %v5845
    %v6054 = vunpack.c.h.b16 %v5845
    %v6055 = vunpack.c.l.b16 %v5846
    %v6056 = vunpack.c.h.b16 %v5846
    %v6057 = vunpack.c.l.b16 %v5847
    %v6058 = vunpack.c.h.b16 %v5847
    %v6059 = vunpack.c.l.b16 %v5848
    %v6060 = vunpack.c.h.b16 %v5848
    %v6061 = vunpack.c.l.b16 %v5849
    %v6062 = vunpack.c.h.b16 %v5849
    %v6063 = vunpack.c.l.b16 %v5850
    %v6064 = vunpack.c.h.b16 %v5850
    %v6065 = vunpack.c.l.b16 %v5851
    %v6066 = vunpack.c.h.b16 %v5851
    %v6067 = vpack.c.b16 %v6005, %v6003
    %v6068 = vpack.c.b16 %v6006, %v6004
    %v6069 = vpack.c.b16 %v6009, %v6007
    %v6070 = vpack.c.b16 %v6010, %v6008
    %v6071 = vpack.c.b16 %v6013, %v6011
    %v6072 = vpack.c.b16 %v6014, %v6012
    %v6073 = vpack.c.b16 %v6017, %v6015
    %v6074 = vpack.c.b16 %v6018, %v6016
    %v6075 = vpack.c.b16 %v6021, %v6019
    %v6076 = vpack.c.b16 %v6022, %v6020
    %v6077 = vpack.c.b16 %v6025, %v6023
    %v6078 = vpack.c.b16 %v6026, %v6024
    %v6079 = vpack.c.b16 %v6029, %v6027
    %v6080 = vpack.c.b16 %v6030, %v6028
    %v6081 = vpack.c.b16 %v6033, %v6031
    %v6082 = vpack.c.b16 %v6034, %v6032
    %v6083 = vpack.c.b16 %v6037, %v6035
    %v6084 = vpack.c.b16 %v6038, %v6036
    %v6085 = vpack.c.b16 %v6041, %v6039
    %v6086 = vpack.c.b16 %v6042, %v6040
    %v6087 = vpack.c.b16 %v6045, %v6043
    %v6088 = vpack.c.b16 %v6046, %v6044
    %v6089 = vpack.c.b16 %v6049, %v6047
    %v6090 = vpack.c.b16 %v6050, %v6048
    %v6091 = vpack.c.b16 %v6053, %v6051
    %v6092 = vpack.c.b16 %v6054, %v6052
    %v6093 = vpack.c.b16 %v6057, %v6055
    %v6094 = vpack.c.b16 %v6058, %v6056
    %v6095 = vpack.c.b16 %v6061, %v6059
    %v6096 = vpack.c.b16 %v6062, %v6060
    %v6097 = vpack.c.b16 %v6065, %v6063
    %v6098 = vpack.c.b16 %v6066, %v6064
    %6131 = vmatprep.subr.bf16.mxu0 %v6068
    %6132 = vmatpush1.bf16.msra.mxu0 %v6067
    %6133 = vmatprep.subr.bf16.mxu0 %v6070
    %6134 = vmatpush1.bf16.msra.mxu0 %v6069
    %6135 = vmatprep.subr.bf16.mxu0 %v6072
    %6136 = vmatpush1.bf16.msra.mxu0 %v6071
    %6137 = vmatprep.subr.bf16.mxu0 %v6074
    %6138 = vmatpush1.bf16.msra.mxu0 %v6073
    %6139 = vmatprep.subr.bf16.mxu0 %v6076
    %6140 = vmatpush1.bf16.msra.mxu0 %v6075
    %6141 = vmatprep.subr.bf16.mxu0 %v6078
    %6142 = vmatpush1.bf16.msra.mxu0 %v6077
    %6143 = vmatprep.subr.bf16.mxu0 %v6080
    %6144 = vmatpush1.bf16.msra.mxu0 %v6079
    %6145 = vmatprep.subr.bf16.mxu0 %v6082
    %6146 = vmatpush1.bf16.msra.mxu0 %v6081
    %6147 = vmatprep.subr.bf16.mxu0 %v6084
    %6148 = vmatpush1.bf16.msra.mxu0 %v6083
    %6149 = vmatprep.subr.bf16.mxu0 %v6086
    %6150 = vmatpush1.bf16.msra.mxu0 %v6085
    %6151 = vmatprep.subr.bf16.mxu0 %v6088
    %6152 = vmatpush1.bf16.msra.mxu0 %v6087
    %6153 = vmatprep.subr.bf16.mxu0 %v6090
    %6154 = vmatpush1.bf16.msra.mxu0 %v6089
    %6155 = vmatprep.subr.bf16.mxu0 %v6092
    %6156 = vmatpush1.bf16.msra.mxu0 %v6091
    %6157 = vmatprep.subr.bf16.mxu0 %v6094
    %6158 = vmatpush1.bf16.msra.mxu0 %v6093
    %6159 = vmatprep.subr.bf16.mxu0 %v6096
    %6160 = vmatpush1.bf16.msra.mxu0 %v6095
    %6161 = vmatprep.subr.bf16.mxu0 %v6098
    %6162 = vmatpush1.bf16.msra.mxu0 %v6097
    %6163 = vmatprep.mubr.bf16.mxu0 %v5926
    %6164 = vmatmul.mubr.bf16.gmra.mrb[0].mxu0 %v5923
    %v6165 = vpop.f32.mrb[0].mxu0
    %v6166 = vadd.f32 0.0, %v6165
    %v6167 = vpop.f32.mrb[0].mxu0
    %v6168 = vadd.f32 0.0, %v6167
    %v6169 = vpop.f32.mrb[0].mxu0
    %v6170 = vadd.f32 0.0, %v6169
    %v6171 = vpop.f32.mrb[0].mxu0
    %v6172 = vadd.f32 0.0, %v6171
    %6173 = vmatprep.mubr.bf16.mxu0 %v5930
    %6174 = vmatmul.mubr.bf16.gmra.mrb[0].mxu0 %v5928
    %v6175 = vpop.f32.mrb[0].mxu0
    %v6176 = vadd.f32 0.0, %v6175
    %v6177 = vpop.f32.mrb[0].mxu0
    %v6178 = vadd.f32 0.0, %v6177
    %v6179 = vpop.f32.mrb[0].mxu0
    %v6180 = vadd.f32 0.0, %v6179
    %v6181 = vpop.f32.mrb[0].mxu0
    %v6182 = vadd.f32 0.0, %v6181
    %6183 = vmatprep.mubr.bf16.mxu0 %v5934
    %6184 = vmatmul.mubr.bf16.gmra.mrb[0].mxu0 %v5932
    %v6185 = vpop.f32.mrb[0].mxu0
    %v6186 = vadd.f32 0.0, %v6185
    %v6187 = vpop.f32.mrb[0].mxu0
    %v6188 = vadd.f32 0.0, %v6187
    %v6189 = vpop.f32.mrb[0].mxu0
    %v6190 = vadd.f32 0.0, %v6189
    %v6191 = vpop.f32.mrb[0].mxu0
    %v6192 = vadd.f32 0.0, %v6191
    %6193 = vmatprep.mubr.bf16.mxu0 %v5938
    %6194 = vmatmul.mubr.bf16.gmra.mrb[0].mxu0 %v5936
    %v6195 = vpop.f32.mrb[0].mxu0
    %v6196 = vadd.f32 0.0, %v6195
    %v6197 = vpop.f32.mrb[0].mxu0
    %v6198 = vadd.f32 0.0, %v6197
    %v6199 = vpop.f32.mrb[0].mxu0
    %v6200 = vadd.f32 0.0, %v6199
    %v6201 = vpop.f32.mrb[0].mxu0
    %v6202 = vadd.f32 0.0, %v6201
    %6203 = vmatprep.mubr.bf16.mxu0 %v5942
    %6204 = vmatmul.mubr.bf16.gmra.mrb[0].mxu0 %v5940
    %v6205 = vpop.f32.mrb[0].mxu0
    %v6206 = vadd.f32 0.0, %v6205
    %v6207 = vpop.f32.mrb[0].mxu0
    %v6208 = vadd.f32 0.0, %v6207
    %v6209 = vpop.f32.mrb[0].mxu0
    %v6210 = vadd.f32 0.0, %v6209
    %v6211 = vpop.f32.mrb[0].mxu0
    %v6212 = vadd.f32 0.0, %v6211
    %6213 = vmatprep.mubr.bf16.mxu0 %v5946
    %6214 = vmatmul.mubr.bf16.gmra.mrb[0].mxu0 %v5944
    %v6215 = vpop.f32.mrb[0].mxu0
    %v6216 = vadd.f32 0.0, %v6215
    %v6217 = vpop.f32.mrb[0].mxu0
    %v6218 = vadd.f32 0.0, %v6217
    %v6219 = vpop.f32.mrb[0].mxu0
    %v6220 = vadd.f32 0.0, %v6219
    %v6221 = vpop.f32.mrb[0].mxu0
    %v6222 = vadd.f32 0.0, %v6221
    %6223 = vmatprep.mubr.bf16.mxu0 %v5950
    %6224 = vmatmul.mubr.bf16.gmra.mrb[0].mxu0 %v5948
    %v6225 = vpop.f32.mrb[0].mxu0
    %v6226 = vadd.f32 0.0, %v6225
    %v6227 = vpop.f32.mrb[0].mxu0
    %v6228 = vadd.f32 0.0, %v6227
    %v6229 = vpop.f32.mrb[0].mxu0
    %v6230 = vadd.f32 0.0, %v6229
    %v6231 = vpop.f32.mrb[0].mxu0
    %v6232 = vadd.f32 0.0, %v6231
    %6233 = vmatprep.mubr.bf16.mxu0 %v5954
    %6234 = vmatmul.mubr.bf16.gmra.mrb[0].mxu0 %v5952
    %v6235 = vpop.f32.mrb[0].mxu0
    %v6236 = vadd.f32 0.0, %v6235
    %v6237 = vpop.f32.mrb[0].mxu0
    %v6238 = vadd.f32 0.0, %v6237
    %v6239 = vpop.f32.mrb[0].mxu0
    %v6240 = vadd.f32 0.0, %v6239
    %v6241 = vpop.f32.mrb[0].mxu0
    %v6242 = vadd.f32 0.0, %v6241
    %6243 = vdwg.mxu0
    %v6244 = vadd.f32 %v5769, %v6166
    %v6245 = vadd.f32 %v5770, %v6168
    %v6246 = vadd.f32 %v5771, %v6170
    %v6247 = vadd.f32 %v5772, %v6172
    %v6248 = vadd.f32 %v5773, %v6176
    %v6249 = vadd.f32 %v5774, %v6178
    %v6250 = vadd.f32 %v5775, %v6180
    %v6251 = vadd.f32 %v5776, %v6182
    %v6252 = vadd.f32 %v5777, %v6186
    %v6253 = vadd.f32 %v5778, %v6188
    %v6254 = vadd.f32 %v5779, %v6190
    %v6255 = vadd.f32 %v5780, %v6192
    %v6256 = vadd.f32 %v5781, %v6196
    %v6257 = vadd.f32 %v5782, %v6198
    %v6258 = vadd.f32 %v5783, %v6200
    %v6259 = vadd.f32 %v5784, %v6202
    %v6260 = vadd.f32 %v5785, %v6206
    %v6261 = vadd.f32 %v5786, %v6208
    %v6262 = vadd.f32 %v5787, %v6210
    %v6263 = vadd.f32 %v5788, %v6212
    %v6264 = vadd.f32 %v5789, %v6216
    %v6265 = vadd.f32 %v5790, %v6218
    %v6266 = vadd.f32 %v5791, %v6220
    %v6267 = vadd.f32 %v5792, %v6222
    %v6268 = vadd.f32 %v5793, %v6226
    %v6269 = vadd.f32 %v5794, %v6228
    %v6270 = vadd.f32 %v5795, %v6230
    %v6271 = vadd.f32 %v5796, %v6232
    %v6272 = vadd.f32 %v5797, %v6236
    %v6273 = vadd.f32 %v5798, %v6238
    %v6274 = vadd.f32 %v5799, %v6240
    %v6275 = vadd.f32 %v5800, %v6242
    %vm6276 = vcmp.gt.f32.partialorder %v6244, 0.0
    %vm6277 = vcmp.gt.f32.partialorder %v6245, 0.0
    %vm6278 = vcmp.gt.f32.partialorder %v6246, 0.0
    %vm6279 = vcmp.gt.f32.partialorder %v6247, 0.0
    %vm6280 = vcmp.gt.f32.partialorder %v6248, 0.0
    %vm6281 = vcmp.gt.f32.partialorder %v6249, 0.0
    %vm6282 = vcmp.gt.f32.partialorder %v6250, 0.0
    %vm6283 = vcmp.gt.f32.partialorder %v6251, 0.0
    %vm6284 = vcmp.gt.f32.partialorder %v6252, 0.0
    %vm6285 = vcmp.gt.f32.partialorder %v6253, 0.0
    %vm6286 = vcmp.gt.f32.partialorder %v6254, 0.0
    %vm6287 = vcmp.gt.f32.partialorder %v6255, 0.0
    %vm6288 = vcmp.gt.f32.partialorder %v6256, 0.0
    %vm6289 = vcmp.gt.f32.partialorder %v6257, 0.0
    %vm6290 = vcmp.gt.f32.partialorder %v6258, 0.0
    %vm6291 = vcmp.gt.f32.partialorder %v6259, 0.0
    %vm6292 = vcmp.gt.f32.partialorder %v6260, 0.0
    %vm6293 = vcmp.gt.f32.partialorder %v6261, 0.0
    %vm6294 = vcmp.gt.f32.partialorder %v6262, 0.0
    %vm6295 = vcmp.gt.f32.partialorder %v6263, 0.0
    %vm6296 = vcmp.gt.f32.partialorder %v6264, 0.0
    %vm6297 = vcmp.gt.f32.partialorder %v6265, 0.0
    %vm6298 = vcmp.gt.f32.partialorder %v6266, 0.0
    %vm6299 = vcmp.gt.f32.partialorder %v6267, 0.0
    %vm6300 = vcmp.gt.f32.partialorder %v6268, 0.0
    %vm6301 = vcmp.gt.f32.partialorder %v6269, 0.0
    %vm6302 = vcmp.gt.f32.partialorder %v6270, 0.0
    %vm6303 = vcmp.gt.f32.partialorder %v6271, 0.0
    %vm6304 = vcmp.gt.f32.partialorder %v6272, 0.0
    %vm6305 = vcmp.gt.f32.partialorder %v6273, 0.0
    %vm6306 = vcmp.gt.f32.partialorder %v6274, 0.0
    %vm6307 = vcmp.gt.f32.partialorder %v6275, 0.0
    %v6308 = vmul.f32 %v6244, 0.01
    %v6309 = vmul.f32 %v6245, 0.01
    %v6310 = vmul.f32 %v6246, 0.01
    %v6311 = vmul.f32 %v6247, 0.01
    %v6312 = vmul.f32 %v6248, 0.01
    %v6313 = vmul.f32 %v6249, 0.01
    %v6314 = vmul.f32 %v6250, 0.01
    %v6315 = vmul.f32 %v6251, 0.01
    %v6316 = vmul.f32 %v6252, 0.01
    %v6317 = vmul.f32 %v6253, 0.01
    %v6318 = vmul.f32 %v6254, 0.01
    %v6319 = vmul.f32 %v6255, 0.01
    %v6320 = vmul.f32 %v6256, 0.01
    %v6321 = vmul.f32 %v6257, 0.01
    %v6322 = vmul.f32 %v6258, 0.01
    %v6323 = vmul.f32 %v6259, 0.01
    %v6324 = vmul.f32 %v6260, 0.01
    %v6325 = vmul.f32 %v6261, 0.01
    %v6326 = vmul.f32 %v6262, 0.01
    %v6327 = vmul.f32 %v6263, 0.01
    %v6328 = vmul.f32 %v6264, 0.01
    %v6329 = vmul.f32 %v6265, 0.01
    %v6330 = vmul.f32 %v6266, 0.01
    %v6331 = vmul.f32 %v6267, 0.01
    %v6332 = vmul.f32 %v6268, 0.01
    %v6333 = vmul.f32 %v6269, 0.01
    %v6334 = vmul.f32 %v6270, 0.01
    %v6335 = vmul.f32 %v6271, 0.01
    %v6336 = vmul.f32 %v6272, 0.01
    %v6337 = vmul.f32 %v6273, 0.01
    %v6338 = vmul.f32 %v6274, 0.01
    %v6339 = vmul.f32 %v6275, 0.01
    %v6340 = vsel %vm6276, %v6244, %v6308
    %v6341 = vsel %vm6277, %v6245, %v6309
    %v6342 = vsel %vm6278, %v6246, %v6310
    %v6343 = vsel %vm6279, %v6247, %v6311
    %v6344 = vsel %vm6280, %v6248, %v6312
    %v6345 = vsel %vm6281, %v6249, %v6313
    %v6346 = vsel %vm6282, %v6250, %v6314
    %v6347 = vsel %vm6283, %v6251, %v6315
    %v6348 = vsel %vm6284, %v6252, %v6316
    %v6349 = vsel %vm6285, %v6253, %v6317
    %v6350 = vsel %vm6286, %v6254, %v6318
    %v6351 = vsel %vm6287, %v6255, %v6319
    %v6352 = vsel %vm6288, %v6256, %v6320
    %v6353 = vsel %vm6289, %v6257, %v6321
    %v6354 = vsel %vm6290, %v6258, %v6322
    %v6355 = vsel %vm6291, %v6259, %v6323
    %v6356 = vsel %vm6292, %v6260, %v6324
    %v6357 = vsel %vm6293, %v6261, %v6325
    %v6358 = vsel %vm6294, %v6262, %v6326
    %v6359 = vsel %vm6295, %v6263, %v6327
    %v6360 = vsel %vm6296, %v6264, %v6328
    %v6361 = vsel %vm6297, %v6265, %v6329
    %v6362 = vsel %vm6298, %v6266, %v6330
    %v6363 = vsel %vm6299, %v6267, %v6331
    %v6364 = vsel %vm6300, %v6268, %v6332
    %v6365 = vsel %vm6301, %v6269, %v6333
    %v6366 = vsel %vm6302, %v6270, %v6334
    %v6367 = vsel %vm6303, %v6271, %v6335
    %v6368 = vsel %vm6304, %v6272, %v6336
    %v6369 = vsel %vm6305, %v6273, %v6337
    %v6370 = vsel %vm6306, %v6274, %v6338
    %v6371 = vsel %vm6307, %v6275, %v6339
    %v6372 = vlaneseq
    %v6373 = vand.u32 %v6372, 127
    %v6374 = vmul.u32 %v66, 16
    %vm6375 = vcmp.ge.s32.totalorder %v6373, %v6374
    %v6376 = vadd.s32 %v6374, 16
    %vm6377 = vcmp.lt.s32.totalorder %v6373, %v6376
    %vm6378 = vmand %vm6375, %vm6377
    %v6379 = vsel %vm6378, 1.0, 0.0
    %v6380 = vmul.u32 %v6373, 16
    %vm6381 = vcmp.ge.s32.totalorder %v66, %v6380
    %vm6382 = vcmp.ge.s32.totalorder %v67, %v6380
    %vm6383 = vcmp.ge.s32.totalorder %v68, %v6380
    %vm6384 = vcmp.ge.s32.totalorder %v69, %v6380
    %vm6385 = vcmp.ge.s32.totalorder %v70, %v6380
    %vm6386 = vcmp.ge.s32.totalorder %v71, %v6380
    %vm6387 = vcmp.ge.s32.totalorder %v72, %v6380
    %vm6388 = vcmp.ge.s32.totalorder %v73, %v6380
    %vm6389 = vcmp.ge.s32.totalorder %v74, %v6380
    %vm6390 = vcmp.ge.s32.totalorder %v75, %v6380
    %vm6391 = vcmp.ge.s32.totalorder %v76, %v6380
    %vm6392 = vcmp.ge.s32.totalorder %v77, %v6380
    %vm6393 = vcmp.ge.s32.totalorder %v78, %v6380
    %vm6394 = vcmp.ge.s32.totalorder %v79, %v6380
    %vm6395 = vcmp.ge.s32.totalorder %v80, %v6380
    %vm6396 = vcmp.ge.s32.totalorder %v81, %v6380
    %v6397 = vadd.s32 %v6380, 16
    %vm6398 = vcmp.lt.s32.totalorder %v66, %v6397
    %vm6399 = vcmp.lt.s32.totalorder %v67, %v6397
    %vm6400 = vcmp.lt.s32.totalorder %v68, %v6397
    %vm6401 = vcmp.lt.s32.totalorder %v69, %v6397
    %vm6402 = vcmp.lt.s32.totalorder %v70, %v6397
    %vm6403 = vcmp.lt.s32.totalorder %v71, %v6397
    %vm6404 = vcmp.lt.s32.totalorder %v72, %v6397
    %vm6405 = vcmp.lt.s32.totalorder %v73, %v6397
    %vm6406 = vcmp.lt.s32.totalorder %v74, %v6397
    %vm6407 = vcmp.lt.s32.totalorder %v75, %v6397
    %vm6408 = vcmp.lt.s32.totalorder %v76, %v6397
    %vm6409 = vcmp.lt.s32.totalorder %v77, %v6397
    %vm6410 = vcmp.lt.s32.totalorder %v78, %v6397
    %vm6411 = vcmp.lt.s32.totalorder %v79, %v6397
    %vm6412 = vcmp.lt.s32.totalorder %v80, %v6397
    %vm6413 = vcmp.lt.s32.totalorder %v81, %v6397
    %vm6414 = vmand %vm6381, %vm6398
    %vm6415 = vmand %vm6382, %vm6399
    %vm6416 = vmand %vm6383, %vm6400
    %vm6417 = vmand %vm6384, %vm6401
    %vm6418 = vmand %vm6385, %vm6402
    %vm6419 = vmand %vm6386, %vm6403
    %vm6420 = vmand %vm6387, %vm6404
    %vm6421 = vmand %vm6388, %vm6405
    %vm6422 = vmand %vm6389, %vm6406
    %vm6423 = vmand %vm6390, %vm6407
    %vm6424 = vmand %vm6391, %vm6408
    %vm6425 = vmand %vm6392, %vm6409
    %vm6426 = vmand %vm6393, %vm6410
    %vm6427 = vmand %vm6394, %vm6411
    %vm6428 = vmand %vm6395, %vm6412
    %vm6429 = vmand %vm6396, %vm6413
    %v6430 = vsel %vm6414, 1.0, 0.0
    %v6431 = vsel %vm6415, 1.0, 0.0
    %v6432 = vsel %vm6416, 1.0, 0.0
    %v6433 = vsel %vm6417, 1.0, 0.0
    %v6434 = vsel %vm6418, 1.0, 0.0
    %v6435 = vsel %vm6419, 1.0, 0.0
    %v6436 = vsel %vm6420, 1.0, 0.0
    %v6437 = vsel %vm6421, 1.0, 0.0
    %v6438 = vsel %vm6422, 1.0, 0.0
    %v6439 = vsel %vm6423, 1.0, 0.0
    %v6440 = vsel %vm6424, 1.0, 0.0
    %v6441 = vsel %vm6425, 1.0, 0.0
    %v6442 = vsel %vm6426, 1.0, 0.0
    %v6443 = vsel %vm6427, 1.0, 0.0
    %v6444 = vsel %vm6428, 1.0, 0.0
    %v6445 = vsel %vm6429, 1.0, 0.0
    %6446 = vmatprep.subr.mxu0 %v6341
    %6447 = vmatpush1.msra.mxu0 %v6340
    %6448 = vmatprep.subr.mxu0 %v6343
    %6449 = vmatpush1.msra.mxu0 %v6342
    %6450 = vmatprep.subr.mxu0 %v6345
    %6451 = vmatpush1.msra.mxu0 %v6344
    %6452 = vmatprep.subr.mxu0 %v6347
    %6453 = vmatpush1.msra.mxu0 %v6346
    %6454 = vmatprep.subr.mxu0 %v6349
    %6455 = vmatpush1.msra.mxu0 %v6348
    %6456 = vmatprep.subr.mxu0 %v6351
    %6457 = vmatpush1.msra.mxu0 %v6350
    %6458 = vmatprep.subr.mxu0 %v6353
    %6459 = vmatpush1.msra.mxu0 %v6352
    %6460 = vmatprep.subr.mxu0 %v6355
    %6461 = vmatpush1.msra.mxu0 %v6354
    %6462 = vmatprep.subr.mxu0 %v6357
    %6463 = vmatpush1.msra.mxu0 %v6356
    %6464 = vmatprep.subr.mxu0 %v6359
    %6465 = vmatpush1.msra.mxu0 %v6358
    %6466 = vmatprep.subr.mxu0 %v6361
    %6467 = vmatpush1.msra.mxu0 %v6360
    %6468 = vmatprep.subr.mxu0 %v6363
    %6469 = vmatpush1.msra.mxu0 %v6362
    %6470 = vmatprep.subr.mxu0 %v6365
    %6471 = vmatpush1.msra.mxu0 %v6364
    %6472 = vmatprep.subr.mxu0 %v6367
    %6473 = vmatpush1.msra.mxu0 %v6366
    %6474 = vmatprep.subr.mxu0 %v6369
    %6475 = vmatpush1.msra.mxu0 %v6368
    %6476 = vmatprep.subr.mxu0 %v6371
    %6477 = vmatpush1.msra.mxu0 %v6370
    %6478 = vmatprep.subr.mxu0 0.0
    %6479 = vmatpush1.msra.mxu0 0.0
    %6480 = vmatprep.subr.mxu0 0.0
    %6481 = vmatpush1.msra.mxu0 0.0
    %6482 = vmatprep.subr.mxu0 0.0
    %6483 = vmatpush1.msra.mxu0 0.0
    %6484 = vmatprep.subr.mxu0 0.0
    %6485 = vmatpush1.msra.mxu0 0.0
    %6486 = vmatprep.subr.mxu0 0.0
    %6487 = vmatpush1.msra.mxu0 0.0
    %6488 = vmatprep.subr.mxu0 0.0
    %6489 = vmatpush1.msra.mxu0 0.0
    %6490 = vmatprep.subr.mxu0 0.0
    %6491 = vmatpush1.msra.mxu0 0.0
    %6492 = vmatprep.subr.mxu0 0.0
    %6493 = vmatpush1.msra.mxu0 0.0
    %6494 = vmatprep.subr.mxu0 0.0
    %6495 = vmatpush1.msra.mxu0 0.0
    %6496 = vmatprep.subr.mxu0 0.0
    %6497 = vmatpush1.msra.mxu0 0.0
    %6498 = vmatprep.subr.mxu0 0.0
    %6499 = vmatpush1.msra.mxu0 0.0
    %6500 = vmatprep.subr.mxu0 0.0
    %6501 = vmatpush1.msra.mxu0 0.0
    %6502 = vmatprep.subr.mxu0 0.0
    %6503 = vmatpush1.msra.mxu0 0.0
    %6504 = vmatprep.subr.mxu0 0.0
    %6505 = vmatpush1.msra.mxu0 0.0
    %6506 = vmatprep.subr.mxu0 0.0
    %6507 = vmatpush1.msra.mxu0 0.0
    %6508 = vmatprep.subr.mxu0 0.0
    %6509 = vmatpush1.msra.mxu0 0.0
    %6510 = vmatprep.mubr.f32.mxu0 0.0
    %6511 = vmatmul.mubr.f32.gmra.mrb[0].mxu0 %v6379
    %v6512 = vpop.f32.mrb[0].mxu0
    %v6513 = vadd.f32 0.0, %v6512
    %v6514 = vpop.f32.mrb[0].mxu0
    %v6515 = vadd.f32 0.0, %v6514
    %6516 = vdwg.mxu0
    %v6517 = vld [vmem:[%s3] sm:$0x3]
    %v6519 = vlaneseq
    %v6520 = vshrl.u32 %v6519, 7
    %v6521 = vsub.s32 0, %v6520
    %v6522 = vrot.slane %v6517, %v6521
    %v6523 = vlaneseq
    %v6524 = vshrl.u32 %v6523, 7
    %v6525 = vsub.s32 1, %v6524
    %v6526 = vrot.slane %v6517, %v6525
    %v6529 = vmul.f32 %v6513, %v6522
    %v6530 = vmul.f32 %v6515, %v6526
    %v6531 = vadd.f32 %v6529, %v6530
    %6532 = vadd.xlane.f32.xlu0 %v6531
    %v6533 = vpop.xlane.xlu0 %6532
    %v6534 = vmax.f32 %v6533, 0.0
    %v6535 = vld [vmem:[%s4] sm:$0x3]
    %v6537 = vlaneseq
    %v6538 = vshrl.u32 %v6537, 7
    %v6539 = vsub.s32 0, %v6538
    %v6540 = vrot.slane %v6535, %v6539
    %v6541 = vlaneseq
    %v6542 = vshrl.u32 %v6541, 7
    %v6543 = vsub.s32 1, %v6542
    %v6544 = vrot.slane %v6535, %v6543
    %v6547 = vmul.f32 %v6534, %v6540
    %v6548 = vmul.f32 %v6534, %v6544
    %v6549 = vadd.f32 %v6547, 0.0
    %v6550 = vadd.f32 %v6548, 0.0
    %v6551 = vxor.u32 %v6549, 2147483648
    %v6552 = vxor.u32 %v6550, 2147483648
    %v6553 = vmul.f32 %v6551, 1.442695
    %v6554 = vpow.pop %v6553
    %v6555 = vmul.f32 %v6552, 1.442695
    %v6556 = vpow.pop %v6555
    %v6557 = vadd.f32 %v6554, 1.0
    %v6558 = vadd.f32 %v6556, 1.0
    %v6559 = vrcp.pop %v6557
    %v6560 = vmul.f32 1.0, %v6559
    %v6561 = vrcp.pop %v6558
    %v6562 = vmul.f32 1.0, %v6561
    %vm6563 = vcmask 64512
    %v6565 = vsel %vm6563, %v6430, 0
    %v6568 = vsel %vm6563, %v6431, 0
    %v6571 = vsel %vm6563, %v6432, 0
    %v6574 = vsel %vm6563, %v6433, 0
    %v6577 = vsel %vm6563, %v6434, 0
    %v6580 = vsel %vm6563, %v6435, 0
    %v6583 = vsel %vm6563, %v6436, 0
    %v6586 = vsel %vm6563, %v6437, 0
    %v6589 = vsel %vm6563, %v6438, 0
    %v6592 = vsel %vm6563, %v6439, 0
    %v6595 = vsel %vm6563, %v6440, 0
    %v6598 = vsel %vm6563, %v6441, 0
    %v6601 = vsel %vm6563, %v6442, 0
    %v6604 = vsel %vm6563, %v6443, 0
    %v6607 = vsel %vm6563, %v6444, 0
    %v6610 = vsel %vm6563, %v6445, 0
    %6612 = vmatprep.subr.mxu0 %v6562
    %6613 = vmatpush1.msra.mxu0 %v6560
    %6614 = vmatprep.subr.mxu0 0.0
    %6615 = vmatpush1.msra.mxu0 0.0
    %6616 = vmatprep.subr.mxu0 0.0
    %6617 = vmatpush1.msra.mxu0 0.0
    %6618 = vmatprep.subr.mxu0 0.0
    %6619 = vmatpush1.msra.mxu0 0.0
    %6620 = vmatprep.subr.mxu0 0.0
    %6621 = vmatpush1.msra.mxu0 0.0
    %6622 = vmatprep.subr.mxu0 0.0
    %6623 = vmatpush1.msra.mxu0 0.0
    %6624 = vmatprep.subr.mxu0 0.0
    %6625 = vmatpush1.msra.mxu0 0.0
    %6626 = vmatprep.subr.mxu0 0.0
    %6627 = vmatpush1.msra.mxu0 0.0
    %6628 = vmatprep.subr.mxu0 0.0
    %6629 = vmatpush1.msra.mxu0 0.0
    %6630 = vmatprep.subr.mxu0 0.0
    %6631 = vmatpush1.msra.mxu0 0.0
    %6632 = vmatprep.subr.mxu0 0.0
    %6633 = vmatpush1.msra.mxu0 0.0
    %6634 = vmatprep.subr.mxu0 0.0
    %6635 = vmatpush1.msra.mxu0 0.0
    %6636 = vmatprep.subr.mxu0 0.0
    %6637 = vmatpush1.msra.mxu0 0.0
    %6638 = vmatprep.subr.mxu0 0.0
    %6639 = vmatpush1.msra.mxu0 0.0
    %6640 = vmatprep.subr.mxu0 0.0
    %6641 = vmatpush1.msra.mxu0 0.0
    %6642 = vmatprep.subr.mxu0 0.0
    %6643 = vmatpush1.msra.mxu0 0.0
    %6644 = vmatprep.subr.mxu0 0.0
    %6645 = vmatpush1.msra.mxu0 0.0
    %6646 = vmatprep.subr.mxu0 0.0
    %6647 = vmatpush1.msra.mxu0 0.0
    %6648 = vmatprep.subr.mxu0 0.0
    %6649 = vmatpush1.msra.mxu0 0.0
    %6650 = vmatprep.subr.mxu0 0.0
    %6651 = vmatpush1.msra.mxu0 0.0
    %6652 = vmatprep.subr.mxu0 0.0
    %6653 = vmatpush1.msra.mxu0 0.0
    %6654 = vmatprep.subr.mxu0 0.0
    %6655 = vmatpush1.msra.mxu0 0.0
    %6656 = vmatprep.subr.mxu0 0.0
    %6657 = vmatpush1.msra.mxu0 0.0
    %6658 = vmatprep.subr.mxu0 0.0
    %6659 = vmatpush1.msra.mxu0 0.0
    %6660 = vmatprep.subr.mxu0 0.0
    %6661 = vmatpush1.msra.mxu0 0.0
    %6662 = vmatprep.subr.mxu0 0.0
    %6663 = vmatpush1.msra.mxu0 0.0
    %6664 = vmatprep.subr.mxu0 0.0
    %6665 = vmatpush1.msra.mxu0 0.0
    %6666 = vmatprep.subr.mxu0 0.0
    %6667 = vmatpush1.msra.mxu0 0.0
    %6668 = vmatprep.subr.mxu0 0.0
    %6669 = vmatpush1.msra.mxu0 0.0
    %6670 = vmatprep.subr.mxu0 0.0
    %6671 = vmatpush1.msra.mxu0 0.0
    %6672 = vmatprep.subr.mxu0 0.0
    %6673 = vmatpush1.msra.mxu0 0.0
    %6674 = vmatprep.subr.mxu0 0.0
    %6675 = vmatpush1.msra.mxu0 0.0
    %6676 = vmatprep.mubr.f32.mxu0 0.0
    %6677 = vmatmul.mubr.f32.gmra.mrb[0].mxu0 %v6565
    %v6678 = vpop.f32.mrb[0].mxu0
    %v6679 = vadd.f32 0.0, %v6678
    %v6680 = vpop.f32.mrb[0].mxu0
    %v6681 = vadd.f32 0.0, %v6680
    %6682 = vmatprep.mubr.f32.mxu0 0.0
    %6683 = vmatmul.mubr.f32.gmra.mrb[0].mxu0 %v6568
    %v6684 = vpop.f32.mrb[0].mxu0
    %v6685 = vadd.f32 0.0, %v6684
    %v6686 = vpop.f32.mrb[0].mxu0
    %v6687 = vadd.f32 0.0, %v6686
    %6688 = vmatprep.mubr.f32.mxu0 0.0
    %6689 = vmatmul.mubr.f32.gmra.mrb[0].mxu0 %v6571
    %v6690 = vpop.f32.mrb[0].mxu0
    %v6691 = vadd.f32 0.0, %v6690
    %v6692 = vpop.f32.mrb[0].mxu0
    %v6693 = vadd.f32 0.0, %v6692
    %6694 = vmatprep.mubr.f32.mxu0 0.0
    %6695 = vmatmul.mubr.f32.gmra.mrb[0].mxu0 %v6574
    %v6696 = vpop.f32.mrb[0].mxu0
    %v6697 = vadd.f32 0.0, %v6696
    %v6698 = vpop.f32.mrb[0].mxu0
    %v6699 = vadd.f32 0.0, %v6698
    %6700 = vmatprep.mubr.f32.mxu0 0.0
    %6701 = vmatmul.mubr.f32.gmra.mrb[0].mxu0 %v6577
    %v6702 = vpop.f32.mrb[0].mxu0
    %v6703 = vadd.f32 0.0, %v6702
    %v6704 = vpop.f32.mrb[0].mxu0
    %v6705 = vadd.f32 0.0, %v6704
    %6706 = vmatprep.mubr.f32.mxu0 0.0
    %6707 = vmatmul.mubr.f32.gmra.mrb[0].mxu0 %v6580
    %v6708 = vpop.f32.mrb[0].mxu0
    %v6709 = vadd.f32 0.0, %v6708
    %v6710 = vpop.f32.mrb[0].mxu0
    %v6711 = vadd.f32 0.0, %v6710
    %6712 = vmatprep.mubr.f32.mxu0 0.0
    %6713 = vmatmul.mubr.f32.gmra.mrb[0].mxu0 %v6583
    %v6714 = vpop.f32.mrb[0].mxu0
    %v6715 = vadd.f32 0.0, %v6714
    %v6716 = vpop.f32.mrb[0].mxu0
    %v6717 = vadd.f32 0.0, %v6716
    %6718 = vmatprep.mubr.f32.mxu0 0.0
    %6719 = vmatmul.mubr.f32.gmra.mrb[0].mxu0 %v6586
    %v6720 = vpop.f32.mrb[0].mxu0
    %v6721 = vadd.f32 0.0, %v6720
    %v6722 = vpop.f32.mrb[0].mxu0
    %v6723 = vadd.f32 0.0, %v6722
    %6724 = vmatprep.mubr.f32.mxu0 0.0
    %6725 = vmatmul.mubr.f32.gmra.mrb[0].mxu0 %v6589
    %v6726 = vpop.f32.mrb[0].mxu0
    %v6727 = vadd.f32 0.0, %v6726
    %v6728 = vpop.f32.mrb[0].mxu0
    %v6729 = vadd.f32 0.0, %v6728
    %6730 = vmatprep.mubr.f32.mxu0 0.0
    %6731 = vmatmul.mubr.f32.gmra.mrb[0].mxu0 %v6592
    %v6732 = vpop.f32.mrb[0].mxu0
    %v6733 = vadd.f32 0.0, %v6732
    %v6734 = vpop.f32.mrb[0].mxu0
    %v6735 = vadd.f32 0.0, %v6734
    %6736 = vmatprep.mubr.f32.mxu0 0.0
    %6737 = vmatmul.mubr.f32.gmra.mrb[0].mxu0 %v6595
    %v6738 = vpop.f32.mrb[0].mxu0
    %v6739 = vadd.f32 0.0, %v6738
    %v6740 = vpop.f32.mrb[0].mxu0
    %v6741 = vadd.f32 0.0, %v6740
    %6742 = vmatprep.mubr.f32.mxu0 0.0
    %6743 = vmatmul.mubr.f32.gmra.mrb[0].mxu0 %v6598
    %v6744 = vpop.f32.mrb[0].mxu0
    %v6745 = vadd.f32 0.0, %v6744
    %v6746 = vpop.f32.mrb[0].mxu0
    %v6747 = vadd.f32 0.0, %v6746
    %6748 = vmatprep.mubr.f32.mxu0 0.0
    %6749 = vmatmul.mubr.f32.gmra.mrb[0].mxu0 %v6601
    %v6750 = vpop.f32.mrb[0].mxu0
    %v6751 = vadd.f32 0.0, %v6750
    %v6752 = vpop.f32.mrb[0].mxu0
    %v6753 = vadd.f32 0.0, %v6752
    %6754 = vmatprep.mubr.f32.mxu0 0.0
    %6755 = vmatmul.mubr.f32.gmra.mrb[0].mxu0 %v6604
    %v6756 = vpop.f32.mrb[0].mxu0
    %v6757 = vadd.f32 0.0, %v6756
    %v6758 = vpop.f32.mrb[0].mxu0
    %v6759 = vadd.f32 0.0, %v6758
    %6760 = vmatprep.mubr.f32.mxu0 0.0
    %6761 = vmatmul.mubr.f32.gmra.mrb[0].mxu0 %v6607
    %v6762 = vpop.f32.mrb[0].mxu0
    %v6763 = vadd.f32 0.0, %v6762
    %v6764 = vpop.f32.mrb[0].mxu0
    %v6765 = vadd.f32 0.0, %v6764
    %6766 = vmatprep.mubr.f32.mxu0 0.0
    %6767 = vmatmul.mubr.f32.gmra.mrb[0].mxu0 %v6610
    %v6768 = vpop.f32.mrb[0].mxu0
    %v6769 = vadd.f32 0.0, %v6768
    %v6770 = vpop.f32.mrb[0].mxu0
    %v6771 = vadd.f32 0.0, %v6770
    %6772 = vdwg.mxu0
    %v6773 = vmul.f32 %v6340, %v6679
    %v6774 = vmul.f32 %v6341, %v6681
    %v6775 = vmul.f32 %v6342, %v6685
    %v6776 = vmul.f32 %v6343, %v6687
    %v6777 = vmul.f32 %v6344, %v6691
    %v6778 = vmul.f32 %v6345, %v6693
    %v6779 = vmul.f32 %v6346, %v6697
    %v6780 = vmul.f32 %v6347, %v6699
    %v6781 = vmul.f32 %v6348, %v6703
    %v6782 = vmul.f32 %v6349, %v6705
    %v6783 = vmul.f32 %v6350, %v6709
    %v6784 = vmul.f32 %v6351, %v6711
    %v6785 = vmul.f32 %v6352, %v6715
    %v6786 = vmul.f32 %v6353, %v6717
    %v6787 = vmul.f32 %v6354, %v6721
    %v6788 = vmul.f32 %v6355, %v6723
    %v6789 = vmul.f32 %v6356, %v6727
    %v6790 = vmul.f32 %v6357, %v6729
    %v6791 = vmul.f32 %v6358, %v6733
    %v6792 = vmul.f32 %v6359, %v6735
    %v6793 = vmul.f32 %v6360, %v6739
    %v6794 = vmul.f32 %v6361, %v6741
    %v6795 = vmul.f32 %v6362, %v6745
    %v6796 = vmul.f32 %v6363, %v6747
    %v6797 = vmul.f32 %v6364, %v6751
    %v6798 = vmul.f32 %v6365, %v6753
    %v6799 = vmul.f32 %v6366, %v6757
    %v6800 = vmul.f32 %v6367, %v6759
    %v6801 = vmul.f32 %v6368, %v6763
    %v6802 = vmul.f32 %v6369, %v6765
    %v6803 = vmul.f32 %v6370, %v6769
    %v6804 = vmul.f32 %v6371, %v6771
    %v6805 = vadd.f32 %v6773, %v98
    %v6806 = vadd.f32 %v6774, %v99
    %v6807 = vadd.f32 %v6775, %v100
    %v6808 = vadd.f32 %v6776, %v101
    %v6809 = vadd.f32 %v6777, %v102
    %v6810 = vadd.f32 %v6778, %v103
    %v6811 = vadd.f32 %v6779, %v104
    %v6812 = vadd.f32 %v6780, %v105
    %v6813 = vadd.f32 %v6781, %v106
    %v6814 = vadd.f32 %v6782, %v107
    %v6815 = vadd.f32 %v6783, %v108
    %v6816 = vadd.f32 %v6784, %v109
    %v6817 = vadd.f32 %v6785, %v110
    %v6818 = vadd.f32 %v6786, %v111
    %v6819 = vadd.f32 %v6787, %v112
    %v6820 = vadd.f32 %v6788, %v113
    %v6821 = vadd.f32 %v6789, %v114
    %v6822 = vadd.f32 %v6790, %v115
    %v6823 = vadd.f32 %v6791, %v116
    %v6824 = vadd.f32 %v6792, %v117
    %v6825 = vadd.f32 %v6793, %v118
    %v6826 = vadd.f32 %v6794, %v119
    %v6827 = vadd.f32 %v6795, %v120
    %v6828 = vadd.f32 %v6796, %v121
    %v6829 = vadd.f32 %v6797, %v122
    %v6830 = vadd.f32 %v6798, %v123
    %v6831 = vadd.f32 %v6799, %v124
    %v6832 = vadd.f32 %v6800, %v125
    %v6833 = vadd.f32 %v6801, %v126
    %v6834 = vadd.f32 %v6802, %v127
    %v6835 = vadd.f32 %v6803, %v128
    %v6836 = vadd.f32 %v6804, %v129
    %vm6837 = vcmp.gt.f32.partialorder %v6805, 0.0
    %vm6838 = vcmp.gt.f32.partialorder %v6806, 0.0
    %vm6839 = vcmp.gt.f32.partialorder %v6807, 0.0
    %vm6840 = vcmp.gt.f32.partialorder %v6808, 0.0
    %vm6841 = vcmp.gt.f32.partialorder %v6809, 0.0
    %vm6842 = vcmp.gt.f32.partialorder %v6810, 0.0
    %vm6843 = vcmp.gt.f32.partialorder %v6811, 0.0
    %vm6844 = vcmp.gt.f32.partialorder %v6812, 0.0
    %vm6845 = vcmp.gt.f32.partialorder %v6813, 0.0
    %vm6846 = vcmp.gt.f32.partialorder %v6814, 0.0
    %vm6847 = vcmp.gt.f32.partialorder %v6815, 0.0
    %vm6848 = vcmp.gt.f32.partialorder %v6816, 0.0
    %vm6849 = vcmp.gt.f32.partialorder %v6817, 0.0
    %vm6850 = vcmp.gt.f32.partialorder %v6818, 0.0
    %vm6851 = vcmp.gt.f32.partialorder %v6819, 0.0
    %vm6852 = vcmp.gt.f32.partialorder %v6820, 0.0
    %vm6853 = vcmp.gt.f32.partialorder %v6821, 0.0
    %vm6854 = vcmp.gt.f32.partialorder %v6822, 0.0
    %vm6855 = vcmp.gt.f32.partialorder %v6823, 0.0
    %vm6856 = vcmp.gt.f32.partialorder %v6824, 0.0
    %vm6857 = vcmp.gt.f32.partialorder %v6825, 0.0
    %vm6858 = vcmp.gt.f32.partialorder %v6826, 0.0
    %vm6859 = vcmp.gt.f32.partialorder %v6827, 0.0
    %vm6860 = vcmp.gt.f32.partialorder %v6828, 0.0
    %vm6861 = vcmp.gt.f32.partialorder %v6829, 0.0
    %vm6862 = vcmp.gt.f32.partialorder %v6830, 0.0
    %vm6863 = vcmp.gt.f32.partialorder %v6831, 0.0
    %vm6864 = vcmp.gt.f32.partialorder %v6832, 0.0
    %vm6865 = vcmp.gt.f32.partialorder %v6833, 0.0
    %vm6866 = vcmp.gt.f32.partialorder %v6834, 0.0
    %vm6867 = vcmp.gt.f32.partialorder %v6835, 0.0
    %vm6868 = vcmp.gt.f32.partialorder %v6836, 0.0
    %v6869 = vmul.f32 %v6805, 0.01
    %v6870 = vmul.f32 %v6806, 0.01
    %v6871 = vmul.f32 %v6807, 0.01
    %v6872 = vmul.f32 %v6808, 0.01
    %v6873 = vmul.f32 %v6809, 0.01
    %v6874 = vmul.f32 %v6810, 0.01
    %v6875 = vmul.f32 %v6811, 0.01
    %v6876 = vmul.f32 %v6812, 0.01
    %v6877 = vmul.f32 %v6813, 0.01
    %v6878 = vmul.f32 %v6814, 0.01
    %v6879 = vmul.f32 %v6815, 0.01
    %v6880 = vmul.f32 %v6816, 0.01
    %v6881 = vmul.f32 %v6817, 0.01
    %v6882 = vmul.f32 %v6818, 0.01
    %v6883 = vmul.f32 %v6819, 0.01
    %v6884 = vmul.f32 %v6820, 0.01
    %v6885 = vmul.f32 %v6821, 0.01
    %v6886 = vmul.f32 %v6822, 0.01
    %v6887 = vmul.f32 %v6823, 0.01
    %v6888 = vmul.f32 %v6824, 0.01
    %v6889 = vmul.f32 %v6825, 0.01
    %v6890 = vmul.f32 %v6826, 0.01
    %v6891 = vmul.f32 %v6827, 0.01
    %v6892 = vmul.f32 %v6828, 0.01
    %v6893 = vmul.f32 %v6829, 0.01
    %v6894 = vmul.f32 %v6830, 0.01
    %v6895 = vmul.f32 %v6831, 0.01
    %v6896 = vmul.f32 %v6832, 0.01
    %v6897 = vmul.f32 %v6833, 0.01
    %v6898 = vmul.f32 %v6834, 0.01
    %v6899 = vmul.f32 %v6835, 0.01
    %v6900 = vmul.f32 %v6836, 0.01
    %v6901 = vsel %vm6837, %v6805, %v6869
    %v6902 = vsel %vm6838, %v6806, %v6870
    %v6903 = vsel %vm6839, %v6807, %v6871
    %v6904 = vsel %vm6840, %v6808, %v6872
    %v6905 = vsel %vm6841, %v6809, %v6873
    %v6906 = vsel %vm6842, %v6810, %v6874
    %v6907 = vsel %vm6843, %v6811, %v6875
    %v6908 = vsel %vm6844, %v6812, %v6876
    %v6909 = vsel %vm6845, %v6813, %v6877
    %v6910 = vsel %vm6846, %v6814, %v6878
    %v6911 = vsel %vm6847, %v6815, %v6879
    %v6912 = vsel %vm6848, %v6816, %v6880
    %v6913 = vsel %vm6849, %v6817, %v6881
    %v6914 = vsel %vm6850, %v6818, %v6882
    %v6915 = vsel %vm6851, %v6819, %v6883
    %v6916 = vsel %vm6852, %v6820, %v6884
    %v6917 = vsel %vm6853, %v6821, %v6885
    %v6918 = vsel %vm6854, %v6822, %v6886
    %v6919 = vsel %vm6855, %v6823, %v6887
    %v6920 = vsel %vm6856, %v6824, %v6888
    %v6921 = vsel %vm6857, %v6825, %v6889
    %v6922 = vsel %vm6858, %v6826, %v6890
    %v6923 = vsel %vm6859, %v6827, %v6891
    %v6924 = vsel %vm6860, %v6828, %v6892
    %v6925 = vsel %vm6861, %v6829, %v6893
    %v6926 = vsel %vm6862, %v6830, %v6894
    %v6927 = vsel %vm6863, %v6831, %v6895
    %v6928 = vsel %vm6864, %v6832, %v6896
    %v6929 = vsel %vm6865, %v6833, %v6897
    %v6930 = vsel %vm6866, %v6834, %v6898
    %v6931 = vsel %vm6867, %v6835, %v6899
    %v6932 = vsel %vm6868, %v6836, %v6900
    %6933 = vst [vmem:[#allocation9] sm:$0xff] %v6901
    %6934 = vst [vmem:[#allocation9 + $0x8] sm:$0xff] %v6902
    %6935 = vst [vmem:[#allocation9 + $0x10] sm:$0xff] %v6903
    %6936 = vst [vmem:[#allocation9 + $0x18] sm:$0xff] %v6904
    %6937 = vst [vmem:[#allocation9 + $0x20] sm:$0xff] %v6905
    %6938 = vst [vmem:[#allocation9 + $0x28] sm:$0xff] %v6906
    %6939 = vst [vmem:[#allocation9 + $0x30] sm:$0xff] %v6907
    %6940 = vst [vmem:[#allocation9 + $0x38] sm:$0xff] %v6908
    %6941 = vst [vmem:[#allocation9 + $0x40] sm:$0xff] %v6909
    %6942 = vst [vmem:[#allocation9 + $0x48] sm:$0xff] %v6910
    %6943 = vst [vmem:[#allocation9 + $0x50] sm:$0xff] %v6911
    %6944 = vst [vmem:[#allocation9 + $0x58] sm:$0xff] %v6912
    %6945 = vst [vmem:[#allocation9 + $0x60] sm:$0xff] %v6913
    %6946 = vst [vmem:[#allocation9 + $0x68] sm:$0xff] %v6914
    %6947 = vst [vmem:[#allocation9 + $0x70] sm:$0xff] %v6915
    %6948 = vst [vmem:[#allocation9 + $0x78] sm:$0xff] %v6916
    %6949 = vst [vmem:[#allocation9 + $0x80] sm:$0xff] %v6917
    %6950 = vst [vmem:[#allocation9 + $0x88] sm:$0xff] %v6918
    %6951 = vst [vmem:[#allocation9 + $0x90] sm:$0xff] %v6919
    %6952 = vst [vmem:[#allocation9 + $0x98] sm:$0xff] %v6920
    %6953 = vst [vmem:[#allocation9 + $0xa0] sm:$0xff] %v6921
    %6954 = vst [vmem:[#allocation9 + $0xa8] sm:$0xff] %v6922
    %6955 = vst [vmem:[#allocation9 + $0xb0] sm:$0xff] %v6923
    %6956 = vst [vmem:[#allocation9 + $0xb8] sm:$0xff] %v6924
    %6957 = vst [vmem:[#allocation9 + $0xc0] sm:$0xff] %v6925
    %6958 = vst [vmem:[#allocation9 + $0xc8] sm:$0xff] %v6926
    %6959 = vst [vmem:[#allocation9 + $0xd0] sm:$0xff] %v6927
    %6960 = vst [vmem:[#allocation9 + $0xd8] sm:$0xff] %v6928
    %6961 = vst [vmem:[#allocation9 + $0xe0] sm:$0xff] %v6929
    %6962 = vst [vmem:[#allocation9 + $0xe8] sm:$0xff] %v6930
    %6963 = vst [vmem:[#allocation9 + $0xf0] sm:$0xff] %v6931
    %6964 = vst [vmem:[#allocation9 + $0xf8] sm:$0xff] %v6932
    // Predicated region
    $region34: #{tpu_custom_call.1} parent=1 // pred_check
      _
    $region35: #{tpu_custom_call.1} parent=1 // pred_check_branch
      %6966 = sbr.rel (0) target = $region37
    $region36: #{tpu_custom_call.1} parent=1 // pred_region
      %s6968 = ssub.s32 4096, 4096
      %6969 = vsyncadd [#allocation5], %s6968
      %s6970 = sshll.u32 [#allocation9], 4
      %s6971 = int_to_ptr.vmem [resolvable:$true] %s6970
      %6976 = dma.vmem_to_hbm [thread:$0]  %s6971, 4096, %s5, [#allocation5], 256, 256, 16
    $region37: #{tpu_custom_call.1} parent=1 // pred_fallthru
      _
    // Predicated region
    $region38: #{tpu_custom_call.1} parent=1 // pred_check
      _
    $region39: #{tpu_custom_call.1} parent=1 // pred_check_branch
      %6978 = sbr.rel (0) target = $region41
    $region40: #{tpu_custom_call.1} parent=1 // pred_region
      %6979 = dma.done [#allocation5], 4096
    $region41: #{tpu_custom_call.1} parent=1 // pred_fallthru
      _
    %6980 = vsyncpa [#allocation4], 1
    %6981 = vsyncpa [#allocation7], 1
    %6982 = vsyncpa [#allocation5], 1

</llo_original>
